<compile_context>
chip_gen: v6e
topology: v6e:2x2x1
jax: 0.10.0
libtpu: 0.0.40
codegen_flags: <defaults>
</compile_context>

<pallas_src>
import jax
import jax.numpy as jnp
import numpy as np
from jax.experimental import pallas as pl
from jax.experimental.pallas import tpu as pltpu


# --------------------------------------------------------------------------
# Fused Pallas kernel (runs once per batch tile of B samples)
# --------------------------------------------------------------------------
def lenet5_kernel(xin_ref, w1t_ref, b1_ref, w2t_ref, b2_ref,
                  fw1_ref, fb1_ref, fw2_ref, fb2_ref, fw3_ref, fb3_ref,
                  out_ref):
    """Batch-stacked fused LeNet5 forward.

    xin_ref : (2, B*8, 64) f32  plane 0/1 = even/odd space-to-depth rows;
                                row n*8+k = s2d row 2k (/2k+1) of sample n,
                                col = b*4 + 2p + q.
    w1t_ref : (3, 64, 512) bf16 conv1+pool Toeplitz blocks (per row shift s_h).
    w2t_ref : (6, 128, 512) bf16 conv2+pool blocks (plane parity * 3 + s_h).
    fw1_ref : (5, 128, 128) bf16 fc1 regrouped per pooled row i2.
    fw2/3   : (128, 128) bf16   zero-padded fc weights.
    biases  : (1, 128) f32      zero-padded / tiled biases.
    out_ref : (B*8, 128) f32    row n*8 holds the logits of sample n
                                (cols >= 10 are 0); all other rows are junk.
    """
    f32 = jnp.float32
    BM = out_ref.shape[0]                       # B * 8 stacked rows

    def mm(a, w):                               # bf16 MXU operands, f32 acc
        return jnp.dot(a.astype(jnp.bfloat16), w, preferred_element_type=f32)

    def shift_up(x, s):                         # out[r] = x[r + s]; zero tail
        if s == 0:
            return x
        return jnp.concatenate(
            [x[s:], jnp.zeros((s, x.shape[1]), x.dtype)], axis=0)

    def pool_bias_relu(y, b):
        # y: (BM, 512) = 4 pool-offset groups of 128 lanes -> max, bias, ReLU.
        m = jnp.maximum(jnp.maximum(y[:, 0:128], y[:, 128:256]),
                        jnp.maximum(y[:, 256:384], y[:, 384:512]))
        return jnp.maximum(m + b, 0.0)

    # ---- conv1 (5x5, 1->6) + bias + ReLU + 2x2 max-pool --------------------
    # Rows n*8+k (k=0..6) of a1e / a1o are pooled rows 2k / 2k+1 of sample n,
    # col = j1*8 + c.  Row n*8+7 is junk and never read by valid rows below.
    e = xin_ref[0]                              # (BM, 64) even s2d rows
    o = xin_ref[1]                              # (BM, 64) odd  s2d rows
    e1 = shift_up(e, 1)                         # within-sample row shift +1
    o1 = shift_up(o, 1)
    y1e = mm(e, w1t_ref[0]) + mm(o, w1t_ref[1]) + mm(e1, w1t_ref[2])
    y1o = mm(o, w1t_ref[0]) + mm(e1, w1t_ref[1]) + mm(o1, w1t_ref[2])
    b1 = b1_ref[...]
    a1e = pool_bias_relu(y1e, b1)
    a1o = pool_bias_relu(y1o, b1)

    # ---- conv2 (5x5, 6->16) + bias + ReLU + 2x2 max-pool -------------------
    # Rows n*8+i2 (i2=0..4) of a2 are pooled row i2 of sample n, col=j2*16+ch2.
    z2 = mm(a1e, w2t_ref[0]) + mm(a1o, w2t_ref[3])
    for s in (1, 2):
        z2 = z2 + mm(shift_up(a1e, s), w2t_ref[s])
        z2 = z2 + mm(shift_up(a1o, s), w2t_ref[s + 3])
    a2 = pool_bias_relu(z2, b2_ref[...])

    # ---- fc1 -> ReLU -> fc2 -> ReLU -> fc3 (hidden dims padded to 128) -----
    # Row n*8 of h / logits is the valid result for sample n.
    h = mm(a2, fw1_ref[0])
    for i2 in (1, 2, 3, 4):
        h = h + mm(shift_up(a2, i2), fw1_ref[i2])
    h = jnp.maximum(h + fb1_ref[...], 0.0)
    h = jnp.maximum(mm(h, fw2_ref[...]) + fb2_ref[...], 0.0)
    out_ref[...] = mm(h, fw3_ref[...]) + fb3_ref[...]   # lane-dense store


# --------------------------------------------------------------------------
# Host wrapper: one pallas_call, gridded over batch tiles of B samples
# --------------------------------------------------------------------------
def lenet5_forward(x, prep, block_b=8):
    """x: (N, 1, 32, 32) f32 NCHW.  prep: repacked weights.  Returns (N, 10)."""
    N = x.shape[0]
    B = min(block_b, N)                  # samples per grid step
    n_pad = (-N) % B
    Np = N + n_pad
    BM = B * 8
    steps = Np // B
    weight_args = prep

    # space-to-depth (factor 2): (N,32,32)->(N,16,64), col = b*4 + 2p + q,
    # then split into even / odd s2d-row planes and stack samples along rows.
    xs = x.reshape(N, 16, 2, 16, 2).transpose(0, 1, 3, 2, 4).reshape(N, 16, 64)
    xs = xs.astype(jnp.float32)
    if n_pad:
        xs = jnp.concatenate([xs, jnp.zeros((n_pad, 16, 64), jnp.float32)], 0)
    xin = jnp.stack([xs[:, 0::2, :].reshape(Np * 8, 64),
                     xs[:, 1::2, :].reshape(Np * 8, 64)], axis=0)  # (2,Np*8,64)

    def cspec(a):  # whole-array block, constant across the batch-tile grid
        nd = a.ndim
        return pl.BlockSpec(a.shape, lambda n, _nd=nd: (0,) * _nd)

    flops = steps * 2 * BM * (6 * 64 * 512 + 6 * 128 * 512 + 7 * 128 * 128)
    bytes_accessed = int(xin.size * 4
                         + sum(a.size * a.dtype.itemsize for a in weight_args)
                         + Np * 8 * 128 * 4)

    out = pl.pallas_call(
        lenet5_kernel,
        out_shape=jax.ShapeDtypeStruct((Np * 8, 128), jnp.float32),
        grid=(steps,),
        in_specs=[pl.BlockSpec((2, BM, 64), lambda n: (0, n, 0))]
                + [cspec(a) for a in weight_args],
        out_specs=pl.BlockSpec((BM, 128), lambda n: (n, 0)),
        compiler_params=pltpu.CompilerParams(dimension_semantics=("parallel",)),
        cost_estimate=pl.CostEstimate(flops=flops, transcendentals=0,
                                      bytes_accessed=bytes_accessed),
    )(xin, *weight_args)
    return out.reshape(Np, 8, 128)[:N, 0, :10]


# --------------------------------------------------------------------------
# One-time weight repacking (numpy, host): conv -> fused conv+pool Toeplitz
# blocks, fc -> lane-padded / regrouped matrices.  Numerically exact.
# --------------------------------------------------------------------------
def prepare_params(params):
    w1, b1 = params["conv1"]
    w2, b2 = params["conv2"]
    (fw1, fb1), (fw2, fb2), (fw3, fb3) = params["fc"]
    w1 = np.asarray(w1, np.float32); b1 = np.asarray(b1, np.float32)
    w2 = np.asarray(w2, np.float32); b2 = np.asarray(b2, np.float32)
    fw1 = np.asarray(fw1, np.float32); fb1 = np.asarray(fb1, np.float32)
    fw2 = np.asarray(fw2, np.float32); fb2 = np.asarray(fb2, np.float32)
    fw3 = np.asarray(fw3, np.float32); fb3 = np.asarray(fb3, np.float32)

    # conv1: maps one s2d input row (16 cols x 4 sub-pixels = 64) to all
    # (pool offset g=2*di+dj, pooled col j1<14 pad 16, channel c<6 pad 8)
    # outputs for a pooled output row, for each of 3 row shifts s_h.
    w1t = np.zeros((3, 64, 512), np.float32)
    for sh in range(3):
        for p in range(2):
            for di in range(2):
                kh = 2 * sh + p - di
                if not 0 <= kh < 5:
                    continue
                for dj in range(2):
                    g = 2 * di + dj
                    for j1 in range(14):
                        for b in range(16):
                            for q in range(2):
                                kw = 2 * (b - j1) + q - dj
                                if not 0 <= kw < 5:
                                    continue
                                col = g * 128 + j1 * 8
                                w1t[sh, b * 4 + 2 * p + q, col:col + 6] = w1[:, 0, kh, kw]

    b1row = np.zeros((1, 128), np.float32)
    for j1 in range(14):
        b1row[0, j1 * 8: j1 * 8 + 6] = b1

    # conv2: input plane layout col = c1*8 + ch1 (c1<14, ch1<6); output col =
    # g2*128 + j2*16 + ch2 (j2<5 padded to 8, ch2<16); per (plane parity p,
    # row shift s_h) block.
    w2t = np.zeros((2, 3, 128, 512), np.float32)
    for p in range(2):
        for sh in range(3):
            for di in range(2):
                kh = 2 * sh + p - di
                if not 0 <= kh < 5:
                    continue
                for dj in range(2):
                    g = 2 * di + dj
                    for j2 in range(5):
                        for kw in range(5):
                            c1 = 2 * j2 + dj + kw              # <= 13
                            blk = w2[:, :, kh, kw].T           # (ch1=6, ch2=16)
                            w2t[p, sh,
                                c1 * 8: c1 * 8 + 6,
                                g * 128 + j2 * 16: g * 128 + j2 * 16 + 16] = blk
    w2t = w2t.reshape(6, 128, 512)

    b2row = np.zeros((1, 128), np.float32)
    for j2 in range(5):
        b2row[0, j2 * 16: j2 * 16 + 16] = b2

    # fc1 regrouped to the (i2, j2*16+ch2) activation layout (this also absorbs
    # the NCHW flatten permutation); hidden dims zero-padded to 128 lanes.
    fw1p = np.zeros((5, 128, 128), np.float32)
    for i2 in range(5):
        for j2 in range(5):
            for c in range(16):
                fw1p[i2, j2 * 16 + c, :120] = fw1[c * 25 + i2 * 5 + j2, :]
    fb1p = np.zeros((1, 128), np.float32); fb1p[0, :120] = fb1
    fw2p = np.zeros((128, 128), np.float32); fw2p[:120, :84] = fw2
    fb2p = np.zeros((1, 128), np.float32); fb2p[0, :84] = fb2
    fw3p = np.zeros((128, 128), np.float32); fw3p[:84, :10] = fw3
    fb3p = np.zeros((1, 128), np.float32); fb3p[0, :10] = fb3

    bf = jnp.bfloat16
    return (jnp.asarray(w1t, bf), jnp.asarray(b1row),
            jnp.asarray(w2t, bf), jnp.asarray(b2row),
            jnp.asarray(fw1p, bf), jnp.asarray(fb1p),
            jnp.asarray(fw2p, bf), jnp.asarray(fb2p),
            jnp.asarray(fw3p, bf), jnp.asarray(fb3p))


# --------------------------------------------------------------------------
# Deterministic init + pure-JAX f32 reference for verification
# --------------------------------------------------------------------------
def init_params(key):
    ks = jax.random.split(key, 10)

    def u(k, shape, fan_in):
        bound = 1.0 / float(fan_in) ** 0.5
        return jax.random.uniform(k, shape, jnp.float32, -bound, bound)

    w1 = u(ks[0], (6, 1, 5, 5), 25);    b1 = u(ks[1], (6,), 25)
    w2 = u(ks[2], (16, 6, 5, 5), 150);  b2 = u(ks[3], (16,), 150)
    fw1 = u(ks[4], (400, 120), 400);    fb1 = u(ks[5], (120,), 400)
    fw2 = u(ks[6], (120, 84), 120);     fb2 = u(ks[7], (84,), 120)
    fw3 = u(ks[8], (84, 10), 84);       fb3 = u(ks[9], (10,), 84)
    return {"conv1": (w1, b1), "conv2": (w2, b2),
            "fc": ((fw1, fb1), (fw2, fb2), (fw3, fb3))}


def reference_forward(x, params):
    (w1, b1) = params["conv1"]
    (w2, b2) = params["conv2"]
    ((fw1, fb1), (fw2, fb2), (fw3, fb3)) = params["fc"]

    def conv(x_, w_):
        dn = jax.lax.conv_dimension_numbers(x_.shape, w_.shape,
                                            ("NCHW", "OIHW", "NCHW"))
        return jax.lax.conv_general_dilated(x_, w_, (1, 1), "VALID",
                                            dimension_numbers=dn)

    def pool(x_):
        return jax.lax.reduce_window(x_, -jnp.inf, jax.lax.max,
                                     (1, 1, 2, 2), (1, 1, 2, 2), "VALID")

    y = pool(jnp.maximum(conv(x, w1) + b1[None, :, None, None], 0.0))
    y = pool(jnp.maximum(conv(y, w2) + b2[None, :, None, None], 0.0))
    f = y.reshape(y.shape[0], -1)
    f = jnp.maximum(f @ fw1 + fb1, 0.0)
    f = jnp.maximum(f @ fw2 + fb2, 0.0)
    return f @ fw3 + fb3


if __name__ == "__main__":
    key = jax.random.PRNGKey(0)
    pkey, xkey = jax.random.split(key)
    params = init_params(pkey)
    prep = prepare_params(params)                         # one-time repacking
    x = jax.random.normal(xkey, (2, 1, 32, 32), jnp.float32)   # NCHW, like PyTorch

    fwd = jax.jit(lenet5_forward)
    out = jax.block_until_ready(fwd(x, prep))

    ref = reference_forward(x, params)
    assert out.shape == (2, 10), out.shape
    err = float(jnp.max(jnp.abs(out - ref)))
    # bf16 MXU operands vs f32 reference -> small, bounded mismatch.
    assert err < 5e-2, ("mismatch vs reference", err)
    print("KERNEL_OK")
</pallas_src>

<mosaic_0001>
module attributes {stable_mosaic.version = 11 : i64} {
  func.func @lenet5_kernel(%arg0: i32, %arg1: memref<2x16x64xf32, #tpu.memory_space<vmem>>, %arg2: memref<3x64x512xbf16, #tpu.memory_space<vmem>>, %arg3: memref<1x128xf32, #tpu.memory_space<vmem>>, %arg4: memref<6x128x512xbf16, #tpu.memory_space<vmem>>, %arg5: memref<1x128xf32, #tpu.memory_space<vmem>>, %arg6: memref<5x128x128xbf16, #tpu.memory_space<vmem>>, %arg7: memref<1x128xf32, #tpu.memory_space<vmem>>, %arg8: memref<128x128xbf16, #tpu.memory_space<vmem>>, %arg9: memref<1x128xf32, #tpu.memory_space<vmem>>, %arg10: memref<128x128xbf16, #tpu.memory_space<vmem>>, %arg11: memref<1x128xf32, #tpu.memory_space<vmem>>, %arg12: memref<16x128xf32, #tpu.memory_space<vmem>>) attributes {dimension_semantics = [#tpu.dimension_semantics<parallel>], iteration_bounds = array<i64: 1>, scalar_prefetch = 0 : i64, scratch_operands = 0 : i64, tpu.core_type = #tpu.core_type<tc>, window_params = [{transform_indices = @transform_0, window_bounds = array<i64: 2, 16, 64>}, {pipeline_mode = #tpu.pipeline_mode<synchronous>, transform_indices = @transform_1, window_bounds = array<i64: 3, 64, 512>}, {pipeline_mode = #tpu.pipeline_mode<synchronous>, transform_indices = @transform_2, window_bounds = array<i64: 1, 128>}, {pipeline_mode = #tpu.pipeline_mode<synchronous>, transform_indices = @transform_3, window_bounds = array<i64: 6, 128, 512>}, {pipeline_mode = #tpu.pipeline_mode<synchronous>, transform_indices = @transform_4, window_bounds = array<i64: 1, 128>}, {pipeline_mode = #tpu.pipeline_mode<synchronous>, transform_indices = @transform_5, window_bounds = array<i64: 5, 128, 128>}, {pipeline_mode = #tpu.pipeline_mode<synchronous>, transform_indices = @transform_6, window_bounds = array<i64: 1, 128>}, {pipeline_mode = #tpu.pipeline_mode<synchronous>, transform_indices = @transform_7, window_bounds = array<i64: 128, 128>}, {pipeline_mode = #tpu.pipeline_mode<synchronous>, transform_indices = @transform_8, window_bounds = array<i64: 1, 128>}, {pipeline_mode = #tpu.pipeline_mode<synchronous>, transform_indices = @transform_9, window_bounds = array<i64: 128, 128>}, {pipeline_mode = #tpu.pipeline_mode<synchronous>, transform_indices = @transform_10, window_bounds = array<i64: 1, 128>}, {transform_indices = @transform_11, window_bounds = array<i64: 16, 128>}]} {
    %c0 = arith.constant 0 : index
    %c0_0 = arith.constant 0 : index
    %c0_1 = arith.constant 0 : index
    %0 = vector.load %arg1[%c0, %c0_0, %c0_1] : memref<2x16x64xf32, #tpu.memory_space<vmem>>, vector<1x16x64xf32>
    %1 = vector.shape_cast %0 : vector<1x16x64xf32> to vector<16x64xf32>
    %c1 = arith.constant 1 : index
    %c0_2 = arith.constant 0 : index
    %c0_3 = arith.constant 0 : index
    %2 = vector.load %arg1[%c1, %c0_2, %c0_3] : memref<2x16x64xf32, #tpu.memory_space<vmem>>, vector<1x16x64xf32>
    %3 = vector.shape_cast %2 : vector<1x16x64xf32> to vector<16x64xf32>
    %4 = vector.extract_strided_slice %1 {offsets = [1, 0], sizes = [15, 64], strides = [1, 1]} : vector<16x64xf32> to vector<15x64xf32>
    %cst = arith.constant 0.000000e+00 : f32
    %5 = vector.broadcast %cst : f32 to vector<1x64xf32>
    %6 = tpu.concatenate %4, %5 in 0 : vector<15x64xf32>, vector<1x64xf32> -> vector<16x64xf32>
    %7 = vector.extract_strided_slice %3 {offsets = [1, 0], sizes = [15, 64], strides = [1, 1]} : vector<16x64xf32> to vector<15x64xf32>
    %cst_4 = arith.constant 0.000000e+00 : f32
    %8 = vector.broadcast %cst_4 : f32 to vector<1x64xf32>
    %9 = tpu.concatenate %7, %8 in 0 : vector<15x64xf32>, vector<1x64xf32> -> vector<16x64xf32>
    %c0_5 = arith.constant 0 : index
    %c0_6 = arith.constant 0 : index
    %c0_7 = arith.constant 0 : index
    %10 = vector.load %arg2[%c0_5, %c0_6, %c0_7] : memref<3x64x512xbf16, #tpu.memory_space<vmem>>, vector<1x64x512xbf16>
    %11 = vector.shape_cast %10 : vector<1x64x512xbf16> to vector<64x512xbf16>
    %12 = arith.truncf %1 : vector<16x64xf32> to vector<16x64xbf16>
    %cst_8 = arith.constant dense<0.000000e+00> : vector<16x512xf32>
    %13 = tpu.matmul %12, %11, %cst_8 {dimension_numbers = #tpu.dot_dimension_numbers<[1], [0], [0], [1], [0, 0, 1, 1], [], []>} : vector<16x64xbf16>, vector<64x512xbf16>, vector<16x512xf32> -> vector<16x512xf32>
    %c1_9 = arith.constant 1 : index
    %c0_10 = arith.constant 0 : index
    %c0_11 = arith.constant 0 : index
    %14 = vector.load %arg2[%c1_9, %c0_10, %c0_11] : memref<3x64x512xbf16, #tpu.memory_space<vmem>>, vector<1x64x512xbf16>
    %15 = vector.shape_cast %14 : vector<1x64x512xbf16> to vector<64x512xbf16>
    %16 = arith.truncf %3 : vector<16x64xf32> to vector<16x64xbf16>
    %cst_12 = arith.constant dense<0.000000e+00> : vector<16x512xf32>
    %17 = tpu.matmul %16, %15, %cst_12 {dimension_numbers = #tpu.dot_dimension_numbers<[1], [0], [0], [1], [0, 0, 1, 1], [], []>} : vector<16x64xbf16>, vector<64x512xbf16>, vector<16x512xf32> -> vector<16x512xf32>
    %18 = arith.addf %13, %17 : vector<16x512xf32>
    %c2 = arith.constant 2 : index
    %c0_13 = arith.constant 0 : index
    %c0_14 = arith.constant 0 : index
    %19 = vector.load %arg2[%c2, %c0_13, %c0_14] : memref<3x64x512xbf16, #tpu.memory_space<vmem>>, vector<1x64x512xbf16>
    %20 = vector.shape_cast %19 : vector<1x64x512xbf16> to vector<64x512xbf16>
    %21 = arith.truncf %6 : vector<16x64xf32> to vector<16x64xbf16>
    %cst_15 = arith.constant dense<0.000000e+00> : vector<16x512xf32>
    %22 = tpu.matmul %21, %20, %cst_15 {dimension_numbers = #tpu.dot_dimension_numbers<[1], [0], [0], [1], [0, 0, 1, 1], [], []>} : vector<16x64xbf16>, vector<64x512xbf16>, vector<16x512xf32> -> vector<16x512xf32>
    %23 = arith.addf %18, %22 : vector<16x512xf32>
    %c0_16 = arith.constant 0 : index
    %c0_17 = arith.constant 0 : index
    %c0_18 = arith.constant 0 : index
    %24 = vector.load %arg2[%c0_16, %c0_17, %c0_18] : memref<3x64x512xbf16, #tpu.memory_space<vmem>>, vector<1x64x512xbf16>
    %25 = vector.shape_cast %24 : vector<1x64x512xbf16> to vector<64x512xbf16>
    %26 = arith.truncf %3 : vector<16x64xf32> to vector<16x64xbf16>
    %cst_19 = arith.constant dense<0.000000e+00> : vector<16x512xf32>
    %27 = tpu.matmul %26, %25, %cst_19 {dimension_numbers = #tpu.dot_dimension_numbers<[1], [0], [0], [1], [0, 0, 1, 1], [], []>} : vector<16x64xbf16>, vector<64x512xbf16>, vector<16x512xf32> -> vector<16x512xf32>
    %c1_20 = arith.constant 1 : index
    %c0_21 = arith.constant 0 : index
    %c0_22 = arith.constant 0 : index
    %28 = vector.load %arg2[%c1_20, %c0_21, %c0_22] : memref<3x64x512xbf16, #tpu.memory_space<vmem>>, vector<1x64x512xbf16>
    %29 = vector.shape_cast %28 : vector<1x64x512xbf16> to vector<64x512xbf16>
    %30 = arith.truncf %6 : vector<16x64xf32> to vector<16x64xbf16>
    %cst_23 = arith.constant dense<0.000000e+00> : vector<16x512xf32>
    %31 = tpu.matmul %30, %29, %cst_23 {dimension_numbers = #tpu.dot_dimension_numbers<[1], [0], [0], [1], [0, 0, 1, 1], [], []>} : vector<16x64xbf16>, vector<64x512xbf16>, vector<16x512xf32> -> vector<16x512xf32>
    %32 = arith.addf %27, %31 : vector<16x512xf32>
    %c2_24 = arith.constant 2 : index
    %c0_25 = arith.constant 0 : index
    %c0_26 = arith.constant 0 : index
    %33 = vector.load %arg2[%c2_24, %c0_25, %c0_26] : memref<3x64x512xbf16, #tpu.memory_space<vmem>>, vector<1x64x512xbf16>
    %34 = vector.shape_cast %33 : vector<1x64x512xbf16> to vector<64x512xbf16>
    %35 = arith.truncf %9 : vector<16x64xf32> to vector<16x64xbf16>
    %cst_27 = arith.constant dense<0.000000e+00> : vector<16x512xf32>
    %36 = tpu.matmul %35, %34, %cst_27 {dimension_numbers = #tpu.dot_dimension_numbers<[1], [0], [0], [1], [0, 0, 1, 1], [], []>} : vector<16x64xbf16>, vector<64x512xbf16>, vector<16x512xf32> -> vector<16x512xf32>
    %37 = arith.addf %32, %36 : vector<16x512xf32>
    %c0_28 = arith.constant 0 : index
    %c0_29 = arith.constant 0 : index
    %38 = vector.load %arg3[%c0_28, %c0_29] : memref<1x128xf32, #tpu.memory_space<vmem>>, vector<1x128xf32>
    %39 = vector.extract_strided_slice %23 {offsets = [0, 0], sizes = [16, 128], strides = [1, 1]} : vector<16x512xf32> to vector<16x128xf32>
    %40 = vector.extract_strided_slice %23 {offsets = [0, 128], sizes = [16, 128], strides = [1, 1]} : vector<16x512xf32> to vector<16x128xf32>
    %41 = arith.maximumf %39, %40 : vector<16x128xf32>
    %42 = vector.extract_strided_slice %23 {offsets = [0, 256], sizes = [16, 128], strides = [1, 1]} : vector<16x512xf32> to vector<16x128xf32>
    %43 = vector.extract_strided_slice %23 {offsets = [0, 384], sizes = [16, 128], strides = [1, 1]} : vector<16x512xf32> to vector<16x128xf32>
    %44 = arith.maximumf %42, %43 : vector<16x128xf32>
    %45 = arith.maximumf %41, %44 : vector<16x128xf32>
    %46 = vector.broadcast %38 : vector<1x128xf32> to vector<16x128xf32>
    %47 = arith.addf %45, %46 : vector<16x128xf32>
    %cst_30 = arith.constant 0.000000e+00 : f32
    %48 = vector.broadcast %cst_30 : f32 to vector<16x128xf32>
    %49 = arith.maximumf %47, %48 : vector<16x128xf32>
    %50 = vector.extract_strided_slice %37 {offsets = [0, 0], sizes = [16, 128], strides = [1, 1]} : vector<16x512xf32> to vector<16x128xf32>
    %51 = vector.extract_strided_slice %37 {offsets = [0, 128], sizes = [16, 128], strides = [1, 1]} : vector<16x512xf32> to vector<16x128xf32>
    %52 = arith.maximumf %50, %51 : vector<16x128xf32>
    %53 = vector.extract_strided_slice %37 {offsets = [0, 256], sizes = [16, 128], strides = [1, 1]} : vector<16x512xf32> to vector<16x128xf32>
    %54 = vector.extract_strided_slice %37 {offsets = [0, 384], sizes = [16, 128], strides = [1, 1]} : vector<16x512xf32> to vector<16x128xf32>
    %55 = arith.maximumf %53, %54 : vector<16x128xf32>
    %56 = arith.maximumf %52, %55 : vector<16x128xf32>
    %57 = vector.broadcast %38 : vector<1x128xf32> to vector<16x128xf32>
    %58 = arith.addf %56, %57 : vector<16x128xf32>
    %cst_31 = arith.constant 0.000000e+00 : f32
    %59 = vector.broadcast %cst_31 : f32 to vector<16x128xf32>
    %60 = arith.maximumf %58, %59 : vector<16x128xf32>
    %c0_32 = arith.constant 0 : index
    %c0_33 = arith.constant 0 : index
    %c0_34 = arith.constant 0 : index
    %61 = vector.load %arg4[%c0_32, %c0_33, %c0_34] : memref<6x128x512xbf16, #tpu.memory_space<vmem>>, vector<1x128x512xbf16>
    %62 = vector.shape_cast %61 : vector<1x128x512xbf16> to vector<128x512xbf16>
    %63 = arith.truncf %49 : vector<16x128xf32> to vector<16x128xbf16>
    %cst_35 = arith.constant dense<0.000000e+00> : vector<16x512xf32>
    %64 = tpu.matmul %63, %62, %cst_35 {dimension_numbers = #tpu.dot_dimension_numbers<[1], [0], [0], [1], [0, 0, 1, 1], [], []>} : vector<16x128xbf16>, vector<128x512xbf16>, vector<16x512xf32> -> vector<16x512xf32>
    %c3 = arith.constant 3 : index
    %c0_36 = arith.constant 0 : index
    %c0_37 = arith.constant 0 : index
    %65 = vector.load %arg4[%c3, %c0_36, %c0_37] : memref<6x128x512xbf16, #tpu.memory_space<vmem>>, vector<1x128x512xbf16>
    %66 = vector.shape_cast %65 : vector<1x128x512xbf16> to vector<128x512xbf16>
    %67 = arith.truncf %60 : vector<16x128xf32> to vector<16x128xbf16>
    %cst_38 = arith.constant dense<0.000000e+00> : vector<16x512xf32>
    %68 = tpu.matmul %67, %66, %cst_38 {dimension_numbers = #tpu.dot_dimension_numbers<[1], [0], [0], [1], [0, 0, 1, 1], [], []>} : vector<16x128xbf16>, vector<128x512xbf16>, vector<16x512xf32> -> vector<16x512xf32>
    %69 = arith.addf %64, %68 : vector<16x512xf32>
    %70 = vector.extract_strided_slice %49 {offsets = [1, 0], sizes = [15, 128], strides = [1, 1]} : vector<16x128xf32> to vector<15x128xf32>
    %cst_39 = arith.constant 0.000000e+00 : f32
    %71 = vector.broadcast %cst_39 : f32 to vector<1x128xf32>
    %72 = tpu.concatenate %70, %71 in 0 : vector<15x128xf32>, vector<1x128xf32> -> vector<16x128xf32>
    %c1_40 = arith.constant 1 : index
    %c0_41 = arith.constant 0 : index
    %c0_42 = arith.constant 0 : index
    %73 = vector.load %arg4[%c1_40, %c0_41, %c0_42] : memref<6x128x512xbf16, #tpu.memory_space<vmem>>, vector<1x128x512xbf16>
    %74 = vector.shape_cast %73 : vector<1x128x512xbf16> to vector<128x512xbf16>
    %75 = arith.truncf %72 : vector<16x128xf32> to vector<16x128xbf16>
    %cst_43 = arith.constant dense<0.000000e+00> : vector<16x512xf32>
    %76 = tpu.matmul %75, %74, %cst_43 {dimension_numbers = #tpu.dot_dimension_numbers<[1], [0], [0], [1], [0, 0, 1, 1], [], []>} : vector<16x128xbf16>, vector<128x512xbf16>, vector<16x512xf32> -> vector<16x512xf32>
    %77 = arith.addf %69, %76 : vector<16x512xf32>
    %78 = vector.extract_strided_slice %60 {offsets = [1, 0], sizes = [15, 128], strides = [1, 1]} : vector<16x128xf32> to vector<15x128xf32>
    %cst_44 = arith.constant 0.000000e+00 : f32
    %79 = vector.broadcast %cst_44 : f32 to vector<1x128xf32>
    %80 = tpu.concatenate %78, %79 in 0 : vector<15x128xf32>, vector<1x128xf32> -> vector<16x128xf32>
    %c4 = arith.constant 4 : index
    %c0_45 = arith.constant 0 : index
    %c0_46 = arith.constant 0 : index
    %81 = vector.load %arg4[%c4, %c0_45, %c0_46] : memref<6x128x512xbf16, #tpu.memory_space<vmem>>, vector<1x128x512xbf16>
    %82 = vector.shape_cast %81 : vector<1x128x512xbf16> to vector<128x512xbf16>
    %83 = arith.truncf %80 : vector<16x128xf32> to vector<16x128xbf16>
    %cst_47 = arith.constant dense<0.000000e+00> : vector<16x512xf32>
    %84 = tpu.matmul %83, %82, %cst_47 {dimension_numbers = #tpu.dot_dimension_numbers<[1], [0], [0], [1], [0, 0, 1, 1], [], []>} : vector<16x128xbf16>, vector<128x512xbf16>, vector<16x512xf32> -> vector<16x512xf32>
    %85 = arith.addf %77, %84 : vector<16x512xf32>
    %86 = vector.extract_strided_slice %49 {offsets = [2, 0], sizes = [14, 128], strides = [1, 1]} : vector<16x128xf32> to vector<14x128xf32>
    %cst_48 = arith.constant 0.000000e+00 : f32
    %87 = vector.broadcast %cst_48 : f32 to vector<2x128xf32>
    %88 = tpu.concatenate %86, %87 in 0 : vector<14x128xf32>, vector<2x128xf32> -> vector<16x128xf32>
    %c2_49 = arith.constant 2 : index
    %c0_50 = arith.constant 0 : index
    %c0_51 = arith.constant 0 : index
    %89 = vector.load %arg4[%c2_49, %c0_50, %c0_51] : memref<6x128x512xbf16, #tpu.memory_space<vmem>>, vector<1x128x512xbf16>
    %90 = vector.shape_cast %89 : vector<1x128x512xbf16> to vector<128x512xbf16>
    %91 = arith.truncf %88 : vector<16x128xf32> to vector<16x128xbf16>
    %cst_52 = arith.constant dense<0.000000e+00> : vector<16x512xf32>
    %92 = tpu.matmul %91, %90, %cst_52 {dimension_numbers = #tpu.dot_dimension_numbers<[1], [0], [0], [1], [0, 0, 1, 1], [], []>} : vector<16x128xbf16>, vector<128x512xbf16>, vector<16x512xf32> -> vector<16x512xf32>
    %93 = arith.addf %85, %92 : vector<16x512xf32>
    %94 = vector.extract_strided_slice %60 {offsets = [2, 0], sizes = [14, 128], strides = [1, 1]} : vector<16x128xf32> to vector<14x128xf32>
    %cst_53 = arith.constant 0.000000e+00 : f32
    %95 = vector.broadcast %cst_53 : f32 to vector<2x128xf32>
    %96 = tpu.concatenate %94, %95 in 0 : vector<14x128xf32>, vector<2x128xf32> -> vector<16x128xf32>
    %c5 = arith.constant 5 : index
    %c0_54 = arith.constant 0 : index
    %c0_55 = arith.constant 0 : index
    %97 = vector.load %arg4[%c5, %c0_54, %c0_55] : memref<6x128x512xbf16, #tpu.memory_space<vmem>>, vector<1x128x512xbf16>
    %98 = vector.shape_cast %97 : vector<1x128x512xbf16> to vector<128x512xbf16>
    %99 = arith.truncf %96 : vector<16x128xf32> to vector<16x128xbf16>
    %cst_56 = arith.constant dense<0.000000e+00> : vector<16x512xf32>
    %100 = tpu.matmul %99, %98, %cst_56 {dimension_numbers = #tpu.dot_dimension_numbers<[1], [0], [0], [1], [0, 0, 1, 1], [], []>} : vector<16x128xbf16>, vector<128x512xbf16>, vector<16x512xf32> -> vector<16x512xf32>
    %101 = arith.addf %93, %100 : vector<16x512xf32>
    %c0_57 = arith.constant 0 : index
    %c0_58 = arith.constant 0 : index
    %102 = vector.load %arg5[%c0_57, %c0_58] : memref<1x128xf32, #tpu.memory_space<vmem>>, vector<1x128xf32>
    %103 = vector.extract_strided_slice %101 {offsets = [0, 0], sizes = [16, 128], strides = [1, 1]} : vector<16x512xf32> to vector<16x128xf32>
    %104 = vector.extract_strided_slice %101 {offsets = [0, 128], sizes = [16, 128], strides = [1, 1]} : vector<16x512xf32> to vector<16x128xf32>
    %105 = arith.maximumf %103, %104 : vector<16x128xf32>
    %106 = vector.extract_strided_slice %101 {offsets = [0, 256], sizes = [16, 128], strides = [1, 1]} : vector<16x512xf32> to vector<16x128xf32>
    %107 = vector.extract_strided_slice %101 {offsets = [0, 384], sizes = [16, 128], strides = [1, 1]} : vector<16x512xf32> to vector<16x128xf32>
    %108 = arith.maximumf %106, %107 : vector<16x128xf32>
    %109 = arith.maximumf %105, %108 : vector<16x128xf32>
    %110 = vector.broadcast %102 : vector<1x128xf32> to vector<16x128xf32>
    %111 = arith.addf %109, %110 : vector<16x128xf32>
    %cst_59 = arith.constant 0.000000e+00 : f32
    %112 = vector.broadcast %cst_59 : f32 to vector<16x128xf32>
    %113 = arith.maximumf %111, %112 : vector<16x128xf32>
    %c0_60 = arith.constant 0 : index
    %c0_61 = arith.constant 0 : index
    %c0_62 = arith.constant 0 : index
    %114 = vector.load %arg6[%c0_60, %c0_61, %c0_62] : memref<5x128x128xbf16, #tpu.memory_space<vmem>>, vector<1x128x128xbf16>
    %115 = vector.shape_cast %114 : vector<1x128x128xbf16> to vector<128x128xbf16>
    %116 = arith.truncf %113 : vector<16x128xf32> to vector<16x128xbf16>
    %cst_63 = arith.constant dense<0.000000e+00> : vector<16x128xf32>
    %117 = tpu.matmul %116, %115, %cst_63 {dimension_numbers = #tpu.dot_dimension_numbers<[1], [0], [0], [1], [0, 0, 1, 1], [], []>} : vector<16x128xbf16>, vector<128x128xbf16>, vector<16x128xf32> -> vector<16x128xf32>
    %118 = vector.extract_strided_slice %113 {offsets = [1, 0], sizes = [15, 128], strides = [1, 1]} : vector<16x128xf32> to vector<15x128xf32>
    %cst_64 = arith.constant 0.000000e+00 : f32
    %119 = vector.broadcast %cst_64 : f32 to vector<1x128xf32>
    %120 = tpu.concatenate %118, %119 in 0 : vector<15x128xf32>, vector<1x128xf32> -> vector<16x128xf32>
    %c1_65 = arith.constant 1 : index
    %c0_66 = arith.constant 0 : index
    %c0_67 = arith.constant 0 : index
    %121 = vector.load %arg6[%c1_65, %c0_66, %c0_67] : memref<5x128x128xbf16, #tpu.memory_space<vmem>>, vector<1x128x128xbf16>
    %122 = vector.shape_cast %121 : vector<1x128x128xbf16> to vector<128x128xbf16>
    %123 = arith.truncf %120 : vector<16x128xf32> to vector<16x128xbf16>
    %cst_68 = arith.constant dense<0.000000e+00> : vector<16x128xf32>
    %124 = tpu.matmul %123, %122, %cst_68 {dimension_numbers = #tpu.dot_dimension_numbers<[1], [0], [0], [1], [0, 0, 1, 1], [], []>} : vector<16x128xbf16>, vector<128x128xbf16>, vector<16x128xf32> -> vector<16x128xf32>
    %125 = arith.addf %117, %124 : vector<16x128xf32>
    %126 = vector.extract_strided_slice %113 {offsets = [2, 0], sizes = [14, 128], strides = [1, 1]} : vector<16x128xf32> to vector<14x128xf32>
    %cst_69 = arith.constant 0.000000e+00 : f32
    %127 = vector.broadcast %cst_69 : f32 to vector<2x128xf32>
    %128 = tpu.concatenate %126, %127 in 0 : vector<14x128xf32>, vector<2x128xf32> -> vector<16x128xf32>
    %c2_70 = arith.constant 2 : index
    %c0_71 = arith.constant 0 : index
    %c0_72 = arith.constant 0 : index
    %129 = vector.load %arg6[%c2_70, %c0_71, %c0_72] : memref<5x128x128xbf16, #tpu.memory_space<vmem>>, vector<1x128x128xbf16>
    %130 = vector.shape_cast %129 : vector<1x128x128xbf16> to vector<128x128xbf16>
    %131 = arith.truncf %128 : vector<16x128xf32> to vector<16x128xbf16>
    %cst_73 = arith.constant dense<0.000000e+00> : vector<16x128xf32>
    %132 = tpu.matmul %131, %130, %cst_73 {dimension_numbers = #tpu.dot_dimension_numbers<[1], [0], [0], [1], [0, 0, 1, 1], [], []>} : vector<16x128xbf16>, vector<128x128xbf16>, vector<16x128xf32> -> vector<16x128xf32>
    %133 = arith.addf %125, %132 : vector<16x128xf32>
    %134 = vector.extract_strided_slice %113 {offsets = [3, 0], sizes = [13, 128], strides = [1, 1]} : vector<16x128xf32> to vector<13x128xf32>
    %cst_74 = arith.constant 0.000000e+00 : f32
    %135 = vector.broadcast %cst_74 : f32 to vector<3x128xf32>
    %136 = tpu.concatenate %134, %135 in 0 : vector<13x128xf32>, vector<3x128xf32> -> vector<16x128xf32>
    %c3_75 = arith.constant 3 : index
    %c0_76 = arith.constant 0 : index
    %c0_77 = arith.constant 0 : index
    %137 = vector.load %arg6[%c3_75, %c0_76, %c0_77] : memref<5x128x128xbf16, #tpu.memory_space<vmem>>, vector<1x128x128xbf16>
    %138 = vector.shape_cast %137 : vector<1x128x128xbf16> to vector<128x128xbf16>
    %139 = arith.truncf %136 : vector<16x128xf32> to vector<16x128xbf16>
    %cst_78 = arith.constant dense<0.000000e+00> : vector<16x128xf32>
    %140 = tpu.matmul %139, %138, %cst_78 {dimension_numbers = #tpu.dot_dimension_numbers<[1], [0], [0], [1], [0, 0, 1, 1], [], []>} : vector<16x128xbf16>, vector<128x128xbf16>, vector<16x128xf32> -> vector<16x128xf32>
    %141 = arith.addf %133, %140 : vector<16x128xf32>
    %142 = vector.extract_strided_slice %113 {offsets = [4, 0], sizes = [12, 128], strides = [1, 1]} : vector<16x128xf32> to vector<12x128xf32>
    %cst_79 = arith.constant 0.000000e+00 : f32
    %143 = vector.broadcast %cst_79 : f32 to vector<4x128xf32>
    %144 = tpu.concatenate %142, %143 in 0 : vector<12x128xf32>, vector<4x128xf32> -> vector<16x128xf32>
    %c4_80 = arith.constant 4 : index
    %c0_81 = arith.constant 0 : index
    %c0_82 = arith.constant 0 : index
    %145 = vector.load %arg6[%c4_80, %c0_81, %c0_82] : memref<5x128x128xbf16, #tpu.memory_space<vmem>>, vector<1x128x128xbf16>
    %146 = vector.shape_cast %145 : vector<1x128x128xbf16> to vector<128x128xbf16>
    %147 = arith.truncf %144 : vector<16x128xf32> to vector<16x128xbf16>
    %cst_83 = arith.constant dense<0.000000e+00> : vector<16x128xf32>
    %148 = tpu.matmul %147, %146, %cst_83 {dimension_numbers = #tpu.dot_dimension_numbers<[1], [0], [0], [1], [0, 0, 1, 1], [], []>} : vector<16x128xbf16>, vector<128x128xbf16>, vector<16x128xf32> -> vector<16x128xf32>
    %149 = arith.addf %141, %148 : vector<16x128xf32>
    %c0_84 = arith.constant 0 : index
    %c0_85 = arith.constant 0 : index
    %150 = vector.load %arg7[%c0_84, %c0_85] : memref<1x128xf32, #tpu.memory_space<vmem>>, vector<1x128xf32>
    %151 = vector.broadcast %150 : vector<1x128xf32> to vector<16x128xf32>
    %152 = arith.addf %149, %151 : vector<16x128xf32>
    %cst_86 = arith.constant 0.000000e+00 : f32
    %153 = vector.broadcast %cst_86 : f32 to vector<16x128xf32>
    %154 = arith.maximumf %152, %153 : vector<16x128xf32>
    %c0_87 = arith.constant 0 : index
    %c0_88 = arith.constant 0 : index
    %155 = vector.load %arg8[%c0_87, %c0_88] : memref<128x128xbf16, #tpu.memory_space<vmem>>, vector<128x128xbf16>
    %156 = arith.truncf %154 : vector<16x128xf32> to vector<16x128xbf16>
    %cst_89 = arith.constant dense<0.000000e+00> : vector<16x128xf32>
    %157 = tpu.matmul %156, %155, %cst_89 {dimension_numbers = #tpu.dot_dimension_numbers<[1], [0], [0], [1], [0, 0, 1, 1], [], []>} : vector<16x128xbf16>, vector<128x128xbf16>, vector<16x128xf32> -> vector<16x128xf32>
    %c0_90 = arith.constant 0 : index
    %c0_91 = arith.constant 0 : index
    %158 = vector.load %arg9[%c0_90, %c0_91] : memref<1x128xf32, #tpu.memory_space<vmem>>, vector<1x128xf32>
    %159 = vector.broadcast %158 : vector<1x128xf32> to vector<16x128xf32>
    %160 = arith.addf %157, %159 : vector<16x128xf32>
    %cst_92 = arith.constant 0.000000e+00 : f32
    %161 = vector.broadcast %cst_92 : f32 to vector<16x128xf32>
    %162 = arith.maximumf %160, %161 : vector<16x128xf32>
    %c0_93 = arith.constant 0 : index
    %c0_94 = arith.constant 0 : index
    %163 = vector.load %arg10[%c0_93, %c0_94] : memref<128x128xbf16, #tpu.memory_space<vmem>>, vector<128x128xbf16>
    %164 = arith.truncf %162 : vector<16x128xf32> to vector<16x128xbf16>
    %cst_95 = arith.constant dense<0.000000e+00> : vector<16x128xf32>
    %165 = tpu.matmul %164, %163, %cst_95 {dimension_numbers = #tpu.dot_dimension_numbers<[1], [0], [0], [1], [0, 0, 1, 1], [], []>} : vector<16x128xbf16>, vector<128x128xbf16>, vector<16x128xf32> -> vector<16x128xf32>
    %c0_96 = arith.constant 0 : index
    %c0_97 = arith.constant 0 : index
    %166 = vector.load %arg11[%c0_96, %c0_97] : memref<1x128xf32, #tpu.memory_space<vmem>>, vector<1x128xf32>
    %167 = vector.broadcast %166 : vector<1x128xf32> to vector<16x128xf32>
    %168 = arith.addf %165, %167 : vector<16x128xf32>
    %c0_98 = arith.constant 0 : index
    %c0_99 = arith.constant 0 : index
    %169 = vector.load %arg12[%c0_98, %c0_99] : memref<16x128xf32, #tpu.memory_space<vmem>>, vector<16x128xf32>
    tpu.vector_store %arg12[%c0_98, %c0_99], %168 {strides = array<i32>} : memref<16x128xf32, #tpu.memory_space<vmem>>, vector<16x128xf32>,
    return
  }
  func.func @transform_0(%arg0: i32) -> (i32, i32, i32) {
    %c0_i32 = arith.constant 0 : i32
    %c0_i32_0 = arith.constant 0 : i32
    %c0_i32_1 = arith.constant 0 : i32
    return %c0_i32, %arg0, %c0_i32_0 : i32, i32, i32
  }
  func.func @transform_1(%arg0: i32) -> (i32, i32, i32) {
    %c0_i32 = arith.constant 0 : i32
    %c0_i32_0 = arith.constant 0 : i32
    %c0_i32_1 = arith.constant 0 : i32
    %c0_i32_2 = arith.constant 0 : i32
    return %c0_i32, %c0_i32_0, %c0_i32_1 : i32, i32, i32
  }
  func.func @transform_2(%arg0: i32) -> (i32, i32) {
    %c0_i32 = arith.constant 0 : i32
    %c0_i32_0 = arith.constant 0 : i32
    %c0_i32_1 = arith.constant 0 : i32
    return %c0_i32, %c0_i32_0 : i32, i32
  }
  func.func @transform_3(%arg0: i32) -> (i32, i32, i32) {
    %c0_i32 = arith.constant 0 : i32
    %c0_i32_0 = arith.constant 0 : i32
    %c0_i32_1 = arith.constant 0 : i32
    %c0_i32_2 = arith.constant 0 : i32
    return %c0_i32, %c0_i32_0, %c0_i32_1 : i32, i32, i32
  }
  func.func @transform_4(%arg0: i32) -> (i32, i32) {
    %c0_i32 = arith.constant 0 : i32
    %c0_i32_0 = arith.constant 0 : i32
    %c0_i32_1 = arith.constant 0 : i32
    return %c0_i32, %c0_i32_0 : i32, i32
  }
  func.func @transform_5(%arg0: i32) -> (i32, i32, i32) {
    %c0_i32 = arith.constant 0 : i32
    %c0_i32_0 = arith.constant 0 : i32
    %c0_i32_1 = arith.constant 0 : i32
    %c0_i32_2 = arith.constant 0 : i32
    return %c0_i32, %c0_i32_0, %c0_i32_1 : i32, i32, i32
  }
  func.func @transform_6(%arg0: i32) -> (i32, i32) {
    %c0_i32 = arith.constant 0 : i32
    %c0_i32_0 = arith.constant 0 : i32
    %c0_i32_1 = arith.constant 0 : i32
    return %c0_i32, %c0_i32_0 : i32, i32
  }
  func.func @transform_7(%arg0: i32) -> (i32, i32) {
    %c0_i32 = arith.constant 0 : i32
    %c0_i32_0 = arith.constant 0 : i32
    %c0_i32_1 = arith.constant 0 : i32
    return %c0_i32, %c0_i32_0 : i32, i32
  }
  func.func @transform_8(%arg0: i32) -> (i32, i32) {
    %c0_i32 = arith.constant 0 : i32
    %c0_i32_0 = arith.constant 0 : i32
    %c0_i32_1 = arith.constant 0 : i32
    return %c0_i32, %c0_i32_0 : i32, i32
  }
  func.func @transform_9(%arg0: i32) -> (i32, i32) {
    %c0_i32 = arith.constant 0 : i32
    %c0_i32_0 = arith.constant 0 : i32
    %c0_i32_1 = arith.constant 0 : i32
    return %c0_i32, %c0_i32_0 : i32, i32
  }
  func.func @transform_10(%arg0: i32) -> (i32, i32) {
    %c0_i32 = arith.constant 0 : i32
    %c0_i32_0 = arith.constant 0 : i32
    %c0_i32_1 = arith.constant 0 : i32
    return %c0_i32, %c0_i32_0 : i32, i32
  }
  func.func @transform_11(%arg0: i32) -> (i32, i32) {
    %c0_i32 = arith.constant 0 : i32
    %c0_i32_0 = arith.constant 0 : i32
    return %arg0, %c0_i32 : i32, i32
  }
}

</mosaic_0001>

<llo_original>
// kernel: lenet5_forward.1
$region0: #{lenet5_forward.1}
  #allocation0 [shape = 'u32[]', space=smem, size = 0x4, offset = 0x4, fixed_abs, tag = 'smem constant byte address 0x4 - core index']
  #allocation1 [shape = 'u32[144,128]{1,0:T(1,128)}', space=vmem, size = 0x12000, scoped, tag = 'internal scratch']
  %s0 = inlined_call_operand.vmem [shape: f32[2,16,64], index: 0, kind: input, shape index: {}]
  %s1 = inlined_call_operand.vmem [shape: bf16[3,64,512], index: 1, kind: input, shape index: {}]
  %s2 = inlined_call_operand.vmem [shape: f32[1,128], index: 2, kind: input, shape index: {}]
  %s3 = inlined_call_operand.vmem [shape: bf16[6,128,512], index: 3, kind: input, shape index: {}]
  %s4 = inlined_call_operand.vmem [shape: f32[1,128], index: 4, kind: input, shape index: {}]
  %s5 = inlined_call_operand.vmem [shape: bf16[5,128,128], index: 5, kind: input, shape index: {}]
  %s6 = inlined_call_operand.vmem [shape: f32[1,128], index: 6, kind: input, shape index: {}]
  %s7 = inlined_call_operand.vmem [shape: bf16[128,128], index: 7, kind: input, shape index: {}]
  %s8 = inlined_call_operand.vmem [shape: f32[1,128], index: 8, kind: input, shape index: {}]
  %s9 = inlined_call_operand.vmem [shape: bf16[128,128], index: 9, kind: input, shape index: {}]
  %s10 = inlined_call_operand.vmem [shape: f32[1,128], index: 10, kind: input, shape index: {}]
  %s11 = inlined_call_operand.vmem [shape: f32[16,128], index: 11, kind: output, shape index: {}]
  %s12 = sld [smem:[#allocation0]]
  $region54: #{lenet5_forward.1} parent=0
    _
  %s14 = ssub.s32 1, %s12
  %s15 = scalar_select 0, %s14, %s12
  // Predicated region
  $region2: #{lenet5_forward.1} parent=0 // pred_check
    _
  $region3: #{lenet5_forward.1} parent=0 // pred_check_branch
    %17 = sbr.rel (0) target = $region5
  $region4: #{lenet5_forward.1} parent=0 // pred_region
    _
  $region5: #{lenet5_forward.1} parent=0 // pred_fallthru
    _
  // Predicated region
  $region6: #{lenet5_forward.1} parent=0 // pred_check
    _
  $region7: #{lenet5_forward.1} parent=0 // pred_check_branch
    %19 = sbr.rel (0) target = $region9
  $region8: #{lenet5_forward.1} parent=0 // pred_region
    _
  $region9: #{lenet5_forward.1} parent=0 // pred_fallthru
    _
  // Predicated region
  $region10: #{lenet5_forward.1} parent=0 // pred_check
    _
  $region11: #{lenet5_forward.1} parent=0 // pred_check_branch
    %21 = sbr.rel (0) target = $region13
  $region12: #{lenet5_forward.1} parent=0 // pred_region
    _
  $region13: #{lenet5_forward.1} parent=0 // pred_fallthru
    _
  // Predicated region
  $region14: #{lenet5_forward.1} parent=0 // pred_check
    _
  $region15: #{lenet5_forward.1} parent=0 // pred_check_branch
    %23 = sbr.rel (0) target = $region17
  $region16: #{lenet5_forward.1} parent=0 // pred_region
    _
  $region17: #{lenet5_forward.1} parent=0 // pred_fallthru
    _
  // Predicated region
  $region18: #{lenet5_forward.1} parent=0 // pred_check
    _
  $region19: #{lenet5_forward.1} parent=0 // pred_check_branch
    %25 = sbr.rel (0) target = $region21
  $region20: #{lenet5_forward.1} parent=0 // pred_region
    _
  $region21: #{lenet5_forward.1} parent=0 // pred_fallthru
    _
  // Predicated region
  $region22: #{lenet5_forward.1} parent=0 // pred_check
    _
  $region23: #{lenet5_forward.1} parent=0 // pred_check_branch
    %27 = sbr.rel (0) target = $region25
  $region24: #{lenet5_forward.1} parent=0 // pred_region
    _
  $region25: #{lenet5_forward.1} parent=0 // pred_fallthru
    _
  // Predicated region
  $region26: #{lenet5_forward.1} parent=0 // pred_check
    _
  $region27: #{lenet5_forward.1} parent=0 // pred_check_branch
    %29 = sbr.rel (0) target = $region29
  $region28: #{lenet5_forward.1} parent=0 // pred_region
    _
  $region29: #{lenet5_forward.1} parent=0 // pred_fallthru
    _
  // Predicated region
  $region30: #{lenet5_forward.1} parent=0 // pred_check
    _
  $region31: #{lenet5_forward.1} parent=0 // pred_check_branch
    %31 = sbr.rel (0) target = $region33
  $region32: #{lenet5_forward.1} parent=0 // pred_region
    _
  $region33: #{lenet5_forward.1} parent=0 // pred_fallthru
    _
  // Predicated region
  $region34: #{lenet5_forward.1} parent=0 // pred_check
    _
  $region35: #{lenet5_forward.1} parent=0 // pred_check_branch
    %33 = sbr.rel (0) target = $region37
  $region36: #{lenet5_forward.1} parent=0 // pred_region
    _
  $region37: #{lenet5_forward.1} parent=0 // pred_fallthru
    _
  // Predicated region
  $region38: #{lenet5_forward.1} parent=0 // pred_check
    _
  $region39: #{lenet5_forward.1} parent=0 // pred_check_branch
    %35 = sbr.rel (0) target = $region41
  $region40: #{lenet5_forward.1} parent=0 // pred_region
    _
  $region41: #{lenet5_forward.1} parent=0 // pred_fallthru
    _
  // Predicated region
  $region42: #{lenet5_forward.1} parent=0 // pred_check
    _
  $region43: #{lenet5_forward.1} parent=0 // pred_check_branch
    %37 = sbr.rel (0) target = $region45
  $region44: #{lenet5_forward.1} parent=0 // pred_region
    _
  $region45: #{lenet5_forward.1} parent=0 // pred_fallthru
    _
  %v39 = vld [vmem:[%s0] sm:$0xff]
  %v40 = vld [vmem:[%s0 + $0x8] sm:$0xff]
  %s41 = scalar_lea.vmem %s0, 16
  %v42 = vld [vmem:[%s41] sm:$0xff]
  %v43 = vld [vmem:[%s41 + $0x8] sm:$0xff]
  %vm46 = vcmask 1046528
  %v47 = vrot.slane %v39, 1
  %v48 = vrot.slane %v40, 1
  %v49 = vsel %vm46, %v47, %v48
  %v52 = vsel %vm46, %v48, 0.0
  %v55 = vrot.slane %v42, 1
  %v56 = vrot.slane %v43, 1
  %v57 = vsel %vm46, %v55, %v56
  %v60 = vsel %vm46, %v56, 0.0
  %v61 = vld [vmem:[%s1] sm:$0xff]
  %v62 = vld [vmem:[%s1 + $0x8] sm:$0xff]
  %v63 = vld [vmem:[%s1 + $0x10] sm:$0xff]
  %v64 = vld [vmem:[%s1 + $0x18] sm:$0xff]
  %v65 = vld [vmem:[%s1 + $0x20] sm:$0xff]
  %v66 = vld [vmem:[%s1 + $0x28] sm:$0xff]
  %v67 = vld [vmem:[%s1 + $0x30] sm:$0xff]
  %v68 = vld [vmem:[%s1 + $0x38] sm:$0xff]
  %v69 = vld [vmem:[%s1 + $0x40] sm:$0xff]
  %v70 = vld [vmem:[%s1 + $0x48] sm:$0xff]
  %v71 = vld [vmem:[%s1 + $0x50] sm:$0xff]
  %v72 = vld [vmem:[%s1 + $0x58] sm:$0xff]
  %v73 = vld [vmem:[%s1 + $0x60] sm:$0xff]
  %v74 = vld [vmem:[%s1 + $0x68] sm:$0xff]
  %v75 = vld [vmem:[%s1 + $0x70] sm:$0xff]
  %v76 = vld [vmem:[%s1 + $0x78] sm:$0xff]
  %v77 = vpack.c.bf16 %v40, %v39
  %s78 = scalar_lea.vmem %s1, 128
  %v79 = vld [vmem:[%s78] sm:$0xff]
  %v80 = vld [vmem:[%s78 + $0x8] sm:$0xff]
  %v81 = vld [vmem:[%s78 + $0x10] sm:$0xff]
  %v82 = vld [vmem:[%s78 + $0x18] sm:$0xff]
  %v83 = vld [vmem:[%s78 + $0x20] sm:$0xff]
  %v84 = vld [vmem:[%s78 + $0x28] sm:$0xff]
  %v85 = vld [vmem:[%s78 + $0x30] sm:$0xff]
  %v86 = vld [vmem:[%s78 + $0x38] sm:$0xff]
  %v87 = vld [vmem:[%s78 + $0x40] sm:$0xff]
  %v88 = vld [vmem:[%s78 + $0x48] sm:$0xff]
  %v89 = vld [vmem:[%s78 + $0x50] sm:$0xff]
  %v90 = vld [vmem:[%s78 + $0x58] sm:$0xff]
  %v91 = vld [vmem:[%s78 + $0x60] sm:$0xff]
  %v92 = vld [vmem:[%s78 + $0x68] sm:$0xff]
  %v93 = vld [vmem:[%s78 + $0x70] sm:$0xff]
  %v94 = vld [vmem:[%s78 + $0x78] sm:$0xff]
  %v95 = vpack.c.bf16 %v43, %v42
  %v112 = vunpack.c.l.b16 %v79
  %v113 = vunpack.c.h.b16 %v79
  %v114 = vunpack.c.l.b16 %v80
  %v115 = vunpack.c.h.b16 %v80
  %v116 = vunpack.c.l.b16 %v81
  %v117 = vunpack.c.h.b16 %v81
  %v118 = vunpack.c.l.b16 %v82
  %v119 = vunpack.c.h.b16 %v82
  %v120 = vunpack.c.l.b16 %v83
  %v121 = vunpack.c.h.b16 %v83
  %v122 = vunpack.c.l.b16 %v84
  %v123 = vunpack.c.h.b16 %v84
  %v124 = vunpack.c.l.b16 %v85
  %v125 = vunpack.c.h.b16 %v85
  %v126 = vunpack.c.l.b16 %v86
  %v127 = vunpack.c.h.b16 %v86
  %v128 = vunpack.c.l.b16 %v87
  %v129 = vunpack.c.h.b16 %v87
  %v130 = vunpack.c.l.b16 %v88
  %v131 = vunpack.c.h.b16 %v88
  %v132 = vunpack.c.l.b16 %v89
  %v133 = vunpack.c.h.b16 %v89
  %v134 = vunpack.c.l.b16 %v90
  %v135 = vunpack.c.h.b16 %v90
  %v136 = vunpack.c.l.b16 %v91
  %v137 = vunpack.c.h.b16 %v91
  %v138 = vunpack.c.l.b16 %v92
  %v139 = vunpack.c.h.b16 %v92
  %v140 = vunpack.c.l.b16 %v93
  %v141 = vunpack.c.h.b16 %v93
  %v142 = vunpack.c.l.b16 %v94
  %v143 = vunpack.c.h.b16 %v94
  %v144 = vpack.c.b16 %v116, %v112
  %v145 = vpack.c.b16 %v117, %v113
  %v146 = vpack.c.b16 %v118, %v114
  %v147 = vpack.c.b16 %v119, %v115
  %v148 = vpack.c.b16 %v124, %v120
  %v149 = vpack.c.b16 %v125, %v121
  %v150 = vpack.c.b16 %v126, %v122
  %v151 = vpack.c.b16 %v127, %v123
  %v152 = vpack.c.b16 %v132, %v128
  %v153 = vpack.c.b16 %v133, %v129
  %v154 = vpack.c.b16 %v134, %v130
  %v155 = vpack.c.b16 %v135, %v131
  %v156 = vpack.c.b16 %v140, %v136
  %v157 = vpack.c.b16 %v141, %v137
  %v158 = vpack.c.b16 %v142, %v138
  %v159 = vpack.c.b16 %v143, %v139
  %vm176 = vcmask 523264
  %v178 = vsel %vm176, %v95, 0
  %180 = vmatprep.subr.bf16.mxu0 0
  %181 = vmatpush1.bf16.msra.mxu0 0
  %182 = vmatprep.subr.bf16.mxu0 0
  %183 = vmatpush1.bf16.msra.mxu0 0
  %184 = vmatprep.subr.bf16.mxu0 0
  %185 = vmatpush1.bf16.msra.mxu0 0
  %186 = vmatprep.subr.bf16.mxu0 0
  %187 = vmatpush1.bf16.msra.mxu0 0
  %188 = vmatprep.subr.bf16.mxu0 %v157
  %189 = vmatpush1.bf16.msra.mxu0 %v156
  %190 = vmatprep.subr.bf16.mxu0 %v153
  %191 = vmatpush1.bf16.msra.mxu0 %v152
  %192 = vmatprep.subr.bf16.mxu0 %v149
  %193 = vmatpush1.bf16.msra.mxu0 %v148
  %194 = vmatprep.subr.bf16.mxu0 %v145
  %195 = vmatpush1.bf16.msra.mxu0 %v144
  %196 = vmatprep.subr.bf16.mxu0 0
  %197 = vmatpush2.bf16.msra.mxu0 0
  %198 = vmatprep.subr.bf16.mxu0 0
  %199 = vmatpush2.bf16.msra.mxu0 0
  %200 = vmatprep.subr.bf16.mxu0 0
  %201 = vmatpush2.bf16.msra.mxu0 0
  %202 = vmatprep.subr.bf16.mxu0 0
  %203 = vmatpush2.bf16.msra.mxu0 0
  %204 = vmatprep.subr.bf16.mxu0 0
  %205 = vmatpush2.bf16.msra.mxu0 0
  %206 = vmatprep.subr.bf16.mxu0 0
  %207 = vmatpush2.bf16.msra.mxu0 0
  %208 = vmatprep.subr.bf16.mxu0 0
  %209 = vmatpush2.bf16.msra.mxu0 0
  %210 = vmatprep.subr.bf16.mxu0 0
  %211 = vmatpush2.bf16.msra.mxu0 0
  %212 = vmatprep.mubr.bf16.mxu0 0
  %213 = vmatmul.mubr.bf16.gmra.mxu0 %v178
  %v214 = vpop.f32.mrf.mxu0
  %v215 = vadd.f32 0.0, %v214
  %v216 = vpop.f32.mrf.mxu0
  %v217 = vadd.f32 0.0, %v216
  %v218 = vpop.f32.mrf.mxu0
  %v219 = vadd.f32 0.0, %v218
  %v220 = vpop.f32.mrf.mxu0
  %v221 = vadd.f32 0.0, %v220
  %222 = vdwg.mxu0
  %223 = vmatprep.subr.bf16.mxu0 0
  %224 = vmatpush1.bf16.msra.mxu0 0
  %225 = vmatprep.subr.bf16.mxu0 0
  %226 = vmatpush1.bf16.msra.mxu0 0
  %227 = vmatprep.subr.bf16.mxu0 0
  %228 = vmatpush1.bf16.msra.mxu0 0
  %229 = vmatprep.subr.bf16.mxu0 0
  %230 = vmatpush1.bf16.msra.mxu0 0
  %231 = vmatprep.subr.bf16.mxu0 %v159
  %232 = vmatpush1.bf16.msra.mxu0 %v158
  %233 = vmatprep.subr.bf16.mxu0 %v155
  %234 = vmatpush1.bf16.msra.mxu0 %v154
  %235 = vmatprep.subr.bf16.mxu0 %v151
  %236 = vmatpush1.bf16.msra.mxu0 %v150
  %237 = vmatprep.subr.bf16.mxu0 %v147
  %238 = vmatpush1.bf16.msra.mxu0 %v146
  %239 = vmatprep.subr.bf16.mxu0 0
  %240 = vmatpush2.bf16.msra.mxu0 0
  %241 = vmatprep.subr.bf16.mxu0 0
  %242 = vmatpush2.bf16.msra.mxu0 0
  %243 = vmatprep.subr.bf16.mxu0 0
  %244 = vmatpush2.bf16.msra.mxu0 0
  %245 = vmatprep.subr.bf16.mxu0 0
  %246 = vmatpush2.bf16.msra.mxu0 0
  %247 = vmatprep.subr.bf16.mxu0 0
  %248 = vmatpush2.bf16.msra.mxu0 0
  %249 = vmatprep.subr.bf16.mxu0 0
  %250 = vmatpush2.bf16.msra.mxu0 0
  %251 = vmatprep.subr.bf16.mxu0 0
  %252 = vmatpush2.bf16.msra.mxu0 0
  %253 = vmatprep.subr.bf16.mxu0 0
  %254 = vmatpush2.bf16.msra.mxu0 0
  %255 = vmatprep.mubr.bf16.mxu0 0
  %256 = vmatmul.mubr.bf16.gmra.mxu0 %v178
  %v257 = vpop.f32.mrf.mxu0
  %v258 = vadd.f32 0.0, %v257
  %v259 = vpop.f32.mrf.mxu0
  %v260 = vadd.f32 0.0, %v259
  %v261 = vpop.f32.mrf.mxu0
  %v262 = vadd.f32 0.0, %v261
  %v263 = vpop.f32.mrf.mxu0
  %v264 = vadd.f32 0.0, %v263
  %265 = vdwg.mxu0
  %v282 = vunpack.c.l.b16 %v61
  %v283 = vunpack.c.h.b16 %v61
  %v284 = vunpack.c.l.b16 %v62
  %v285 = vunpack.c.h.b16 %v62
  %v286 = vunpack.c.l.b16 %v63
  %v287 = vunpack.c.h.b16 %v63
  %v288 = vunpack.c.l.b16 %v64
  %v289 = vunpack.c.h.b16 %v64
  %v290 = vunpack.c.l.b16 %v65
  %v291 = vunpack.c.h.b16 %v65
  %v292 = vunpack.c.l.b16 %v66
  %v293 = vunpack.c.h.b16 %v66
  %v294 = vunpack.c.l.b16 %v67
  %v295 = vunpack.c.h.b16 %v67
  %v296 = vunpack.c.l.b16 %v68
  %v297 = vunpack.c.h.b16 %v68
  %v298 = vunpack.c.l.b16 %v69
  %v299 = vunpack.c.h.b16 %v69
  %v300 = vunpack.c.l.b16 %v70
  %v301 = vunpack.c.h.b16 %v70
  %v302 = vunpack.c.l.b16 %v71
  %v303 = vunpack.c.h.b16 %v71
  %v304 = vunpack.c.l.b16 %v72
  %v305 = vunpack.c.h.b16 %v72
  %v306 = vunpack.c.l.b16 %v73
  %v307 = vunpack.c.h.b16 %v73
  %v308 = vunpack.c.l.b16 %v74
  %v309 = vunpack.c.h.b16 %v74
  %v310 = vunpack.c.l.b16 %v75
  %v311 = vunpack.c.h.b16 %v75
  %v312 = vunpack.c.l.b16 %v76
  %v313 = vunpack.c.h.b16 %v76
  %v314 = vpack.c.b16 %v286, %v282
  %v315 = vpack.c.b16 %v287, %v283
  %v316 = vpack.c.b16 %v288, %v284
  %v317 = vpack.c.b16 %v289, %v285
  %v318 = vpack.c.b16 %v294, %v290
  %v319 = vpack.c.b16 %v295, %v291
  %v320 = vpack.c.b16 %v296, %v292
  %v321 = vpack.c.b16 %v297, %v293
  %v322 = vpack.c.b16 %v302, %v298
  %v323 = vpack.c.b16 %v303, %v299
  %v324 = vpack.c.b16 %v304, %v300
  %v325 = vpack.c.b16 %v305, %v301
  %v326 = vpack.c.b16 %v310, %v306
  %v327 = vpack.c.b16 %v311, %v307
  %v328 = vpack.c.b16 %v312, %v308
  %v329 = vpack.c.b16 %v313, %v309
  %v347 = vsel %vm176, %v77, 0
  %349 = vmatprep.subr.bf16.mxu0 0
  %350 = vmatpush1.bf16.msra.mxu0 0
  %351 = vmatprep.subr.bf16.mxu0 0
  %352 = vmatpush1.bf16.msra.mxu0 0
  %353 = vmatprep.subr.bf16.mxu0 0
  %354 = vmatpush1.bf16.msra.mxu0 0
  %355 = vmatprep.subr.bf16.mxu0 0
  %356 = vmatpush1.bf16.msra.mxu0 0
  %357 = vmatprep.subr.bf16.mxu0 %v327
  %358 = vmatpush1.bf16.msra.mxu0 %v326
  %359 = vmatprep.subr.bf16.mxu0 %v323
  %360 = vmatpush1.bf16.msra.mxu0 %v322
  %361 = vmatprep.subr.bf16.mxu0 %v319
  %362 = vmatpush1.bf16.msra.mxu0 %v318
  %363 = vmatprep.subr.bf16.mxu0 %v315
  %364 = vmatpush1.bf16.msra.mxu0 %v314
  %365 = vmatprep.subr.bf16.mxu0 0
  %366 = vmatpush2.bf16.msra.mxu0 0
  %367 = vmatprep.subr.bf16.mxu0 0
  %368 = vmatpush2.bf16.msra.mxu0 0
  %369 = vmatprep.subr.bf16.mxu0 0
  %370 = vmatpush2.bf16.msra.mxu0 0
  %371 = vmatprep.subr.bf16.mxu0 0
  %372 = vmatpush2.bf16.msra.mxu0 0
  %373 = vmatprep.subr.bf16.mxu0 0
  %374 = vmatpush2.bf16.msra.mxu0 0
  %375 = vmatprep.subr.bf16.mxu0 0
  %376 = vmatpush2.bf16.msra.mxu0 0
  %377 = vmatprep.subr.bf16.mxu0 0
  %378 = vmatpush2.bf16.msra.mxu0 0
  %379 = vmatprep.subr.bf16.mxu0 0
  %380 = vmatpush2.bf16.msra.mxu0 0
  %381 = vmatprep.mubr.bf16.mxu0 0
  %382 = vmatmul.mubr.bf16.gmra.mxu0 %v347
  %v383 = vpop.f32.mrf.mxu0
  %v384 = vadd.f32 %v215, %v383
  %v385 = vpop.f32.mrf.mxu0
  %v386 = vadd.f32 %v217, %v385
  %v387 = vpop.f32.mrf.mxu0
  %v388 = vadd.f32 %v219, %v387
  %v389 = vpop.f32.mrf.mxu0
  %v390 = vadd.f32 %v221, %v389
  %391 = vdwg.mxu0
  %392 = vmatprep.subr.bf16.mxu0 0
  %393 = vmatpush1.bf16.msra.mxu0 0
  %394 = vmatprep.subr.bf16.mxu0 0
  %395 = vmatpush1.bf16.msra.mxu0 0
  %396 = vmatprep.subr.bf16.mxu0 0
  %397 = vmatpush1.bf16.msra.mxu0 0
  %398 = vmatprep.subr.bf16.mxu0 0
  %399 = vmatpush1.bf16.msra.mxu0 0
  %400 = vmatprep.subr.bf16.mxu0 %v329
  %401 = vmatpush1.bf16.msra.mxu0 %v328
  %402 = vmatprep.subr.bf16.mxu0 %v325
  %403 = vmatpush1.bf16.msra.mxu0 %v324
  %404 = vmatprep.subr.bf16.mxu0 %v321
  %405 = vmatpush1.bf16.msra.mxu0 %v320
  %406 = vmatprep.subr.bf16.mxu0 %v317
  %407 = vmatpush1.bf16.msra.mxu0 %v316
  %408 = vmatprep.subr.bf16.mxu0 0
  %409 = vmatpush2.bf16.msra.mxu0 0
  %410 = vmatprep.subr.bf16.mxu0 0
  %411 = vmatpush2.bf16.msra.mxu0 0
  %412 = vmatprep.subr.bf16.mxu0 0
  %413 = vmatpush2.bf16.msra.mxu0 0
  %414 = vmatprep.subr.bf16.mxu0 0
  %415 = vmatpush2.bf16.msra.mxu0 0
  %416 = vmatprep.subr.bf16.mxu0 0
  %417 = vmatpush2.bf16.msra.mxu0 0
  %418 = vmatprep.subr.bf16.mxu0 0
  %419 = vmatpush2.bf16.msra.mxu0 0
  %420 = vmatprep.subr.bf16.mxu0 0
  %421 = vmatpush2.bf16.msra.mxu0 0
  %422 = vmatprep.subr.bf16.mxu0 0
  %423 = vmatpush2.bf16.msra.mxu0 0
  %424 = vmatprep.mubr.bf16.mxu0 0
  %425 = vmatmul.mubr.bf16.gmra.mxu0 %v347
  %v426 = vpop.f32.mrf.mxu0
  %v427 = vadd.f32 %v258, %v426
  %v428 = vpop.f32.mrf.mxu0
  %v429 = vadd.f32 %v260, %v428
  %v430 = vpop.f32.mrf.mxu0
  %v431 = vadd.f32 %v262, %v430
  %v432 = vpop.f32.mrf.mxu0
  %v433 = vadd.f32 %v264, %v432
  %434 = vdwg.mxu0
  %s435 = scalar_lea.vmem %s1, 256
  %v436 = vld [vmem:[%s435] sm:$0xff]
  %v437 = vld [vmem:[%s435 + $0x8] sm:$0xff]
  %v438 = vld [vmem:[%s435 + $0x10] sm:$0xff]
  %v439 = vld [vmem:[%s435 + $0x18] sm:$0xff]
  %v440 = vld [vmem:[%s435 + $0x20] sm:$0xff]
  %v441 = vld [vmem:[%s435 + $0x28] sm:$0xff]
  %v442 = vld [vmem:[%s435 + $0x30] sm:$0xff]
  %v443 = vld [vmem:[%s435 + $0x38] sm:$0xff]
  %v444 = vld [vmem:[%s435 + $0x40] sm:$0xff]
  %v445 = vld [vmem:[%s435 + $0x48] sm:$0xff]
  %v446 = vld [vmem:[%s435 + $0x50] sm:$0xff]
  %v447 = vld [vmem:[%s435 + $0x58] sm:$0xff]
  %v448 = vld [vmem:[%s435 + $0x60] sm:$0xff]
  %v449 = vld [vmem:[%s435 + $0x68] sm:$0xff]
  %v450 = vld [vmem:[%s435 + $0x70] sm:$0xff]
  %v451 = vld [vmem:[%s435 + $0x78] sm:$0xff]
  %v452 = vpack.c.bf16 %v52, %v49
  %v469 = vunpack.c.l.b16 %v436
  %v470 = vunpack.c.h.b16 %v436
  %v471 = vunpack.c.l.b16 %v437
  %v472 = vunpack.c.h.b16 %v437
  %v473 = vunpack.c.l.b16 %v438
  %v474 = vunpack.c.h.b16 %v438
  %v475 = vunpack.c.l.b16 %v439
  %v476 = vunpack.c.h.b16 %v439
  %v477 = vunpack.c.l.b16 %v440
  %v478 = vunpack.c.h.b16 %v440
  %v479 = vunpack.c.l.b16 %v441
  %v480 = vunpack.c.h.b16 %v441
  %v481 = vunpack.c.l.b16 %v442
  %v482 = vunpack.c.h.b16 %v442
  %v483 = vunpack.c.l.b16 %v443
  %v484 = vunpack.c.h.b16 %v443
  %v485 = vunpack.c.l.b16 %v444
  %v486 = vunpack.c.h.b16 %v444
  %v487 = vunpack.c.l.b16 %v445
  %v488 = vunpack.c.h.b16 %v445
  %v489 = vunpack.c.l.b16 %v446
  %v490 = vunpack.c.h.b16 %v446
  %v491 = vunpack.c.l.b16 %v447
  %v492 = vunpack.c.h.b16 %v447
  %v493 = vunpack.c.l.b16 %v448
  %v494 = vunpack.c.h.b16 %v448
  %v495 = vunpack.c.l.b16 %v449
  %v496 = vunpack.c.h.b16 %v449
  %v497 = vunpack.c.l.b16 %v450
  %v498 = vunpack.c.h.b16 %v450
  %v499 = vunpack.c.l.b16 %v451
  %v500 = vunpack.c.h.b16 %v451
  %v501 = vpack.c.b16 %v473, %v469
  %v502 = vpack.c.b16 %v474, %v470
  %v503 = vpack.c.b16 %v475, %v471
  %v504 = vpack.c.b16 %v476, %v472
  %v505 = vpack.c.b16 %v481, %v477
  %v506 = vpack.c.b16 %v482, %v478
  %v507 = vpack.c.b16 %v483, %v479
  %v508 = vpack.c.b16 %v484, %v480
  %v509 = vpack.c.b16 %v489, %v485
  %v510 = vpack.c.b16 %v490, %v486
  %v511 = vpack.c.b16 %v491, %v487
  %v512 = vpack.c.b16 %v492, %v488
  %v513 = vpack.c.b16 %v497, %v493
  %v514 = vpack.c.b16 %v498, %v494
  %v515 = vpack.c.b16 %v499, %v495
  %v516 = vpack.c.b16 %v500, %v496
  %v534 = vsel %vm176, %v452, 0
  %536 = vmatprep.subr.bf16.mxu0 0
  %537 = vmatpush1.bf16.msra.mxu0 0
  %538 = vmatprep.subr.bf16.mxu0 0
  %539 = vmatpush1.bf16.msra.mxu0 0
  %540 = vmatprep.subr.bf16.mxu0 0
  %541 = vmatpush1.bf16.msra.mxu0 0
  %542 = vmatprep.subr.bf16.mxu0 0
  %543 = vmatpush1.bf16.msra.mxu0 0
  %544 = vmatprep.subr.bf16.mxu0 %v514
  %545 = vmatpush1.bf16.msra.mxu0 %v513
  %546 = vmatprep.subr.bf16.mxu0 %v510
  %547 = vmatpush1.bf16.msra.mxu0 %v509
  %548 = vmatprep.subr.bf16.mxu0 %v506
  %549 = vmatpush1.bf16.msra.mxu0 %v505
  %550 = vmatprep.subr.bf16.mxu0 %v502
  %551 = vmatpush1.bf16.msra.mxu0 %v501
  %552 = vmatprep.subr.bf16.mxu0 0
  %553 = vmatpush2.bf16.msra.mxu0 0
  %554 = vmatprep.subr.bf16.mxu0 0
  %555 = vmatpush2.bf16.msra.mxu0 0
  %556 = vmatprep.subr.bf16.mxu0 0
  %557 = vmatpush2.bf16.msra.mxu0 0
  %558 = vmatprep.subr.bf16.mxu0 0
  %559 = vmatpush2.bf16.msra.mxu0 0
  %560 = vmatprep.subr.bf16.mxu0 0
  %561 = vmatpush2.bf16.msra.mxu0 0
  %562 = vmatprep.subr.bf16.mxu0 0
  %563 = vmatpush2.bf16.msra.mxu0 0
  %564 = vmatprep.subr.bf16.mxu0 0
  %565 = vmatpush2.bf16.msra.mxu0 0
  %566 = vmatprep.subr.bf16.mxu0 0
  %567 = vmatpush2.bf16.msra.mxu0 0
  %568 = vmatprep.mubr.bf16.mxu0 0
  %569 = vmatmul.mubr.bf16.gmra.mxu0 %v534
  %v570 = vpop.f32.mrf.mxu0
  %v571 = vadd.f32 0.0, %v570
  %v572 = vpop.f32.mrf.mxu0
  %v573 = vadd.f32 0.0, %v572
  %v574 = vpop.f32.mrf.mxu0
  %v575 = vadd.f32 0.0, %v574
  %v576 = vpop.f32.mrf.mxu0
  %v577 = vadd.f32 0.0, %v576
  %578 = vdwg.mxu0
  %579 = vmatprep.subr.bf16.mxu0 0
  %580 = vmatpush1.bf16.msra.mxu0 0
  %581 = vmatprep.subr.bf16.mxu0 0
  %582 = vmatpush1.bf16.msra.mxu0 0
  %583 = vmatprep.subr.bf16.mxu0 0
  %584 = vmatpush1.bf16.msra.mxu0 0
  %585 = vmatprep.subr.bf16.mxu0 0
  %586 = vmatpush1.bf16.msra.mxu0 0
  %587 = vmatprep.subr.bf16.mxu0 %v516
  %588 = vmatpush1.bf16.msra.mxu0 %v515
  %589 = vmatprep.subr.bf16.mxu0 %v512
  %590 = vmatpush1.bf16.msra.mxu0 %v511
  %591 = vmatprep.subr.bf16.mxu0 %v508
  %592 = vmatpush1.bf16.msra.mxu0 %v507
  %593 = vmatprep.subr.bf16.mxu0 %v504
  %594 = vmatpush1.bf16.msra.mxu0 %v503
  %595 = vmatprep.subr.bf16.mxu0 0
  %596 = vmatpush2.bf16.msra.mxu0 0
  %597 = vmatprep.subr.bf16.mxu0 0
  %598 = vmatpush2.bf16.msra.mxu0 0
  %599 = vmatprep.subr.bf16.mxu0 0
  %600 = vmatpush2.bf16.msra.mxu0 0
  %601 = vmatprep.subr.bf16.mxu0 0
  %602 = vmatpush2.bf16.msra.mxu0 0
  %603 = vmatprep.subr.bf16.mxu0 0
  %604 = vmatpush2.bf16.msra.mxu0 0
  %605 = vmatprep.subr.bf16.mxu0 0
  %606 = vmatpush2.bf16.msra.mxu0 0
  %607 = vmatprep.subr.bf16.mxu0 0
  %608 = vmatpush2.bf16.msra.mxu0 0
  %609 = vmatprep.subr.bf16.mxu0 0
  %610 = vmatpush2.bf16.msra.mxu0 0
  %611 = vmatprep.mubr.bf16.mxu0 0
  %612 = vmatmul.mubr.bf16.gmra.mxu0 %v534
  %v613 = vpop.f32.mrf.mxu0
  %v614 = vadd.f32 0.0, %v613
  %v615 = vpop.f32.mrf.mxu0
  %v616 = vadd.f32 0.0, %v615
  %v617 = vpop.f32.mrf.mxu0
  %v618 = vadd.f32 0.0, %v617
  %v619 = vpop.f32.mrf.mxu0
  %v620 = vadd.f32 0.0, %v619
  %621 = vdwg.mxu0
  %v622 = vadd.f32 %v384, %v571
  %v623 = vadd.f32 %v386, %v573
  %v624 = vadd.f32 %v427, %v614
  %v625 = vadd.f32 %v429, %v616
  %v626 = vadd.f32 %v388, %v575
  %v627 = vadd.f32 %v390, %v577
  %v628 = vadd.f32 %v431, %v618
  %v629 = vadd.f32 %v433, %v620
  %630 = vmatprep.subr.bf16.mxu0 0
  %631 = vmatpush1.bf16.msra.mxu0 0
  %632 = vmatprep.subr.bf16.mxu0 0
  %633 = vmatpush1.bf16.msra.mxu0 0
  %634 = vmatprep.subr.bf16.mxu0 0
  %635 = vmatpush1.bf16.msra.mxu0 0
  %636 = vmatprep.subr.bf16.mxu0 0
  %637 = vmatpush1.bf16.msra.mxu0 0
  %638 = vmatprep.subr.bf16.mxu0 %v157
  %639 = vmatpush1.bf16.msra.mxu0 %v156
  %640 = vmatprep.subr.bf16.mxu0 %v153
  %641 = vmatpush1.bf16.msra.mxu0 %v152
  %642 = vmatprep.subr.bf16.mxu0 %v149
  %643 = vmatpush1.bf16.msra.mxu0 %v148
  %644 = vmatprep.subr.bf16.mxu0 %v145
  %645 = vmatpush1.bf16.msra.mxu0 %v144
  %646 = vmatprep.subr.bf16.mxu0 0
  %647 = vmatpush2.bf16.msra.mxu0 0
  %648 = vmatprep.subr.bf16.mxu0 0
  %649 = vmatpush2.bf16.msra.mxu0 0
  %650 = vmatprep.subr.bf16.mxu0 0
  %651 = vmatpush2.bf16.msra.mxu0 0
  %652 = vmatprep.subr.bf16.mxu0 0
  %653 = vmatpush2.bf16.msra.mxu0 0
  %654 = vmatprep.subr.bf16.mxu0 0
  %655 = vmatpush2.bf16.msra.mxu0 0
  %656 = vmatprep.subr.bf16.mxu0 0
  %657 = vmatpush2.bf16.msra.mxu0 0
  %658 = vmatprep.subr.bf16.mxu0 0
  %659 = vmatpush2.bf16.msra.mxu0 0
  %660 = vmatprep.subr.bf16.mxu0 0
  %661 = vmatpush2.bf16.msra.mxu0 0
  %662 = vmatprep.mubr.bf16.mxu0 0
  %663 = vmatmul.mubr.bf16.gmra.mxu0 %v534
  %v664 = vpop.f32.mrf.mxu0
  %v665 = vadd.f32 0.0, %v664
  %v666 = vpop.f32.mrf.mxu0
  %v667 = vadd.f32 0.0, %v666
  %v668 = vpop.f32.mrf.mxu0
  %v669 = vadd.f32 0.0, %v668
  %v670 = vpop.f32.mrf.mxu0
  %v671 = vadd.f32 0.0, %v670
  %672 = vdwg.mxu0
  %673 = vmatprep.subr.bf16.mxu0 0
  %674 = vmatpush1.bf16.msra.mxu0 0
  %675 = vmatprep.subr.bf16.mxu0 0
  %676 = vmatpush1.bf16.msra.mxu0 0
  %677 = vmatprep.subr.bf16.mxu0 0
  %678 = vmatpush1.bf16.msra.mxu0 0
  %679 = vmatprep.subr.bf16.mxu0 0
  %680 = vmatpush1.bf16.msra.mxu0 0
  %681 = vmatprep.subr.bf16.mxu0 %v159
  %682 = vmatpush1.bf16.msra.mxu0 %v158
  %683 = vmatprep.subr.bf16.mxu0 %v155
  %684 = vmatpush1.bf16.msra.mxu0 %v154
  %685 = vmatprep.subr.bf16.mxu0 %v151
  %686 = vmatpush1.bf16.msra.mxu0 %v150
  %687 = vmatprep.subr.bf16.mxu0 %v147
  %688 = vmatpush1.bf16.msra.mxu0 %v146
  %689 = vmatprep.subr.bf16.mxu0 0
  %690 = vmatpush2.bf16.msra.mxu0 0
  %691 = vmatprep.subr.bf16.mxu0 0
  %692 = vmatpush2.bf16.msra.mxu0 0
  %693 = vmatprep.subr.bf16.mxu0 0
  %694 = vmatpush2.bf16.msra.mxu0 0
  %695 = vmatprep.subr.bf16.mxu0 0
  %696 = vmatpush2.bf16.msra.mxu0 0
  %697 = vmatprep.subr.bf16.mxu0 0
  %698 = vmatpush2.bf16.msra.mxu0 0
  %699 = vmatprep.subr.bf16.mxu0 0
  %700 = vmatpush2.bf16.msra.mxu0 0
  %701 = vmatprep.subr.bf16.mxu0 0
  %702 = vmatpush2.bf16.msra.mxu0 0
  %703 = vmatprep.subr.bf16.mxu0 0
  %704 = vmatpush2.bf16.msra.mxu0 0
  %705 = vmatprep.mubr.bf16.mxu0 0
  %706 = vmatmul.mubr.bf16.gmra.mxu0 %v534
  %v707 = vpop.f32.mrf.mxu0
  %v708 = vadd.f32 0.0, %v707
  %v709 = vpop.f32.mrf.mxu0
  %v710 = vadd.f32 0.0, %v709
  %v711 = vpop.f32.mrf.mxu0
  %v712 = vadd.f32 0.0, %v711
  %v713 = vpop.f32.mrf.mxu0
  %v714 = vadd.f32 0.0, %v713
  %715 = vdwg.mxu0
  %716 = vmatprep.subr.bf16.mxu0 0
  %717 = vmatpush1.bf16.msra.mxu0 0
  %718 = vmatprep.subr.bf16.mxu0 0
  %719 = vmatpush1.bf16.msra.mxu0 0
  %720 = vmatprep.subr.bf16.mxu0 0
  %721 = vmatpush1.bf16.msra.mxu0 0
  %722 = vmatprep.subr.bf16.mxu0 0
  %723 = vmatpush1.bf16.msra.mxu0 0
  %724 = vmatprep.subr.bf16.mxu0 %v327
  %725 = vmatpush1.bf16.msra.mxu0 %v326
  %726 = vmatprep.subr.bf16.mxu0 %v323
  %727 = vmatpush1.bf16.msra.mxu0 %v322
  %728 = vmatprep.subr.bf16.mxu0 %v319
  %729 = vmatpush1.bf16.msra.mxu0 %v318
  %730 = vmatprep.subr.bf16.mxu0 %v315
  %731 = vmatpush1.bf16.msra.mxu0 %v314
  %732 = vmatprep.subr.bf16.mxu0 0
  %733 = vmatpush2.bf16.msra.mxu0 0
  %734 = vmatprep.subr.bf16.mxu0 0
  %735 = vmatpush2.bf16.msra.mxu0 0
  %736 = vmatprep.subr.bf16.mxu0 0
  %737 = vmatpush2.bf16.msra.mxu0 0
  %738 = vmatprep.subr.bf16.mxu0 0
  %739 = vmatpush2.bf16.msra.mxu0 0
  %740 = vmatprep.subr.bf16.mxu0 0
  %741 = vmatpush2.bf16.msra.mxu0 0
  %742 = vmatprep.subr.bf16.mxu0 0
  %743 = vmatpush2.bf16.msra.mxu0 0
  %744 = vmatprep.subr.bf16.mxu0 0
  %745 = vmatpush2.bf16.msra.mxu0 0
  %746 = vmatprep.subr.bf16.mxu0 0
  %747 = vmatpush2.bf16.msra.mxu0 0
  %748 = vmatprep.mubr.bf16.mxu0 0
  %749 = vmatmul.mubr.bf16.gmra.mxu0 %v178
  %v750 = vpop.f32.mrf.mxu0
  %v751 = vadd.f32 %v665, %v750
  %v752 = vpop.f32.mrf.mxu0
  %v753 = vadd.f32 %v667, %v752
  %v754 = vpop.f32.mrf.mxu0
  %v755 = vadd.f32 %v669, %v754
  %v756 = vpop.f32.mrf.mxu0
  %v757 = vadd.f32 %v671, %v756
  %758 = vdwg.mxu0
  %759 = vmatprep.subr.bf16.mxu0 0
  %760 = vmatpush1.bf16.msra.mxu0 0
  %761 = vmatprep.subr.bf16.mxu0 0
  %762 = vmatpush1.bf16.msra.mxu0 0
  %763 = vmatprep.subr.bf16.mxu0 0
  %764 = vmatpush1.bf16.msra.mxu0 0
  %765 = vmatprep.subr.bf16.mxu0 0
  %766 = vmatpush1.bf16.msra.mxu0 0
  %767 = vmatprep.subr.bf16.mxu0 %v329
  %768 = vmatpush1.bf16.msra.mxu0 %v328
  %769 = vmatprep.subr.bf16.mxu0 %v325
  %770 = vmatpush1.bf16.msra.mxu0 %v324
  %771 = vmatprep.subr.bf16.mxu0 %v321
  %772 = vmatpush1.bf16.msra.mxu0 %v320
  %773 = vmatprep.subr.bf16.mxu0 %v317
  %774 = vmatpush1.bf16.msra.mxu0 %v316
  %775 = vmatprep.subr.bf16.mxu0 0
  %776 = vmatpush2.bf16.msra.mxu0 0
  %777 = vmatprep.subr.bf16.mxu0 0
  %778 = vmatpush2.bf16.msra.mxu0 0
  %779 = vmatprep.subr.bf16.mxu0 0
  %780 = vmatpush2.bf16.msra.mxu0 0
  %781 = vmatprep.subr.bf16.mxu0 0
  %782 = vmatpush2.bf16.msra.mxu0 0
  %783 = vmatprep.subr.bf16.mxu0 0
  %784 = vmatpush2.bf16.msra.mxu0 0
  %785 = vmatprep.subr.bf16.mxu0 0
  %786 = vmatpush2.bf16.msra.mxu0 0
  %787 = vmatprep.subr.bf16.mxu0 0
  %788 = vmatpush2.bf16.msra.mxu0 0
  %789 = vmatprep.subr.bf16.mxu0 0
  %790 = vmatpush2.bf16.msra.mxu0 0
  %791 = vmatprep.mubr.bf16.mxu0 0
  %792 = vmatmul.mubr.bf16.gmra.mxu0 %v178
  %v793 = vpop.f32.mrf.mxu0
  %v794 = vadd.f32 %v708, %v793
  %v795 = vpop.f32.mrf.mxu0
  %v796 = vadd.f32 %v710, %v795
  %v797 = vpop.f32.mrf.mxu0
  %v798 = vadd.f32 %v712, %v797
  %v799 = vpop.f32.mrf.mxu0
  %v800 = vadd.f32 %v714, %v799
  %801 = vdwg.mxu0
  %v802 = vpack.c.bf16 %v60, %v57
  %v804 = vsel %vm176, %v802, 0
  %806 = vmatprep.subr.bf16.mxu0 0
  %807 = vmatpush1.bf16.msra.mxu0 0
  %808 = vmatprep.subr.bf16.mxu0 0
  %809 = vmatpush1.bf16.msra.mxu0 0
  %810 = vmatprep.subr.bf16.mxu0 0
  %811 = vmatpush1.bf16.msra.mxu0 0
  %812 = vmatprep.subr.bf16.mxu0 0
  %813 = vmatpush1.bf16.msra.mxu0 0
  %814 = vmatprep.subr.bf16.mxu0 %v514
  %815 = vmatpush1.bf16.msra.mxu0 %v513
  %816 = vmatprep.subr.bf16.mxu0 %v510
  %817 = vmatpush1.bf16.msra.mxu0 %v509
  %818 = vmatprep.subr.bf16.mxu0 %v506
  %819 = vmatpush1.bf16.msra.mxu0 %v505
  %820 = vmatprep.subr.bf16.mxu0 %v502
  %821 = vmatpush1.bf16.msra.mxu0 %v501
  %822 = vmatprep.subr.bf16.mxu0 0
  %823 = vmatpush2.bf16.msra.mxu0 0
  %824 = vmatprep.subr.bf16.mxu0 0
  %825 = vmatpush2.bf16.msra.mxu0 0
  %826 = vmatprep.subr.bf16.mxu0 0
  %827 = vmatpush2.bf16.msra.mxu0 0
  %828 = vmatprep.subr.bf16.mxu0 0
  %829 = vmatpush2.bf16.msra.mxu0 0
  %830 = vmatprep.subr.bf16.mxu0 0
  %831 = vmatpush2.bf16.msra.mxu0 0
  %832 = vmatprep.subr.bf16.mxu0 0
  %833 = vmatpush2.bf16.msra.mxu0 0
  %834 = vmatprep.subr.bf16.mxu0 0
  %835 = vmatpush2.bf16.msra.mxu0 0
  %836 = vmatprep.subr.bf16.mxu0 0
  %837 = vmatpush2.bf16.msra.mxu0 0
  %838 = vmatprep.mubr.bf16.mxu0 0
  %839 = vmatmul.mubr.bf16.gmra.mxu0 %v804
  %v840 = vpop.f32.mrf.mxu0
  %v841 = vadd.f32 0.0, %v840
  %v842 = vpop.f32.mrf.mxu0
  %v843 = vadd.f32 0.0, %v842
  %v844 = vpop.f32.mrf.mxu0
  %v845 = vadd.f32 0.0, %v844
  %v846 = vpop.f32.mrf.mxu0
  %v847 = vadd.f32 0.0, %v846
  %848 = vdwg.mxu0
  %849 = vmatprep.subr.bf16.mxu0 0
  %850 = vmatpush1.bf16.msra.mxu0 0
  %851 = vmatprep.subr.bf16.mxu0 0
  %852 = vmatpush1.bf16.msra.mxu0 0
  %853 = vmatprep.subr.bf16.mxu0 0
  %854 = vmatpush1.bf16.msra.mxu0 0
  %855 = vmatprep.subr.bf16.mxu0 0
  %856 = vmatpush1.bf16.msra.mxu0 0
  %857 = vmatprep.subr.bf16.mxu0 %v516
  %858 = vmatpush1.bf16.msra.mxu0 %v515
  %859 = vmatprep.subr.bf16.mxu0 %v512
  %860 = vmatpush1.bf16.msra.mxu0 %v511
  %861 = vmatprep.subr.bf16.mxu0 %v508
  %862 = vmatpush1.bf16.msra.mxu0 %v507
  %863 = vmatprep.subr.bf16.mxu0 %v504
  %864 = vmatpush1.bf16.msra.mxu0 %v503
  %865 = vmatprep.subr.bf16.mxu0 0
  %866 = vmatpush2.bf16.msra.mxu0 0
  %867 = vmatprep.subr.bf16.mxu0 0
  %868 = vmatpush2.bf16.msra.mxu0 0
  %869 = vmatprep.subr.bf16.mxu0 0
  %870 = vmatpush2.bf16.msra.mxu0 0
  %871 = vmatprep.subr.bf16.mxu0 0
  %872 = vmatpush2.bf16.msra.mxu0 0
  %873 = vmatprep.subr.bf16.mxu0 0
  %874 = vmatpush2.bf16.msra.mxu0 0
  %875 = vmatprep.subr.bf16.mxu0 0
  %876 = vmatpush2.bf16.msra.mxu0 0
  %877 = vmatprep.subr.bf16.mxu0 0
  %878 = vmatpush2.bf16.msra.mxu0 0
  %879 = vmatprep.subr.bf16.mxu0 0
  %880 = vmatpush2.bf16.msra.mxu0 0
  %881 = vmatprep.mubr.bf16.mxu0 0
  %882 = vmatmul.mubr.bf16.gmra.mxu0 %v804
  %v883 = vpop.f32.mrf.mxu0
  %v884 = vadd.f32 0.0, %v883
  %v885 = vpop.f32.mrf.mxu0
  %v886 = vadd.f32 0.0, %v885
  %v887 = vpop.f32.mrf.mxu0
  %v888 = vadd.f32 0.0, %v887
  %v889 = vpop.f32.mrf.mxu0
  %v890 = vadd.f32 0.0, %v889
  %891 = vdwg.mxu0
  %v892 = vadd.f32 %v751, %v841
  %v893 = vadd.f32 %v753, %v843
  %v894 = vadd.f32 %v794, %v884
  %v895 = vadd.f32 %v796, %v886
  %v896 = vadd.f32 %v755, %v845
  %v897 = vadd.f32 %v757, %v847
  %v898 = vadd.f32 %v798, %v888
  %v899 = vadd.f32 %v800, %v890
  %v900 = vld [vmem:[%s2] sm:$0x1]
  %v901 = vmax.f32 %v622, %v623
  %v902 = vmax.f32 %v626, %v627
  %v903 = vmax.f32 %v624, %v625
  %v904 = vmax.f32 %v628, %v629
  %v905 = vmax.f32 %v901, %v903
  %v906 = vmax.f32 %v902, %v904
  %v908 = vlaneseq
  %v909 = vshrl.u32 %v908, 7
  %v910 = vsub.s32 0, %v909
  %v911 = vrot.slane %v900, %v910
  %v913 = vadd.f32 %v905, %v911
  %v914 = vadd.f32 %v906, %v911
  %v915 = vmax.f32 %v913, 0.0
  %v916 = vmax.f32 %v914, 0.0
  %v917 = vmax.f32 %v892, %v893
  %v918 = vmax.f32 %v896, %v897
  %v919 = vmax.f32 %v894, %v895
  %v920 = vmax.f32 %v898, %v899
  %v921 = vmax.f32 %v917, %v919
  %v922 = vmax.f32 %v918, %v920
  %v923 = vadd.f32 %v921, %v911
  %v924 = vadd.f32 %v922, %v911
  %v925 = vmax.f32 %v923, 0.0
  %v926 = vmax.f32 %v924, 0.0
  %v927 = vld [vmem:[%s3] sm:$0xff]
  %v928 = vld [vmem:[%s3 + $0x8] sm:$0xff]
  %v929 = vld [vmem:[%s3 + $0x10] sm:$0xff]
  %v930 = vld [vmem:[%s3 + $0x18] sm:$0xff]
  %v931 = vld [vmem:[%s3 + $0x20] sm:$0xff]
  %v932 = vld [vmem:[%s3 + $0x28] sm:$0xff]
  %v933 = vld [vmem:[%s3 + $0x30] sm:$0xff]
  %v934 = vld [vmem:[%s3 + $0x38] sm:$0xff]
  %v935 = vld [vmem:[%s3 + $0x40] sm:$0xff]
  %v936 = vld [vmem:[%s3 + $0x48] sm:$0xff]
  %v937 = vld [vmem:[%s3 + $0x50] sm:$0xff]
  %v938 = vld [vmem:[%s3 + $0x58] sm:$0xff]
  %v939 = vld [vmem:[%s3 + $0x60] sm:$0xff]
  %v940 = vld [vmem:[%s3 + $0x68] sm:$0xff]
  %v941 = vld [vmem:[%s3 + $0x70] sm:$0xff]
  %v942 = vld [vmem:[%s3 + $0x78] sm:$0xff]
  %v943 = vld [vmem:[%s3 + $0x80] sm:$0xff]
  %v944 = vld [vmem:[%s3 + $0x88] sm:$0xff]
  %v945 = vld [vmem:[%s3 + $0x90] sm:$0xff]
  %v946 = vld [vmem:[%s3 + $0x98] sm:$0xff]
  %v947 = vld [vmem:[%s3 + $0xa0] sm:$0xff]
  %v948 = vld [vmem:[%s3 + $0xa8] sm:$0xff]
  %v949 = vld [vmem:[%s3 + $0xb0] sm:$0xff]
  %v950 = vld [vmem:[%s3 + $0xb8] sm:$0xff]
  %v951 = vld [vmem:[%s3 + $0xc0] sm:$0xff]
  %v952 = vld [vmem:[%s3 + $0xc8] sm:$0xff]
  %v953 = vld [vmem:[%s3 + $0xd0] sm:$0xff]
  %v954 = vld [vmem:[%s3 + $0xd8] sm:$0xff]
  %v955 = vld [vmem:[%s3 + $0xe0] sm:$0xff]
  %v956 = vld [vmem:[%s3 + $0xe8] sm:$0xff]
  %v957 = vld [vmem:[%s3 + $0xf0] sm:$0xff]
  %v958 = vld [vmem:[%s3 + $0xf8] sm:$0xff]
  %v959 = vpack.c.bf16 %v916, %v915
  %s960 = scalar_lea.vmem %s3, 768
  %v961 = vld [vmem:[%s960] sm:$0xff]
  %v962 = vld [vmem:[%s960 + $0x8] sm:$0xff]
  %v963 = vld [vmem:[%s960 + $0x10] sm:$0xff]
  %v964 = vld [vmem:[%s960 + $0x18] sm:$0xff]
  %v965 = vld [vmem:[%s960 + $0x20] sm:$0xff]
  %v966 = vld [vmem:[%s960 + $0x28] sm:$0xff]
  %v967 = vld [vmem:[%s960 + $0x30] sm:$0xff]
  %v968 = vld [vmem:[%s960 + $0x38] sm:$0xff]
  %v969 = vld [vmem:[%s960 + $0x40] sm:$0xff]
  %v970 = vld [vmem:[%s960 + $0x48] sm:$0xff]
  %v971 = vld [vmem:[%s960 + $0x50] sm:$0xff]
  %v972 = vld [vmem:[%s960 + $0x58] sm:$0xff]
  %v973 = vld [vmem:[%s960 + $0x60] sm:$0xff]
  %v974 = vld [vmem:[%s960 + $0x68] sm:$0xff]
  %v975 = vld [vmem:[%s960 + $0x70] sm:$0xff]
  %v976 = vld [vmem:[%s960 + $0x78] sm:$0xff]
  %v977 = vld [vmem:[%s960 + $0x80] sm:$0xff]
  %v978 = vld [vmem:[%s960 + $0x88] sm:$0xff]
  %v979 = vld [vmem:[%s960 + $0x90] sm:$0xff]
  %v980 = vld [vmem:[%s960 + $0x98] sm:$0xff]
  %v981 = vld [vmem:[%s960 + $0xa0] sm:$0xff]
  %v982 = vld [vmem:[%s960 + $0xa8] sm:$0xff]
  %v983 = vld [vmem:[%s960 + $0xb0] sm:$0xff]
  %v984 = vld [vmem:[%s960 + $0xb8] sm:$0xff]
  %v985 = vld [vmem:[%s960 + $0xc0] sm:$0xff]
  %v986 = vld [vmem:[%s960 + $0xc8] sm:$0xff]
  %v987 = vld [vmem:[%s960 + $0xd0] sm:$0xff]
  %v988 = vld [vmem:[%s960 + $0xd8] sm:$0xff]
  %v989 = vld [vmem:[%s960 + $0xe0] sm:$0xff]
  %v990 = vld [vmem:[%s960 + $0xe8] sm:$0xff]
  %v991 = vld [vmem:[%s960 + $0xf0] sm:$0xff]
  %v992 = vld [vmem:[%s960 + $0xf8] sm:$0xff]
  %v993 = vpack.c.bf16 %v926, %v925
  %v1026 = vunpack.c.l.b16 %v961
  %v1027 = vunpack.c.h.b16 %v961
  %v1028 = vunpack.c.l.b16 %v962
  %v1029 = vunpack.c.h.b16 %v962
  %v1030 = vunpack.c.l.b16 %v963
  %v1031 = vunpack.c.h.b16 %v963
  %v1032 = vunpack.c.l.b16 %v964
  %v1033 = vunpack.c.h.b16 %v964
  %v1034 = vunpack.c.l.b16 %v965
  %v1035 = vunpack.c.h.b16 %v965
  %v1036 = vunpack.c.l.b16 %v966
  %v1037 = vunpack.c.h.b16 %v966
  %v1038 = vunpack.c.l.b16 %v967
  %v1039 = vunpack.c.h.b16 %v967
  %v1040 = vunpack.c.l.b16 %v968
  %v1041 = vunpack.c.h.b16 %v968
  %v1042 = vunpack.c.l.b16 %v969
  %v1043 = vunpack.c.h.b16 %v969
  %v1044 = vunpack.c.l.b16 %v970
  %v1045 = vunpack.c.h.b16 %v970
  %v1046 = vunpack.c.l.b16 %v971
  %v1047 = vunpack.c.h.b16 %v971
  %v1048 = vunpack.c.l.b16 %v972
  %v1049 = vunpack.c.h.b16 %v972
  %v1050 = vunpack.c.l.b16 %v973
  %v1051 = vunpack.c.h.b16 %v973
  %v1052 = vunpack.c.l.b16 %v974
  %v1053 = vunpack.c.h.b16 %v974
  %v1054 = vunpack.c.l.b16 %v975
  %v1055 = vunpack.c.h.b16 %v975
  %v1056 = vunpack.c.l.b16 %v976
  %v1057 = vunpack.c.h.b16 %v976
  %v1058 = vunpack.c.l.b16 %v977
  %v1059 = vunpack.c.h.b16 %v977
  %v1060 = vunpack.c.l.b16 %v978
  %v1061 = vunpack.c.h.b16 %v978
  %v1062 = vunpack.c.l.b16 %v979
  %v1063 = vunpack.c.h.b16 %v979
  %v1064 = vunpack.c.l.b16 %v980
  %v1065 = vunpack.c.h.b16 %v980
  %v1066 = vunpack.c.l.b16 %v981
  %v1067 = vunpack.c.h.b16 %v981
  %v1068 = vunpack.c.l.b16 %v982
  %v1069 = vunpack.c.h.b16 %v982
  %v1070 = vunpack.c.l.b16 %v983
  %v1071 = vunpack.c.h.b16 %v983
  %v1072 = vunpack.c.l.b16 %v984
  %v1073 = vunpack.c.h.b16 %v984
  %v1074 = vunpack.c.l.b16 %v985
  %v1075 = vunpack.c.h.b16 %v985
  %v1076 = vunpack.c.l.b16 %v986
  %v1077 = vunpack.c.h.b16 %v986
  %v1078 = vunpack.c.l.b16 %v987
  %v1079 = vunpack.c.h.b16 %v987
  %v1080 = vunpack.c.l.b16 %v988
  %v1081 = vunpack.c.h.b16 %v988
  %v1082 = vunpack.c.l.b16 %v989
  %v1083 = vunpack.c.h.b16 %v989
  %v1084 = vunpack.c.l.b16 %v990
  %v1085 = vunpack.c.h.b16 %v990
  %v1086 = vunpack.c.l.b16 %v991
  %v1087 = vunpack.c.h.b16 %v991
  %v1088 = vunpack.c.l.b16 %v992
  %v1089 = vunpack.c.h.b16 %v992
  %v1090 = vpack.c.b16 %v1030, %v1026
  %v1091 = vpack.c.b16 %v1031, %v1027
  %v1092 = vpack.c.b16 %v1032, %v1028
  %v1093 = vpack.c.b16 %v1033, %v1029
  %v1094 = vpack.c.b16 %v1038, %v1034
  %v1095 = vpack.c.b16 %v1039, %v1035
  %v1096 = vpack.c.b16 %v1040, %v1036
  %v1097 = vpack.c.b16 %v1041, %v1037
  %v1098 = vpack.c.b16 %v1046, %v1042
  %v1099 = vpack.c.b16 %v1047, %v1043
  %v1100 = vpack.c.b16 %v1048, %v1044
  %v1101 = vpack.c.b16 %v1049, %v1045
  %v1102 = vpack.c.b16 %v1054, %v1050
  %v1103 = vpack.c.b16 %v1055, %v1051
  %v1104 = vpack.c.b16 %v1056, %v1052
  %v1105 = vpack.c.b16 %v1057, %v1053
  %v1106 = vpack.c.b16 %v1062, %v1058
  %v1107 = vpack.c.b16 %v1063, %v1059
  %v1108 = vpack.c.b16 %v1064, %v1060
  %v1109 = vpack.c.b16 %v1065, %v1061
  %v1110 = vpack.c.b16 %v1070, %v1066
  %v1111 = vpack.c.b16 %v1071, %v1067
  %v1112 = vpack.c.b16 %v1072, %v1068
  %v1113 = vpack.c.b16 %v1073, %v1069
  %v1114 = vpack.c.b16 %v1078, %v1074
  %v1115 = vpack.c.b16 %v1079, %v1075
  %v1116 = vpack.c.b16 %v1080, %v1076
  %v1117 = vpack.c.b16 %v1081, %v1077
  %v1118 = vpack.c.b16 %v1086, %v1082
  %v1119 = vpack.c.b16 %v1087, %v1083
  %v1120 = vpack.c.b16 %v1088, %v1084
  %v1121 = vpack.c.b16 %v1089, %v1085
  %1154 = vmatprep.subr.bf16.mxu0 %v1119
  %1155 = vmatpush1.bf16.msra.mxu0 %v1118
  %1156 = vmatprep.subr.bf16.mxu0 %v1115
  %1157 = vmatpush1.bf16.msra.mxu0 %v1114
  %1158 = vmatprep.subr.bf16.mxu0 %v1111
  %1159 = vmatpush1.bf16.msra.mxu0 %v1110
  %1160 = vmatprep.subr.bf16.mxu0 %v1107
  %1161 = vmatpush1.bf16.msra.mxu0 %v1106
  %1162 = vmatprep.subr.bf16.mxu0 %v1103
  %1163 = vmatpush1.bf16.msra.mxu0 %v1102
  %1164 = vmatprep.subr.bf16.mxu0 %v1099
  %1165 = vmatpush1.bf16.msra.mxu0 %v1098
  %1166 = vmatprep.subr.bf16.mxu0 %v1095
  %1167 = vmatpush1.bf16.msra.mxu0 %v1094
  %1168 = vmatprep.subr.bf16.mxu0 %v1091
  %1169 = vmatpush1.bf16.msra.mxu0 %v1090
  %1170 = vmatprep.subr.bf16.mxu0 0
  %1171 = vmatpush2.bf16.msra.mxu0 0
  %1172 = vmatprep.subr.bf16.mxu0 0
  %1173 = vmatpush2.bf16.msra.mxu0 0
  %1174 = vmatprep.subr.bf16.mxu0 0
  %1175 = vmatpush2.bf16.msra.mxu0 0
  %1176 = vmatprep.subr.bf16.mxu0 0
  %1177 = vmatpush2.bf16.msra.mxu0 0
  %1178 = vmatprep.subr.bf16.mxu0 0
  %1179 = vmatpush2.bf16.msra.mxu0 0
  %1180 = vmatprep.subr.bf16.mxu0 0
  %1181 = vmatpush2.bf16.msra.mxu0 0
  %1182 = vmatprep.subr.bf16.mxu0 0
  %1183 = vmatpush2.bf16.msra.mxu0 0
  %1184 = vmatprep.subr.bf16.mxu0 0
  %1185 = vmatpush2.bf16.msra.mxu0 0
  %1186 = vmatprep.mubr.bf16.mxu0 0
  %1187 = vmatmul.mubr.bf16.gmra.mxu0 %v993
  %v1188 = vpop.f32.mrf.mxu0
  %v1189 = vadd.f32 0.0, %v1188
  %v1190 = vpop.f32.mrf.mxu0
  %v1191 = vadd.f32 0.0, %v1190
  %v1192 = vpop.f32.mrf.mxu0
  %v1193 = vadd.f32 0.0, %v1192
  %v1194 = vpop.f32.mrf.mxu0
  %v1195 = vadd.f32 0.0, %v1194
  %1196 = vdwg.mxu0
  %1197 = vmatprep.subr.bf16.mxu0 %v1121
  %1198 = vmatpush1.bf16.msra.mxu0 %v1120
  %1199 = vmatprep.subr.bf16.mxu0 %v1117
  %1200 = vmatpush1.bf16.msra.mxu0 %v1116
  %1201 = vmatprep.subr.bf16.mxu0 %v1113
  %1202 = vmatpush1.bf16.msra.mxu0 %v1112
  %1203 = vmatprep.subr.bf16.mxu0 %v1109
  %1204 = vmatpush1.bf16.msra.mxu0 %v1108
  %1205 = vmatprep.subr.bf16.mxu0 %v1105
  %1206 = vmatpush1.bf16.msra.mxu0 %v1104
  %1207 = vmatprep.subr.bf16.mxu0 %v1101
  %1208 = vmatpush1.bf16.msra.mxu0 %v1100
  %1209 = vmatprep.subr.bf16.mxu0 %v1097
  %1210 = vmatpush1.bf16.msra.mxu0 %v1096
  %1211 = vmatprep.subr.bf16.mxu0 %v1093
  %1212 = vmatpush1.bf16.msra.mxu0 %v1092
  %1213 = vmatprep.subr.bf16.mxu0 0
  %1214 = vmatpush2.bf16.msra.mxu0 0
  %1215 = vmatprep.subr.bf16.mxu0 0
  %1216 = vmatpush2.bf16.msra.mxu0 0
  %1217 = vmatprep.subr.bf16.mxu0 0
  %1218 = vmatpush2.bf16.msra.mxu0 0
  %1219 = vmatprep.subr.bf16.mxu0 0
  %1220 = vmatpush2.bf16.msra.mxu0 0
  %1221 = vmatprep.subr.bf16.mxu0 0
  %1222 = vmatpush2.bf16.msra.mxu0 0
  %1223 = vmatprep.subr.bf16.mxu0 0
  %1224 = vmatpush2.bf16.msra.mxu0 0
  %1225 = vmatprep.subr.bf16.mxu0 0
  %1226 = vmatpush2.bf16.msra.mxu0 0
  %1227 = vmatprep.subr.bf16.mxu0 0
  %1228 = vmatpush2.bf16.msra.mxu0 0
  %1229 = vmatprep.mubr.bf16.mxu0 0
  %1230 = vmatmul.mubr.bf16.gmra.mxu0 %v993
  %v1231 = vpop.f32.mrf.mxu0
  %v1232 = vadd.f32 0.0, %v1231
  %v1233 = vpop.f32.mrf.mxu0
  %v1234 = vadd.f32 0.0, %v1233
  %v1235 = vpop.f32.mrf.mxu0
  %v1236 = vadd.f32 0.0, %v1235
  %v1237 = vpop.f32.mrf.mxu0
  %v1238 = vadd.f32 0.0, %v1237
  %1239 = vdwg.mxu0
  %v1272 = vunpack.c.l.b16 %v927
  %v1273 = vunpack.c.h.b16 %v927
  %v1274 = vunpack.c.l.b16 %v928
  %v1275 = vunpack.c.h.b16 %v928
  %v1276 = vunpack.c.l.b16 %v929
  %v1277 = vunpack.c.h.b16 %v929
  %v1278 = vunpack.c.l.b16 %v930
  %v1279 = vunpack.c.h.b16 %v930
  %v1280 = vunpack.c.l.b16 %v931
  %v1281 = vunpack.c.h.b16 %v931
  %v1282 = vunpack.c.l.b16 %v932
  %v1283 = vunpack.c.h.b16 %v932
  %v1284 = vunpack.c.l.b16 %v933
  %v1285 = vunpack.c.h.b16 %v933
  %v1286 = vunpack.c.l.b16 %v934
  %v1287 = vunpack.c.h.b16 %v934
  %v1288 = vunpack.c.l.b16 %v935
  %v1289 = vunpack.c.h.b16 %v935
  %v1290 = vunpack.c.l.b16 %v936
  %v1291 = vunpack.c.h.b16 %v936
  %v1292 = vunpack.c.l.b16 %v937
  %v1293 = vunpack.c.h.b16 %v937
  %v1294 = vunpack.c.l.b16 %v938
  %v1295 = vunpack.c.h.b16 %v938
  %v1296 = vunpack.c.l.b16 %v939
  %v1297 = vunpack.c.h.b16 %v939
  %v1298 = vunpack.c.l.b16 %v940
  %v1299 = vunpack.c.h.b16 %v940
  %v1300 = vunpack.c.l.b16 %v941
  %v1301 = vunpack.c.h.b16 %v941
  %v1302 = vunpack.c.l.b16 %v942
  %v1303 = vunpack.c.h.b16 %v942
  %v1304 = vunpack.c.l.b16 %v943
  %v1305 = vunpack.c.h.b16 %v943
  %v1306 = vunpack.c.l.b16 %v944
  %v1307 = vunpack.c.h.b16 %v944
  %v1308 = vunpack.c.l.b16 %v945
  %v1309 = vunpack.c.h.b16 %v945
  %v1310 = vunpack.c.l.b16 %v946
  %v1311 = vunpack.c.h.b16 %v946
  %v1312 = vunpack.c.l.b16 %v947
  %v1313 = vunpack.c.h.b16 %v947
  %v1314 = vunpack.c.l.b16 %v948
  %v1315 = vunpack.c.h.b16 %v948
  %v1316 = vunpack.c.l.b16 %v949
  %v1317 = vunpack.c.h.b16 %v949
  %v1318 = vunpack.c.l.b16 %v950
  %v1319 = vunpack.c.h.b16 %v950
  %v1320 = vunpack.c.l.b16 %v951
  %v1321 = vunpack.c.h.b16 %v951
  %v1322 = vunpack.c.l.b16 %v952
  %v1323 = vunpack.c.h.b16 %v952
  %v1324 = vunpack.c.l.b16 %v953
  %v1325 = vunpack.c.h.b16 %v953
  %v1326 = vunpack.c.l.b16 %v954
  %v1327 = vunpack.c.h.b16 %v954
  %v1328 = vunpack.c.l.b16 %v955
  %v1329 = vunpack.c.h.b16 %v955
  %v1330 = vunpack.c.l.b16 %v956
  %v1331 = vunpack.c.h.b16 %v956
  %v1332 = vunpack.c.l.b16 %v957
  %v1333 = vunpack.c.h.b16 %v957
  %v1334 = vunpack.c.l.b16 %v958
  %v1335 = vunpack.c.h.b16 %v958
  %v1336 = vpack.c.b16 %v1276, %v1272
  %v1337 = vpack.c.b16 %v1277, %v1273
  %v1338 = vpack.c.b16 %v1278, %v1274
  %v1339 = vpack.c.b16 %v1279, %v1275
  %v1340 = vpack.c.b16 %v1284, %v1280
  %v1341 = vpack.c.b16 %v1285, %v1281
  %v1342 = vpack.c.b16 %v1286, %v1282
  %v1343 = vpack.c.b16 %v1287, %v1283
  %v1344 = vpack.c.b16 %v1292, %v1288
  %v1345 = vpack.c.b16 %v1293, %v1289
  %v1346 = vpack.c.b16 %v1294, %v1290
  %v1347 = vpack.c.b16 %v1295, %v1291
  %v1348 = vpack.c.b16 %v1300, %v1296
  %v1349 = vpack.c.b16 %v1301, %v1297
  %v1350 = vpack.c.b16 %v1302, %v1298
  %v1351 = vpack.c.b16 %v1303, %v1299
  %v1352 = vpack.c.b16 %v1308, %v1304
  %v1353 = vpack.c.b16 %v1309, %v1305
  %v1354 = vpack.c.b16 %v1310, %v1306
  %v1355 = vpack.c.b16 %v1311, %v1307
  %v1356 = vpack.c.b16 %v1316, %v1312
  %v1357 = vpack.c.b16 %v1317, %v1313
  %v1358 = vpack.c.b16 %v1318, %v1314
  %v1359 = vpack.c.b16 %v1319, %v1315
  %v1360 = vpack.c.b16 %v1324, %v1320
  %v1361 = vpack.c.b16 %v1325, %v1321
  %v1362 = vpack.c.b16 %v1326, %v1322
  %v1363 = vpack.c.b16 %v1327, %v1323
  %v1364 = vpack.c.b16 %v1332, %v1328
  %v1365 = vpack.c.b16 %v1333, %v1329
  %v1366 = vpack.c.b16 %v1334, %v1330
  %v1367 = vpack.c.b16 %v1335, %v1331
  %1400 = vmatprep.subr.bf16.mxu0 %v1365
  %1401 = vmatpush1.bf16.msra.mxu0 %v1364
  %1402 = vmatprep.subr.bf16.mxu0 %v1361
  %1403 = vmatpush1.bf16.msra.mxu0 %v1360
  %1404 = vmatprep.subr.bf16.mxu0 %v1357
  %1405 = vmatpush1.bf16.msra.mxu0 %v1356
  %1406 = vmatprep.subr.bf16.mxu0 %v1353
  %1407 = vmatpush1.bf16.msra.mxu0 %v1352
  %1408 = vmatprep.subr.bf16.mxu0 %v1349
  %1409 = vmatpush1.bf16.msra.mxu0 %v1348
  %1410 = vmatprep.subr.bf16.mxu0 %v1345
  %1411 = vmatpush1.bf16.msra.mxu0 %v1344
  %1412 = vmatprep.subr.bf16.mxu0 %v1341
  %1413 = vmatpush1.bf16.msra.mxu0 %v1340
  %1414 = vmatprep.subr.bf16.mxu0 %v1337
  %1415 = vmatpush1.bf16.msra.mxu0 %v1336
  %1416 = vmatprep.subr.bf16.mxu0 0
  %1417 = vmatpush2.bf16.msra.mxu0 0
  %1418 = vmatprep.subr.bf16.mxu0 0
  %1419 = vmatpush2.bf16.msra.mxu0 0
  %1420 = vmatprep.subr.bf16.mxu0 0
  %1421 = vmatpush2.bf16.msra.mxu0 0
  %1422 = vmatprep.subr.bf16.mxu0 0
  %1423 = vmatpush2.bf16.msra.mxu0 0
  %1424 = vmatprep.subr.bf16.mxu0 0
  %1425 = vmatpush2.bf16.msra.mxu0 0
  %1426 = vmatprep.subr.bf16.mxu0 0
  %1427 = vmatpush2.bf16.msra.mxu0 0
  %1428 = vmatprep.subr.bf16.mxu0 0
  %1429 = vmatpush2.bf16.msra.mxu0 0
  %1430 = vmatprep.subr.bf16.mxu0 0
  %1431 = vmatpush2.bf16.msra.mxu0 0
  %1432 = vmatprep.mubr.bf16.mxu0 0
  %1433 = vmatmul.mubr.bf16.gmra.mxu0 %v959
  %v1434 = vpop.f32.mrf.mxu0
  %v1435 = vadd.f32 %v1189, %v1434
  %v1436 = vpop.f32.mrf.mxu0
  %v1437 = vadd.f32 %v1191, %v1436
  %v1438 = vpop.f32.mrf.mxu0
  %v1439 = vadd.f32 %v1193, %v1438
  %v1440 = vpop.f32.mrf.mxu0
  %v1441 = vadd.f32 %v1195, %v1440
  %1442 = vdwg.mxu0
  %1443 = vmatprep.subr.bf16.mxu0 %v1367
  %1444 = vmatpush1.bf16.msra.mxu0 %v1366
  %1445 = vmatprep.subr.bf16.mxu0 %v1363
  %1446 = vmatpush1.bf16.msra.mxu0 %v1362
  %1447 = vmatprep.subr.bf16.mxu0 %v1359
  %1448 = vmatpush1.bf16.msra.mxu0 %v1358
  %1449 = vmatprep.subr.bf16.mxu0 %v1355
  %1450 = vmatpush1.bf16.msra.mxu0 %v1354
  %1451 = vmatprep.subr.bf16.mxu0 %v1351
  %1452 = vmatpush1.bf16.msra.mxu0 %v1350
  %1453 = vmatprep.subr.bf16.mxu0 %v1347
  %1454 = vmatpush1.bf16.msra.mxu0 %v1346
  %1455 = vmatprep.subr.bf16.mxu0 %v1343
  %1456 = vmatpush1.bf16.msra.mxu0 %v1342
  %1457 = vmatprep.subr.bf16.mxu0 %v1339
  %1458 = vmatpush1.bf16.msra.mxu0 %v1338
  %1459 = vmatprep.subr.bf16.mxu0 0
  %1460 = vmatpush2.bf16.msra.mxu0 0
  %1461 = vmatprep.subr.bf16.mxu0 0
  %1462 = vmatpush2.bf16.msra.mxu0 0
  %1463 = vmatprep.subr.bf16.mxu0 0
  %1464 = vmatpush2.bf16.msra.mxu0 0
  %1465 = vmatprep.subr.bf16.mxu0 0
  %1466 = vmatpush2.bf16.msra.mxu0 0
  %1467 = vmatprep.subr.bf16.mxu0 0
  %1468 = vmatpush2.bf16.msra.mxu0 0
  %1469 = vmatprep.subr.bf16.mxu0 0
  %1470 = vmatpush2.bf16.msra.mxu0 0
  %1471 = vmatprep.subr.bf16.mxu0 0
  %1472 = vmatpush2.bf16.msra.mxu0 0
  %1473 = vmatprep.subr.bf16.mxu0 0
  %1474 = vmatpush2.bf16.msra.mxu0 0
  %1475 = vmatprep.mubr.bf16.mxu0 0
  %1476 = vmatmul.mubr.bf16.gmra.mxu0 %v959
  %v1477 = vpop.f32.mrf.mxu0
  %v1478 = vadd.f32 %v1232, %v1477
  %v1479 = vpop.f32.mrf.mxu0
  %v1480 = vadd.f32 %v1234, %v1479
  %v1481 = vpop.f32.mrf.mxu0
  %v1482 = vadd.f32 %v1236, %v1481
  %v1483 = vpop.f32.mrf.mxu0
  %v1484 = vadd.f32 %v1238, %v1483
  %1485 = vdwg.mxu0
  %v1488 = vrot.slane %v915, 1
  %v1489 = vrot.slane %v916, 1
  %v1490 = vsel %vm46, %v1488, %v1489
  %v1493 = vsel %vm46, %v1489, 0.0
  %s1494 = scalar_lea.vmem %s3, 256
  %v1495 = vld [vmem:[%s1494] sm:$0xff]
  %v1496 = vld [vmem:[%s1494 + $0x8] sm:$0xff]
  %v1497 = vld [vmem:[%s1494 + $0x10] sm:$0xff]
  %v1498 = vld [vmem:[%s1494 + $0x18] sm:$0xff]
  %v1499 = vld [vmem:[%s1494 + $0x20] sm:$0xff]
  %v1500 = vld [vmem:[%s1494 + $0x28] sm:$0xff]
  %v1501 = vld [vmem:[%s1494 + $0x30] sm:$0xff]
  %v1502 = vld [vmem:[%s1494 + $0x38] sm:$0xff]
  %v1503 = vld [vmem:[%s1494 + $0x40] sm:$0xff]
  %v1504 = vld [vmem:[%s1494 + $0x48] sm:$0xff]
  %v1505 = vld [vmem:[%s1494 + $0x50] sm:$0xff]
  %v1506 = vld [vmem:[%s1494 + $0x58] sm:$0xff]
  %v1507 = vld [vmem:[%s1494 + $0x60] sm:$0xff]
  %v1508 = vld [vmem:[%s1494 + $0x68] sm:$0xff]
  %v1509 = vld [vmem:[%s1494 + $0x70] sm:$0xff]
  %v1510 = vld [vmem:[%s1494 + $0x78] sm:$0xff]
  %v1511 = vld [vmem:[%s1494 + $0x80] sm:$0xff]
  %v1512 = vld [vmem:[%s1494 + $0x88] sm:$0xff]
  %v1513 = vld [vmem:[%s1494 + $0x90] sm:$0xff]
  %v1514 = vld [vmem:[%s1494 + $0x98] sm:$0xff]
  %v1515 = vld [vmem:[%s1494 + $0xa0] sm:$0xff]
  %v1516 = vld [vmem:[%s1494 + $0xa8] sm:$0xff]
  %v1517 = vld [vmem:[%s1494 + $0xb0] sm:$0xff]
  %v1518 = vld [vmem:[%s1494 + $0xb8] sm:$0xff]
  %v1519 = vld [vmem:[%s1494 + $0xc0] sm:$0xff]
  %v1520 = vld [vmem:[%s1494 + $0xc8] sm:$0xff]
  %v1521 = vld [vmem:[%s1494 + $0xd0] sm:$0xff]
  %v1522 = vld [vmem:[%s1494 + $0xd8] sm:$0xff]
  %v1523 = vld [vmem:[%s1494 + $0xe0] sm:$0xff]
  %v1524 = vld [vmem:[%s1494 + $0xe8] sm:$0xff]
  %v1525 = vld [vmem:[%s1494 + $0xf0] sm:$0xff]
  %v1526 = vld [vmem:[%s1494 + $0xf8] sm:$0xff]
  %v1527 = vpack.c.bf16 %v1493, %v1490
  %v1560 = vunpack.c.l.b16 %v1495
  %v1561 = vunpack.c.h.b16 %v1495
  %v1562 = vunpack.c.l.b16 %v1496
  %v1563 = vunpack.c.h.b16 %v1496
  %v1564 = vunpack.c.l.b16 %v1497
  %v1565 = vunpack.c.h.b16 %v1497
  %v1566 = vunpack.c.l.b16 %v1498
  %v1567 = vunpack.c.h.b16 %v1498
  %v1568 = vunpack.c.l.b16 %v1499
  %v1569 = vunpack.c.h.b16 %v1499
  %v1570 = vunpack.c.l.b16 %v1500
  %v1571 = vunpack.c.h.b16 %v1500
  %v1572 = vunpack.c.l.b16 %v1501
  %v1573 = vunpack.c.h.b16 %v1501
  %v1574 = vunpack.c.l.b16 %v1502
  %v1575 = vunpack.c.h.b16 %v1502
  %v1576 = vunpack.c.l.b16 %v1503
  %v1577 = vunpack.c.h.b16 %v1503
  %v1578 = vunpack.c.l.b16 %v1504
  %v1579 = vunpack.c.h.b16 %v1504
  %v1580 = vunpack.c.l.b16 %v1505
  %v1581 = vunpack.c.h.b16 %v1505
  %v1582 = vunpack.c.l.b16 %v1506
  %v1583 = vunpack.c.h.b16 %v1506
  %v1584 = vunpack.c.l.b16 %v1507
  %v1585 = vunpack.c.h.b16 %v1507
  %v1586 = vunpack.c.l.b16 %v1508
  %v1587 = vunpack.c.h.b16 %v1508
  %v1588 = vunpack.c.l.b16 %v1509
  %v1589 = vunpack.c.h.b16 %v1509
  %v1590 = vunpack.c.l.b16 %v1510
  %v1591 = vunpack.c.h.b16 %v1510
  %v1592 = vunpack.c.l.b16 %v1511
  %v1593 = vunpack.c.h.b16 %v1511
  %v1594 = vunpack.c.l.b16 %v1512
  %v1595 = vunpack.c.h.b16 %v1512
  %v1596 = vunpack.c.l.b16 %v1513
  %v1597 = vunpack.c.h.b16 %v1513
  %v1598 = vunpack.c.l.b16 %v1514
  %v1599 = vunpack.c.h.b16 %v1514
  %v1600 = vunpack.c.l.b16 %v1515
  %v1601 = vunpack.c.h.b16 %v1515
  %v1602 = vunpack.c.l.b16 %v1516
  %v1603 = vunpack.c.h.b16 %v1516
  %v1604 = vunpack.c.l.b16 %v1517
  %v1605 = vunpack.c.h.b16 %v1517
  %v1606 = vunpack.c.l.b16 %v1518
  %v1607 = vunpack.c.h.b16 %v1518
  %v1608 = vunpack.c.l.b16 %v1519
  %v1609 = vunpack.c.h.b16 %v1519
  %v1610 = vunpack.c.l.b16 %v1520
  %v1611 = vunpack.c.h.b16 %v1520
  %v1612 = vunpack.c.l.b16 %v1521
  %v1613 = vunpack.c.h.b16 %v1521
  %v1614 = vunpack.c.l.b16 %v1522
  %v1615 = vunpack.c.h.b16 %v1522
  %v1616 = vunpack.c.l.b16 %v1523
  %v1617 = vunpack.c.h.b16 %v1523
  %v1618 = vunpack.c.l.b16 %v1524
  %v1619 = vunpack.c.h.b16 %v1524
  %v1620 = vunpack.c.l.b16 %v1525
  %v1621 = vunpack.c.h.b16 %v1525
  %v1622 = vunpack.c.l.b16 %v1526
  %v1623 = vunpack.c.h.b16 %v1526
  %v1624 = vpack.c.b16 %v1564, %v1560
  %v1625 = vpack.c.b16 %v1565, %v1561
  %v1626 = vpack.c.b16 %v1566, %v1562
  %v1627 = vpack.c.b16 %v1567, %v1563
  %v1628 = vpack.c.b16 %v1572, %v1568
  %v1629 = vpack.c.b16 %v1573, %v1569
  %v1630 = vpack.c.b16 %v1574, %v1570
  %v1631 = vpack.c.b16 %v1575, %v1571
  %v1632 = vpack.c.b16 %v1580, %v1576
  %v1633 = vpack.c.b16 %v1581, %v1577
  %v1634 = vpack.c.b16 %v1582, %v1578
  %v1635 = vpack.c.b16 %v1583, %v1579
  %v1636 = vpack.c.b16 %v1588, %v1584
  %v1637 = vpack.c.b16 %v1589, %v1585
  %v1638 = vpack.c.b16 %v1590, %v1586
  %v1639 = vpack.c.b16 %v1591, %v1587
  %v1640 = vpack.c.b16 %v1596, %v1592
  %v1641 = vpack.c.b16 %v1597, %v1593
  %v1642 = vpack.c.b16 %v1598, %v1594
  %v1643 = vpack.c.b16 %v1599, %v1595
  %v1644 = vpack.c.b16 %v1604, %v1600
  %v1645 = vpack.c.b16 %v1605, %v1601
  %v1646 = vpack.c.b16 %v1606, %v1602
  %v1647 = vpack.c.b16 %v1607, %v1603
  %v1648 = vpack.c.b16 %v1612, %v1608
  %v1649 = vpack.c.b16 %v1613, %v1609
  %v1650 = vpack.c.b16 %v1614, %v1610
  %v1651 = vpack.c.b16 %v1615, %v1611
  %v1652 = vpack.c.b16 %v1620, %v1616
  %v1653 = vpack.c.b16 %v1621, %v1617
  %v1654 = vpack.c.b16 %v1622, %v1618
  %v1655 = vpack.c.b16 %v1623, %v1619
  %1688 = vmatprep.subr.bf16.mxu0 %v1653
  %1689 = vmatpush1.bf16.msra.mxu0 %v1652
  %1690 = vmatprep.subr.bf16.mxu0 %v1649
  %1691 = vmatpush1.bf16.msra.mxu0 %v1648
  %1692 = vmatprep.subr.bf16.mxu0 %v1645
  %1693 = vmatpush1.bf16.msra.mxu0 %v1644
  %1694 = vmatprep.subr.bf16.mxu0 %v1641
  %1695 = vmatpush1.bf16.msra.mxu0 %v1640
  %1696 = vmatprep.subr.bf16.mxu0 %v1637
  %1697 = vmatpush1.bf16.msra.mxu0 %v1636
  %1698 = vmatprep.subr.bf16.mxu0 %v1633
  %1699 = vmatpush1.bf16.msra.mxu0 %v1632
  %1700 = vmatprep.subr.bf16.mxu0 %v1629
  %1701 = vmatpush1.bf16.msra.mxu0 %v1628
  %1702 = vmatprep.subr.bf16.mxu0 %v1625
  %1703 = vmatpush1.bf16.msra.mxu0 %v1624
  %1704 = vmatprep.subr.bf16.mxu0 0
  %1705 = vmatpush2.bf16.msra.mxu0 0
  %1706 = vmatprep.subr.bf16.mxu0 0
  %1707 = vmatpush2.bf16.msra.mxu0 0
  %1708 = vmatprep.subr.bf16.mxu0 0
  %1709 = vmatpush2.bf16.msra.mxu0 0
  %1710 = vmatprep.subr.bf16.mxu0 0
  %1711 = vmatpush2.bf16.msra.mxu0 0
  %1712 = vmatprep.subr.bf16.mxu0 0
  %1713 = vmatpush2.bf16.msra.mxu0 0
  %1714 = vmatprep.subr.bf16.mxu0 0
  %1715 = vmatpush2.bf16.msra.mxu0 0
  %1716 = vmatprep.subr.bf16.mxu0 0
  %1717 = vmatpush2.bf16.msra.mxu0 0
  %1718 = vmatprep.subr.bf16.mxu0 0
  %1719 = vmatpush2.bf16.msra.mxu0 0
  %1720 = vmatprep.mubr.bf16.mxu0 0
  %1721 = vmatmul.mubr.bf16.gmra.mxu0 %v1527
  %v1722 = vpop.f32.mrf.mxu0
  %v1723 = vadd.f32 0.0, %v1722
  %v1724 = vpop.f32.mrf.mxu0
  %v1725 = vadd.f32 0.0, %v1724
  %v1726 = vpop.f32.mrf.mxu0
  %v1727 = vadd.f32 0.0, %v1726
  %v1728 = vpop.f32.mrf.mxu0
  %v1729 = vadd.f32 0.0, %v1728
  %1730 = vdwg.mxu0
  %1731 = vmatprep.subr.bf16.mxu0 %v1655
  %1732 = vmatpush1.bf16.msra.mxu0 %v1654
  %1733 = vmatprep.subr.bf16.mxu0 %v1651
  %1734 = vmatpush1.bf16.msra.mxu0 %v1650
  %1735 = vmatprep.subr.bf16.mxu0 %v1647
  %1736 = vmatpush1.bf16.msra.mxu0 %v1646
  %1737 = vmatprep.subr.bf16.mxu0 %v1643
  %1738 = vmatpush1.bf16.msra.mxu0 %v1642
  %1739 = vmatprep.subr.bf16.mxu0 %v1639
  %1740 = vmatpush1.bf16.msra.mxu0 %v1638
  %1741 = vmatprep.subr.bf16.mxu0 %v1635
  %1742 = vmatpush1.bf16.msra.mxu0 %v1634
  %1743 = vmatprep.subr.bf16.mxu0 %v1631
  %1744 = vmatpush1.bf16.msra.mxu0 %v1630
  %1745 = vmatprep.subr.bf16.mxu0 %v1627
  %1746 = vmatpush1.bf16.msra.mxu0 %v1626
  %1747 = vmatprep.subr.bf16.mxu0 0
  %1748 = vmatpush2.bf16.msra.mxu0 0
  %1749 = vmatprep.subr.bf16.mxu0 0
  %1750 = vmatpush2.bf16.msra.mxu0 0
  %1751 = vmatprep.subr.bf16.mxu0 0
  %1752 = vmatpush2.bf16.msra.mxu0 0
  %1753 = vmatprep.subr.bf16.mxu0 0
  %1754 = vmatpush2.bf16.msra.mxu0 0
  %1755 = vmatprep.subr.bf16.mxu0 0
  %1756 = vmatpush2.bf16.msra.mxu0 0
  %1757 = vmatprep.subr.bf16.mxu0 0
  %1758 = vmatpush2.bf16.msra.mxu0 0
  %1759 = vmatprep.subr.bf16.mxu0 0
  %1760 = vmatpush2.bf16.msra.mxu0 0
  %1761 = vmatprep.subr.bf16.mxu0 0
  %1762 = vmatpush2.bf16.msra.mxu0 0
  %1763 = vmatprep.mubr.bf16.mxu0 0
  %1764 = vmatmul.mubr.bf16.gmra.mxu0 %v1527
  %v1765 = vpop.f32.mrf.mxu0
  %v1766 = vadd.f32 0.0, %v1765
  %v1767 = vpop.f32.mrf.mxu0
  %v1768 = vadd.f32 0.0, %v1767
  %v1769 = vpop.f32.mrf.mxu0
  %v1770 = vadd.f32 0.0, %v1769
  %v1771 = vpop.f32.mrf.mxu0
  %v1772 = vadd.f32 0.0, %v1771
  %1773 = vdwg.mxu0
  %v1774 = vadd.f32 %v1435, %v1723
  %v1775 = vadd.f32 %v1437, %v1725
  %v1776 = vadd.f32 %v1478, %v1766
  %v1777 = vadd.f32 %v1480, %v1768
  %v1778 = vadd.f32 %v1439, %v1727
  %v1779 = vadd.f32 %v1441, %v1729
  %v1780 = vadd.f32 %v1482, %v1770
  %v1781 = vadd.f32 %v1484, %v1772
  %v1784 = vrot.slane %v925, 1
  %v1785 = vrot.slane %v926, 1
  %v1786 = vsel %vm46, %v1784, %v1785
  %v1789 = vsel %vm46, %v1785, 0.0
  %s1790 = scalar_lea.vmem %s3, 1024
  %v1791 = vld [vmem:[%s1790] sm:$0xff]
  %v1792 = vld [vmem:[%s1790 + $0x8] sm:$0xff]
  %v1793 = vld [vmem:[%s1790 + $0x10] sm:$0xff]
  %v1794 = vld [vmem:[%s1790 + $0x18] sm:$0xff]
  %v1795 = vld [vmem:[%s1790 + $0x20] sm:$0xff]
  %v1796 = vld [vmem:[%s1790 + $0x28] sm:$0xff]
  %v1797 = vld [vmem:[%s1790 + $0x30] sm:$0xff]
  %v1798 = vld [vmem:[%s1790 + $0x38] sm:$0xff]
  %v1799 = vld [vmem:[%s1790 + $0x40] sm:$0xff]
  %v1800 = vld [vmem:[%s1790 + $0x48] sm:$0xff]
  %v1801 = vld [vmem:[%s1790 + $0x50] sm:$0xff]
  %v1802 = vld [vmem:[%s1790 + $0x58] sm:$0xff]
  %v1803 = vld [vmem:[%s1790 + $0x60] sm:$0xff]
  %v1804 = vld [vmem:[%s1790 + $0x68] sm:$0xff]
  %v1805 = vld [vmem:[%s1790 + $0x70] sm:$0xff]
  %v1806 = vld [vmem:[%s1790 + $0x78] sm:$0xff]
  %v1807 = vld [vmem:[%s1790 + $0x80] sm:$0xff]
  %v1808 = vld [vmem:[%s1790 + $0x88] sm:$0xff]
  %v1809 = vld [vmem:[%s1790 + $0x90] sm:$0xff]
  %v1810 = vld [vmem:[%s1790 + $0x98] sm:$0xff]
  %v1811 = vld [vmem:[%s1790 + $0xa0] sm:$0xff]
  %v1812 = vld [vmem:[%s1790 + $0xa8] sm:$0xff]
  %v1813 = vld [vmem:[%s1790 + $0xb0] sm:$0xff]
  %v1814 = vld [vmem:[%s1790 + $0xb8] sm:$0xff]
  %v1815 = vld [vmem:[%s1790 + $0xc0] sm:$0xff]
  %v1816 = vld [vmem:[%s1790 + $0xc8] sm:$0xff]
  %v1817 = vld [vmem:[%s1790 + $0xd0] sm:$0xff]
  %v1818 = vld [vmem:[%s1790 + $0xd8] sm:$0xff]
  %v1819 = vld [vmem:[%s1790 + $0xe0] sm:$0xff]
  %v1820 = vld [vmem:[%s1790 + $0xe8] sm:$0xff]
  %v1821 = vld [vmem:[%s1790 + $0xf0] sm:$0xff]
  %v1822 = vld [vmem:[%s1790 + $0xf8] sm:$0xff]
  %v1823 = vpack.c.bf16 %v1789, %v1786
  %v1856 = vunpack.c.l.b16 %v1791
  %v1857 = vunpack.c.h.b16 %v1791
  %v1858 = vunpack.c.l.b16 %v1792
  %v1859 = vunpack.c.h.b16 %v1792
  %v1860 = vunpack.c.l.b16 %v1793
  %v1861 = vunpack.c.h.b16 %v1793
  %v1862 = vunpack.c.l.b16 %v1794
  %v1863 = vunpack.c.h.b16 %v1794
  %v1864 = vunpack.c.l.b16 %v1795
  %v1865 = vunpack.c.h.b16 %v1795
  %v1866 = vunpack.c.l.b16 %v1796
  %v1867 = vunpack.c.h.b16 %v1796
  %v1868 = vunpack.c.l.b16 %v1797
  %v1869 = vunpack.c.h.b16 %v1797
  %v1870 = vunpack.c.l.b16 %v1798
  %v1871 = vunpack.c.h.b16 %v1798
  %v1872 = vunpack.c.l.b16 %v1799
  %v1873 = vunpack.c.h.b16 %v1799
  %v1874 = vunpack.c.l.b16 %v1800
  %v1875 = vunpack.c.h.b16 %v1800
  %v1876 = vunpack.c.l.b16 %v1801
  %v1877 = vunpack.c.h.b16 %v1801
  %v1878 = vunpack.c.l.b16 %v1802
  %v1879 = vunpack.c.h.b16 %v1802
  %v1880 = vunpack.c.l.b16 %v1803
  %v1881 = vunpack.c.h.b16 %v1803
  %v1882 = vunpack.c.l.b16 %v1804
  %v1883 = vunpack.c.h.b16 %v1804
  %v1884 = vunpack.c.l.b16 %v1805
  %v1885 = vunpack.c.h.b16 %v1805
  %v1886 = vunpack.c.l.b16 %v1806
  %v1887 = vunpack.c.h.b16 %v1806
  %v1888 = vunpack.c.l.b16 %v1807
  %v1889 = vunpack.c.h.b16 %v1807
  %v1890 = vunpack.c.l.b16 %v1808
  %v1891 = vunpack.c.h.b16 %v1808
  %v1892 = vunpack.c.l.b16 %v1809
  %v1893 = vunpack.c.h.b16 %v1809
  %v1894 = vunpack.c.l.b16 %v1810
  %v1895 = vunpack.c.h.b16 %v1810
  %v1896 = vunpack.c.l.b16 %v1811
  %v1897 = vunpack.c.h.b16 %v1811
  %v1898 = vunpack.c.l.b16 %v1812
  %v1899 = vunpack.c.h.b16 %v1812
  %v1900 = vunpack.c.l.b16 %v1813
  %v1901 = vunpack.c.h.b16 %v1813
  %v1902 = vunpack.c.l.b16 %v1814
  %v1903 = vunpack.c.h.b16 %v1814
  %v1904 = vunpack.c.l.b16 %v1815
  %v1905 = vunpack.c.h.b16 %v1815
  %v1906 = vunpack.c.l.b16 %v1816
  %v1907 = vunpack.c.h.b16 %v1816
  %v1908 = vunpack.c.l.b16 %v1817
  %v1909 = vunpack.c.h.b16 %v1817
  %v1910 = vunpack.c.l.b16 %v1818
  %v1911 = vunpack.c.h.b16 %v1818
  %v1912 = vunpack.c.l.b16 %v1819
  %v1913 = vunpack.c.h.b16 %v1819
  %v1914 = vunpack.c.l.b16 %v1820
  %v1915 = vunpack.c.h.b16 %v1820
  %v1916 = vunpack.c.l.b16 %v1821
  %v1917 = vunpack.c.h.b16 %v1821
  %v1918 = vunpack.c.l.b16 %v1822
  %v1919 = vunpack.c.h.b16 %v1822
  %v1920 = vpack.c.b16 %v1860, %v1856
  %v1921 = vpack.c.b16 %v1861, %v1857
  %v1922 = vpack.c.b16 %v1862, %v1858
  %v1923 = vpack.c.b16 %v1863, %v1859
  %v1924 = vpack.c.b16 %v1868, %v1864
  %v1925 = vpack.c.b16 %v1869, %v1865
  %v1926 = vpack.c.b16 %v1870, %v1866
  %v1927 = vpack.c.b16 %v1871, %v1867
  %v1928 = vpack.c.b16 %v1876, %v1872
  %v1929 = vpack.c.b16 %v1877, %v1873
  %v1930 = vpack.c.b16 %v1878, %v1874
  %v1931 = vpack.c.b16 %v1879, %v1875
  %v1932 = vpack.c.b16 %v1884, %v1880
  %v1933 = vpack.c.b16 %v1885, %v1881
  %v1934 = vpack.c.b16 %v1886, %v1882
  %v1935 = vpack.c.b16 %v1887, %v1883
  %v1936 = vpack.c.b16 %v1892, %v1888
  %v1937 = vpack.c.b16 %v1893, %v1889
  %v1938 = vpack.c.b16 %v1894, %v1890
  %v1939 = vpack.c.b16 %v1895, %v1891
  %v1940 = vpack.c.b16 %v1900, %v1896
  %v1941 = vpack.c.b16 %v1901, %v1897
  %v1942 = vpack.c.b16 %v1902, %v1898
  %v1943 = vpack.c.b16 %v1903, %v1899
  %v1944 = vpack.c.b16 %v1908, %v1904
  %v1945 = vpack.c.b16 %v1909, %v1905
  %v1946 = vpack.c.b16 %v1910, %v1906
  %v1947 = vpack.c.b16 %v1911, %v1907
  %v1948 = vpack.c.b16 %v1916, %v1912
  %v1949 = vpack.c.b16 %v1917, %v1913
  %v1950 = vpack.c.b16 %v1918, %v1914
  %v1951 = vpack.c.b16 %v1919, %v1915
  %1984 = vmatprep.subr.bf16.mxu0 %v1949
  %1985 = vmatpush1.bf16.msra.mxu0 %v1948
  %1986 = vmatprep.subr.bf16.mxu0 %v1945
  %1987 = vmatpush1.bf16.msra.mxu0 %v1944
  %1988 = vmatprep.subr.bf16.mxu0 %v1941
  %1989 = vmatpush1.bf16.msra.mxu0 %v1940
  %1990 = vmatprep.subr.bf16.mxu0 %v1937
  %1991 = vmatpush1.bf16.msra.mxu0 %v1936
  %1992 = vmatprep.subr.bf16.mxu0 %v1933
  %1993 = vmatpush1.bf16.msra.mxu0 %v1932
  %1994 = vmatprep.subr.bf16.mxu0 %v1929
  %1995 = vmatpush1.bf16.msra.mxu0 %v1928
  %1996 = vmatprep.subr.bf16.mxu0 %v1925
  %1997 = vmatpush1.bf16.msra.mxu0 %v1924
  %1998 = vmatprep.subr.bf16.mxu0 %v1921
  %1999 = vmatpush1.bf16.msra.mxu0 %v1920
  %2000 = vmatprep.subr.bf16.mxu0 0
  %2001 = vmatpush2.bf16.msra.mxu0 0
  %2002 = vmatprep.subr.bf16.mxu0 0
  %2003 = vmatpush2.bf16.msra.mxu0 0
  %2004 = vmatprep.subr.bf16.mxu0 0
  %2005 = vmatpush2.bf16.msra.mxu0 0
  %2006 = vmatprep.subr.bf16.mxu0 0
  %2007 = vmatpush2.bf16.msra.mxu0 0
  %2008 = vmatprep.subr.bf16.mxu0 0
  %2009 = vmatpush2.bf16.msra.mxu0 0
  %2010 = vmatprep.subr.bf16.mxu0 0
  %2011 = vmatpush2.bf16.msra.mxu0 0
  %2012 = vmatprep.subr.bf16.mxu0 0
  %2013 = vmatpush2.bf16.msra.mxu0 0
  %2014 = vmatprep.subr.bf16.mxu0 0
  %2015 = vmatpush2.bf16.msra.mxu0 0
  %2016 = vmatprep.mubr.bf16.mxu0 0
  %2017 = vmatmul.mubr.bf16.gmra.mxu0 %v1823
  %v2018 = vpop.f32.mrf.mxu0
  %v2019 = vadd.f32 0.0, %v2018
  %v2020 = vpop.f32.mrf.mxu0
  %v2021 = vadd.f32 0.0, %v2020
  %v2022 = vpop.f32.mrf.mxu0
  %v2023 = vadd.f32 0.0, %v2022
  %v2024 = vpop.f32.mrf.mxu0
  %v2025 = vadd.f32 0.0, %v2024
  %2026 = vdwg.mxu0
  %2027 = vmatprep.subr.bf16.mxu0 %v1951
  %2028 = vmatpush1.bf16.msra.mxu0 %v1950
  %2029 = vmatprep.subr.bf16.mxu0 %v1947
  %2030 = vmatpush1.bf16.msra.mxu0 %v1946
  %2031 = vmatprep.subr.bf16.mxu0 %v1943
  %2032 = vmatpush1.bf16.msra.mxu0 %v1942
  %2033 = vmatprep.subr.bf16.mxu0 %v1939
  %2034 = vmatpush1.bf16.msra.mxu0 %v1938
  %2035 = vmatprep.subr.bf16.mxu0 %v1935
  %2036 = vmatpush1.bf16.msra.mxu0 %v1934
  %2037 = vmatprep.subr.bf16.mxu0 %v1931
  %2038 = vmatpush1.bf16.msra.mxu0 %v1930
  %2039 = vmatprep.subr.bf16.mxu0 %v1927
  %2040 = vmatpush1.bf16.msra.mxu0 %v1926
  %2041 = vmatprep.subr.bf16.mxu0 %v1923
  %2042 = vmatpush1.bf16.msra.mxu0 %v1922
  %2043 = vmatprep.subr.bf16.mxu0 0
  %2044 = vmatpush2.bf16.msra.mxu0 0
  %2045 = vmatprep.subr.bf16.mxu0 0
  %2046 = vmatpush2.bf16.msra.mxu0 0
  %2047 = vmatprep.subr.bf16.mxu0 0
  %2048 = vmatpush2.bf16.msra.mxu0 0
  %2049 = vmatprep.subr.bf16.mxu0 0
  %2050 = vmatpush2.bf16.msra.mxu0 0
  %2051 = vmatprep.subr.bf16.mxu0 0
  %2052 = vmatpush2.bf16.msra.mxu0 0
  %2053 = vmatprep.subr.bf16.mxu0 0
  %2054 = vmatpush2.bf16.msra.mxu0 0
  %2055 = vmatprep.subr.bf16.mxu0 0
  %2056 = vmatpush2.bf16.msra.mxu0 0
  %2057 = vmatprep.subr.bf16.mxu0 0
  %2058 = vmatpush2.bf16.msra.mxu0 0
  %2059 = vmatprep.mubr.bf16.mxu0 0
  %2060 = vmatmul.mubr.bf16.gmra.mxu0 %v1823
  %v2061 = vpop.f32.mrf.mxu0
  %v2062 = vadd.f32 0.0, %v2061
  %v2063 = vpop.f32.mrf.mxu0
  %v2064 = vadd.f32 0.0, %v2063
  %v2065 = vpop.f32.mrf.mxu0
  %v2066 = vadd.f32 0.0, %v2065
  %v2067 = vpop.f32.mrf.mxu0
  %v2068 = vadd.f32 0.0, %v2067
  %2069 = vdwg.mxu0
  %v2070 = vadd.f32 %v1774, %v2019
  %v2071 = vadd.f32 %v1775, %v2021
  %v2072 = vadd.f32 %v1776, %v2062
  %v2073 = vadd.f32 %v1777, %v2064
  %v2074 = vadd.f32 %v1778, %v2023
  %v2075 = vadd.f32 %v1779, %v2025
  %v2076 = vadd.f32 %v1780, %v2066
  %v2077 = vadd.f32 %v1781, %v2068
  %vm2078 = vcmask 1045504
  %v2079 = vrot.slane %v915, 2
  %v2080 = vrot.slane %v916, 2
  %v2081 = vsel %vm2078, %v2079, %v2080
  %v2084 = vsel %vm2078, %v2080, 0.0
  %s2085 = scalar_lea.vmem %s3, 512
  %v2086 = vld [vmem:[%s2085] sm:$0xff]
  %v2087 = vld [vmem:[%s2085 + $0x8] sm:$0xff]
  %v2088 = vld [vmem:[%s2085 + $0x10] sm:$0xff]
  %v2089 = vld [vmem:[%s2085 + $0x18] sm:$0xff]
  %v2090 = vld [vmem:[%s2085 + $0x20] sm:$0xff]
  %v2091 = vld [vmem:[%s2085 + $0x28] sm:$0xff]
  %v2092 = vld [vmem:[%s2085 + $0x30] sm:$0xff]
  %v2093 = vld [vmem:[%s2085 + $0x38] sm:$0xff]
  %v2094 = vld [vmem:[%s2085 + $0x40] sm:$0xff]
  %v2095 = vld [vmem:[%s2085 + $0x48] sm:$0xff]
  %v2096 = vld [vmem:[%s2085 + $0x50] sm:$0xff]
  %v2097 = vld [vmem:[%s2085 + $0x58] sm:$0xff]
  %v2098 = vld [vmem:[%s2085 + $0x60] sm:$0xff]
  %v2099 = vld [vmem:[%s2085 + $0x68] sm:$0xff]
  %v2100 = vld [vmem:[%s2085 + $0x70] sm:$0xff]
  %v2101 = vld [vmem:[%s2085 + $0x78] sm:$0xff]
  %v2102 = vld [vmem:[%s2085 + $0x80] sm:$0xff]
  %v2103 = vld [vmem:[%s2085 + $0x88] sm:$0xff]
  %v2104 = vld [vmem:[%s2085 + $0x90] sm:$0xff]
  %v2105 = vld [vmem:[%s2085 + $0x98] sm:$0xff]
  %v2106 = vld [vmem:[%s2085 + $0xa0] sm:$0xff]
  %v2107 = vld [vmem:[%s2085 + $0xa8] sm:$0xff]
  %v2108 = vld [vmem:[%s2085 + $0xb0] sm:$0xff]
  %v2109 = vld [vmem:[%s2085 + $0xb8] sm:$0xff]
  %v2110 = vld [vmem:[%s2085 + $0xc0] sm:$0xff]
  %v2111 = vld [vmem:[%s2085 + $0xc8] sm:$0xff]
  %v2112 = vld [vmem:[%s2085 + $0xd0] sm:$0xff]
  %v2113 = vld [vmem:[%s2085 + $0xd8] sm:$0xff]
  %v2114 = vld [vmem:[%s2085 + $0xe0] sm:$0xff]
  %v2115 = vld [vmem:[%s2085 + $0xe8] sm:$0xff]
  %v2116 = vld [vmem:[%s2085 + $0xf0] sm:$0xff]
  %v2117 = vld [vmem:[%s2085 + $0xf8] sm:$0xff]
  %v2118 = vpack.c.bf16 %v2084, %v2081
  %v2151 = vunpack.c.l.b16 %v2086
  %v2152 = vunpack.c.h.b16 %v2086
  %v2153 = vunpack.c.l.b16 %v2087
  %v2154 = vunpack.c.h.b16 %v2087
  %v2155 = vunpack.c.l.b16 %v2088
  %v2156 = vunpack.c.h.b16 %v2088
  %v2157 = vunpack.c.l.b16 %v2089
  %v2158 = vunpack.c.h.b16 %v2089
  %v2159 = vunpack.c.l.b16 %v2090
  %v2160 = vunpack.c.h.b16 %v2090
  %v2161 = vunpack.c.l.b16 %v2091
  %v2162 = vunpack.c.h.b16 %v2091
  %v2163 = vunpack.c.l.b16 %v2092
  %v2164 = vunpack.c.h.b16 %v2092
  %v2165 = vunpack.c.l.b16 %v2093
  %v2166 = vunpack.c.h.b16 %v2093
  %v2167 = vunpack.c.l.b16 %v2094
  %v2168 = vunpack.c.h.b16 %v2094
  %v2169 = vunpack.c.l.b16 %v2095
  %v2170 = vunpack.c.h.b16 %v2095
  %v2171 = vunpack.c.l.b16 %v2096
  %v2172 = vunpack.c.h.b16 %v2096
  %v2173 = vunpack.c.l.b16 %v2097
  %v2174 = vunpack.c.h.b16 %v2097
  %v2175 = vunpack.c.l.b16 %v2098
  %v2176 = vunpack.c.h.b16 %v2098
  %v2177 = vunpack.c.l.b16 %v2099
  %v2178 = vunpack.c.h.b16 %v2099
  %v2179 = vunpack.c.l.b16 %v2100
  %v2180 = vunpack.c.h.b16 %v2100
  %v2181 = vunpack.c.l.b16 %v2101
  %v2182 = vunpack.c.h.b16 %v2101
  %v2183 = vunpack.c.l.b16 %v2102
  %v2184 = vunpack.c.h.b16 %v2102
  %v2185 = vunpack.c.l.b16 %v2103
  %v2186 = vunpack.c.h.b16 %v2103
  %v2187 = vunpack.c.l.b16 %v2104
  %v2188 = vunpack.c.h.b16 %v2104
  %v2189 = vunpack.c.l.b16 %v2105
  %v2190 = vunpack.c.h.b16 %v2105
  %v2191 = vunpack.c.l.b16 %v2106
  %v2192 = vunpack.c.h.b16 %v2106
  %v2193 = vunpack.c.l.b16 %v2107
  %v2194 = vunpack.c.h.b16 %v2107
  %v2195 = vunpack.c.l.b16 %v2108
  %v2196 = vunpack.c.h.b16 %v2108
  %v2197 = vunpack.c.l.b16 %v2109
  %v2198 = vunpack.c.h.b16 %v2109
  %v2199 = vunpack.c.l.b16 %v2110
  %v2200 = vunpack.c.h.b16 %v2110
  %v2201 = vunpack.c.l.b16 %v2111
  %v2202 = vunpack.c.h.b16 %v2111
  %v2203 = vunpack.c.l.b16 %v2112
  %v2204 = vunpack.c.h.b16 %v2112
  %v2205 = vunpack.c.l.b16 %v2113
  %v2206 = vunpack.c.h.b16 %v2113
  %v2207 = vunpack.c.l.b16 %v2114
  %v2208 = vunpack.c.h.b16 %v2114
  %v2209 = vunpack.c.l.b16 %v2115
  %v2210 = vunpack.c.h.b16 %v2115
  %v2211 = vunpack.c.l.b16 %v2116
  %v2212 = vunpack.c.h.b16 %v2116
  %v2213 = vunpack.c.l.b16 %v2117
  %v2214 = vunpack.c.h.b16 %v2117
  %v2215 = vpack.c.b16 %v2155, %v2151
  %v2216 = vpack.c.b16 %v2156, %v2152
  %v2217 = vpack.c.b16 %v2157, %v2153
  %v2218 = vpack.c.b16 %v2158, %v2154
  %v2219 = vpack.c.b16 %v2163, %v2159
  %v2220 = vpack.c.b16 %v2164, %v2160
  %v2221 = vpack.c.b16 %v2165, %v2161
  %v2222 = vpack.c.b16 %v2166, %v2162
  %v2223 = vpack.c.b16 %v2171, %v2167
  %v2224 = vpack.c.b16 %v2172, %v2168
  %v2225 = vpack.c.b16 %v2173, %v2169
  %v2226 = vpack.c.b16 %v2174, %v2170
  %v2227 = vpack.c.b16 %v2179, %v2175
  %v2228 = vpack.c.b16 %v2180, %v2176
  %v2229 = vpack.c.b16 %v2181, %v2177
  %v2230 = vpack.c.b16 %v2182, %v2178
  %v2231 = vpack.c.b16 %v2187, %v2183
  %v2232 = vpack.c.b16 %v2188, %v2184
  %v2233 = vpack.c.b16 %v2189, %v2185
  %v2234 = vpack.c.b16 %v2190, %v2186
  %v2235 = vpack.c.b16 %v2195, %v2191
  %v2236 = vpack.c.b16 %v2196, %v2192
  %v2237 = vpack.c.b16 %v2197, %v2193
  %v2238 = vpack.c.b16 %v2198, %v2194
  %v2239 = vpack.c.b16 %v2203, %v2199
  %v2240 = vpack.c.b16 %v2204, %v2200
  %v2241 = vpack.c.b16 %v2205, %v2201
  %v2242 = vpack.c.b16 %v2206, %v2202
  %v2243 = vpack.c.b16 %v2211, %v2207
  %v2244 = vpack.c.b16 %v2212, %v2208
  %v2245 = vpack.c.b16 %v2213, %v2209
  %v2246 = vpack.c.b16 %v2214, %v2210
  %2279 = vmatprep.subr.bf16.mxu0 %v2244
  %2280 = vmatpush1.bf16.msra.mxu0 %v2243
  %2281 = vmatprep.subr.bf16.mxu0 %v2240
  %2282 = vmatpush1.bf16.msra.mxu0 %v2239
  %2283 = vmatprep.subr.bf16.mxu0 %v2236
  %2284 = vmatpush1.bf16.msra.mxu0 %v2235
  %2285 = vmatprep.subr.bf16.mxu0 %v2232
  %2286 = vmatpush1.bf16.msra.mxu0 %v2231
  %2287 = vmatprep.subr.bf16.mxu0 %v2228
  %2288 = vmatpush1.bf16.msra.mxu0 %v2227
  %2289 = vmatprep.subr.bf16.mxu0 %v2224
  %2290 = vmatpush1.bf16.msra.mxu0 %v2223
  %2291 = vmatprep.subr.bf16.mxu0 %v2220
  %2292 = vmatpush1.bf16.msra.mxu0 %v2219
  %2293 = vmatprep.subr.bf16.mxu0 %v2216
  %2294 = vmatpush1.bf16.msra.mxu0 %v2215
  %2295 = vmatprep.subr.bf16.mxu0 0
  %2296 = vmatpush2.bf16.msra.mxu0 0
  %2297 = vmatprep.subr.bf16.mxu0 0
  %2298 = vmatpush2.bf16.msra.mxu0 0
  %2299 = vmatprep.subr.bf16.mxu0 0
  %2300 = vmatpush2.bf16.msra.mxu0 0
  %2301 = vmatprep.subr.bf16.mxu0 0
  %2302 = vmatpush2.bf16.msra.mxu0 0
  %2303 = vmatprep.subr.bf16.mxu0 0
  %2304 = vmatpush2.bf16.msra.mxu0 0
  %2305 = vmatprep.subr.bf16.mxu0 0
  %2306 = vmatpush2.bf16.msra.mxu0 0
  %2307 = vmatprep.subr.bf16.mxu0 0
  %2308 = vmatpush2.bf16.msra.mxu0 0
  %2309 = vmatprep.subr.bf16.mxu0 0
  %2310 = vmatpush2.bf16.msra.mxu0 0
  %2311 = vmatprep.mubr.bf16.mxu0 0
  %2312 = vmatmul.mubr.bf16.gmra.mxu0 %v2118
  %v2313 = vpop.f32.mrf.mxu0
  %v2314 = vadd.f32 0.0, %v2313
  %v2315 = vpop.f32.mrf.mxu0
  %v2316 = vadd.f32 0.0, %v2315
  %v2317 = vpop.f32.mrf.mxu0
  %v2318 = vadd.f32 0.0, %v2317
  %v2319 = vpop.f32.mrf.mxu0
  %v2320 = vadd.f32 0.0, %v2319
  %2321 = vdwg.mxu0
  %2322 = vmatprep.subr.bf16.mxu0 %v2246
  %2323 = vmatpush1.bf16.msra.mxu0 %v2245
  %2324 = vmatprep.subr.bf16.mxu0 %v2242
  %2325 = vmatpush1.bf16.msra.mxu0 %v2241
  %2326 = vmatprep.subr.bf16.mxu0 %v2238
  %2327 = vmatpush1.bf16.msra.mxu0 %v2237
  %2328 = vmatprep.subr.bf16.mxu0 %v2234
  %2329 = vmatpush1.bf16.msra.mxu0 %v2233
  %2330 = vmatprep.subr.bf16.mxu0 %v2230
  %2331 = vmatpush1.bf16.msra.mxu0 %v2229
  %2332 = vmatprep.subr.bf16.mxu0 %v2226
  %2333 = vmatpush1.bf16.msra.mxu0 %v2225
  %2334 = vmatprep.subr.bf16.mxu0 %v2222
  %2335 = vmatpush1.bf16.msra.mxu0 %v2221
  %2336 = vmatprep.subr.bf16.mxu0 %v2218
  %2337 = vmatpush1.bf16.msra.mxu0 %v2217
  %2338 = vmatprep.subr.bf16.mxu0 0
  %2339 = vmatpush2.bf16.msra.mxu0 0
  %2340 = vmatprep.subr.bf16.mxu0 0
  %2341 = vmatpush2.bf16.msra.mxu0 0
  %2342 = vmatprep.subr.bf16.mxu0 0
  %2343 = vmatpush2.bf16.msra.mxu0 0
  %2344 = vmatprep.subr.bf16.mxu0 0
  %2345 = vmatpush2.bf16.msra.mxu0 0
  %2346 = vmatprep.subr.bf16.mxu0 0
  %2347 = vmatpush2.bf16.msra.mxu0 0
  %2348 = vmatprep.subr.bf16.mxu0 0
  %2349 = vmatpush2.bf16.msra.mxu0 0
  %2350 = vmatprep.subr.bf16.mxu0 0
  %2351 = vmatpush2.bf16.msra.mxu0 0
  %2352 = vmatprep.subr.bf16.mxu0 0
  %2353 = vmatpush2.bf16.msra.mxu0 0
  %2354 = vmatprep.mubr.bf16.mxu0 0
  %2355 = vmatmul.mubr.bf16.gmra.mxu0 %v2118
  %v2356 = vpop.f32.mrf.mxu0
  %v2357 = vadd.f32 0.0, %v2356
  %v2358 = vpop.f32.mrf.mxu0
  %v2359 = vadd.f32 0.0, %v2358
  %v2360 = vpop.f32.mrf.mxu0
  %v2361 = vadd.f32 0.0, %v2360
  %v2362 = vpop.f32.mrf.mxu0
  %v2363 = vadd.f32 0.0, %v2362
  %2364 = vdwg.mxu0
  %v2365 = vadd.f32 %v2070, %v2314
  %v2366 = vadd.f32 %v2071, %v2316
  %v2367 = vadd.f32 %v2072, %v2357
  %v2368 = vadd.f32 %v2073, %v2359
  %v2369 = vadd.f32 %v2074, %v2318
  %v2370 = vadd.f32 %v2075, %v2320
  %v2371 = vadd.f32 %v2076, %v2361
  %v2372 = vadd.f32 %v2077, %v2363
  %v2373 = vrot.slane %v925, 2
  %v2374 = vrot.slane %v926, 2
  %v2375 = vsel %vm2078, %v2373, %v2374
  %v2378 = vsel %vm2078, %v2374, 0.0
  %s2379 = scalar_lea.vmem %s3, 1280
  %v2380 = vld [vmem:[%s2379] sm:$0xff]
  %v2381 = vld [vmem:[%s2379 + $0x8] sm:$0xff]
  %v2382 = vld [vmem:[%s2379 + $0x10] sm:$0xff]
  %v2383 = vld [vmem:[%s2379 + $0x18] sm:$0xff]
  %v2384 = vld [vmem:[%s2379 + $0x20] sm:$0xff]
  %v2385 = vld [vmem:[%s2379 + $0x28] sm:$0xff]
  %v2386 = vld [vmem:[%s2379 + $0x30] sm:$0xff]
  %v2387 = vld [vmem:[%s2379 + $0x38] sm:$0xff]
  %v2388 = vld [vmem:[%s2379 + $0x40] sm:$0xff]
  %v2389 = vld [vmem:[%s2379 + $0x48] sm:$0xff]
  %v2390 = vld [vmem:[%s2379 + $0x50] sm:$0xff]
  %v2391 = vld [vmem:[%s2379 + $0x58] sm:$0xff]
  %v2392 = vld [vmem:[%s2379 + $0x60] sm:$0xff]
  %v2393 = vld [vmem:[%s2379 + $0x68] sm:$0xff]
  %v2394 = vld [vmem:[%s2379 + $0x70] sm:$0xff]
  %v2395 = vld [vmem:[%s2379 + $0x78] sm:$0xff]
  %v2396 = vld [vmem:[%s2379 + $0x80] sm:$0xff]
  %v2397 = vld [vmem:[%s2379 + $0x88] sm:$0xff]
  %v2398 = vld [vmem:[%s2379 + $0x90] sm:$0xff]
  %v2399 = vld [vmem:[%s2379 + $0x98] sm:$0xff]
  %v2400 = vld [vmem:[%s2379 + $0xa0] sm:$0xff]
  %v2401 = vld [vmem:[%s2379 + $0xa8] sm:$0xff]
  %v2402 = vld [vmem:[%s2379 + $0xb0] sm:$0xff]
  %v2403 = vld [vmem:[%s2379 + $0xb8] sm:$0xff]
  %v2404 = vld [vmem:[%s2379 + $0xc0] sm:$0xff]
  %v2405 = vld [vmem:[%s2379 + $0xc8] sm:$0xff]
  %v2406 = vld [vmem:[%s2379 + $0xd0] sm:$0xff]
  %v2407 = vld [vmem:[%s2379 + $0xd8] sm:$0xff]
  %v2408 = vld [vmem:[%s2379 + $0xe0] sm:$0xff]
  %v2409 = vld [vmem:[%s2379 + $0xe8] sm:$0xff]
  %v2410 = vld [vmem:[%s2379 + $0xf0] sm:$0xff]
  %v2411 = vld [vmem:[%s2379 + $0xf8] sm:$0xff]
  %v2412 = vpack.c.bf16 %v2378, %v2375
  %v2445 = vunpack.c.l.b16 %v2380
  %v2446 = vunpack.c.h.b16 %v2380
  %v2447 = vunpack.c.l.b16 %v2381
  %v2448 = vunpack.c.h.b16 %v2381
  %v2449 = vunpack.c.l.b16 %v2382
  %v2450 = vunpack.c.h.b16 %v2382
  %v2451 = vunpack.c.l.b16 %v2383
  %v2452 = vunpack.c.h.b16 %v2383
  %v2453 = vunpack.c.l.b16 %v2384
  %v2454 = vunpack.c.h.b16 %v2384
  %v2455 = vunpack.c.l.b16 %v2385
  %v2456 = vunpack.c.h.b16 %v2385
  %v2457 = vunpack.c.l.b16 %v2386
  %v2458 = vunpack.c.h.b16 %v2386
  %v2459 = vunpack.c.l.b16 %v2387
  %v2460 = vunpack.c.h.b16 %v2387
  %v2461 = vunpack.c.l.b16 %v2388
  %v2462 = vunpack.c.h.b16 %v2388
  %v2463 = vunpack.c.l.b16 %v2389
  %v2464 = vunpack.c.h.b16 %v2389
  %v2465 = vunpack.c.l.b16 %v2390
  %v2466 = vunpack.c.h.b16 %v2390
  %v2467 = vunpack.c.l.b16 %v2391
  %v2468 = vunpack.c.h.b16 %v2391
  %v2469 = vunpack.c.l.b16 %v2392
  %v2470 = vunpack.c.h.b16 %v2392
  %v2471 = vunpack.c.l.b16 %v2393
  %v2472 = vunpack.c.h.b16 %v2393
  %v2473 = vunpack.c.l.b16 %v2394
  %v2474 = vunpack.c.h.b16 %v2394
  %v2475 = vunpack.c.l.b16 %v2395
  %v2476 = vunpack.c.h.b16 %v2395
  %v2477 = vunpack.c.l.b16 %v2396
  %v2478 = vunpack.c.h.b16 %v2396
  %v2479 = vunpack.c.l.b16 %v2397
  %v2480 = vunpack.c.h.b16 %v2397
  %v2481 = vunpack.c.l.b16 %v2398
  %v2482 = vunpack.c.h.b16 %v2398
  %v2483 = vunpack.c.l.b16 %v2399
  %v2484 = vunpack.c.h.b16 %v2399
  %v2485 = vunpack.c.l.b16 %v2400
  %v2486 = vunpack.c.h.b16 %v2400
  %v2487 = vunpack.c.l.b16 %v2401
  %v2488 = vunpack.c.h.b16 %v2401
  %v2489 = vunpack.c.l.b16 %v2402
  %v2490 = vunpack.c.h.b16 %v2402
  %v2491 = vunpack.c.l.b16 %v2403
  %v2492 = vunpack.c.h.b16 %v2403
  %v2493 = vunpack.c.l.b16 %v2404
  %v2494 = vunpack.c.h.b16 %v2404
  %v2495 = vunpack.c.l.b16 %v2405
  %v2496 = vunpack.c.h.b16 %v2405
  %v2497 = vunpack.c.l.b16 %v2406
  %v2498 = vunpack.c.h.b16 %v2406
  %v2499 = vunpack.c.l.b16 %v2407
  %v2500 = vunpack.c.h.b16 %v2407
  %v2501 = vunpack.c.l.b16 %v2408
  %v2502 = vunpack.c.h.b16 %v2408
  %v2503 = vunpack.c.l.b16 %v2409
  %v2504 = vunpack.c.h.b16 %v2409
  %v2505 = vunpack.c.l.b16 %v2410
  %v2506 = vunpack.c.h.b16 %v2410
  %v2507 = vunpack.c.l.b16 %v2411
  %v2508 = vunpack.c.h.b16 %v2411
  %v2509 = vpack.c.b16 %v2449, %v2445
  %v2510 = vpack.c.b16 %v2450, %v2446
  %v2511 = vpack.c.b16 %v2451, %v2447
  %v2512 = vpack.c.b16 %v2452, %v2448
  %v2513 = vpack.c.b16 %v2457, %v2453
  %v2514 = vpack.c.b16 %v2458, %v2454
  %v2515 = vpack.c.b16 %v2459, %v2455
  %v2516 = vpack.c.b16 %v2460, %v2456
  %v2517 = vpack.c.b16 %v2465, %v2461
  %v2518 = vpack.c.b16 %v2466, %v2462
  %v2519 = vpack.c.b16 %v2467, %v2463
  %v2520 = vpack.c.b16 %v2468, %v2464
  %v2521 = vpack.c.b16 %v2473, %v2469
  %v2522 = vpack.c.b16 %v2474, %v2470
  %v2523 = vpack.c.b16 %v2475, %v2471
  %v2524 = vpack.c.b16 %v2476, %v2472
  %v2525 = vpack.c.b16 %v2481, %v2477
  %v2526 = vpack.c.b16 %v2482, %v2478
  %v2527 = vpack.c.b16 %v2483, %v2479
  %v2528 = vpack.c.b16 %v2484, %v2480
  %v2529 = vpack.c.b16 %v2489, %v2485
  %v2530 = vpack.c.b16 %v2490, %v2486
  %v2531 = vpack.c.b16 %v2491, %v2487
  %v2532 = vpack.c.b16 %v2492, %v2488
  %v2533 = vpack.c.b16 %v2497, %v2493
  %v2534 = vpack.c.b16 %v2498, %v2494
  %v2535 = vpack.c.b16 %v2499, %v2495
  %v2536 = vpack.c.b16 %v2500, %v2496
  %v2537 = vpack.c.b16 %v2505, %v2501
  %v2538 = vpack.c.b16 %v2506, %v2502
  %v2539 = vpack.c.b16 %v2507, %v2503
  %v2540 = vpack.c.b16 %v2508, %v2504
  %2573 = vmatprep.subr.bf16.mxu0 %v2538
  %2574 = vmatpush1.bf16.msra.mxu0 %v2537
  %2575 = vmatprep.subr.bf16.mxu0 %v2534
  %2576 = vmatpush1.bf16.msra.mxu0 %v2533
  %2577 = vmatprep.subr.bf16.mxu0 %v2530
  %2578 = vmatpush1.bf16.msra.mxu0 %v2529
  %2579 = vmatprep.subr.bf16.mxu0 %v2526
  %2580 = vmatpush1.bf16.msra.mxu0 %v2525
  %2581 = vmatprep.subr.bf16.mxu0 %v2522
  %2582 = vmatpush1.bf16.msra.mxu0 %v2521
  %2583 = vmatprep.subr.bf16.mxu0 %v2518
  %2584 = vmatpush1.bf16.msra.mxu0 %v2517
  %2585 = vmatprep.subr.bf16.mxu0 %v2514
  %2586 = vmatpush1.bf16.msra.mxu0 %v2513
  %2587 = vmatprep.subr.bf16.mxu0 %v2510
  %2588 = vmatpush1.bf16.msra.mxu0 %v2509
  %2589 = vmatprep.subr.bf16.mxu0 0
  %2590 = vmatpush2.bf16.msra.mxu0 0
  %2591 = vmatprep.subr.bf16.mxu0 0
  %2592 = vmatpush2.bf16.msra.mxu0 0
  %2593 = vmatprep.subr.bf16.mxu0 0
  %2594 = vmatpush2.bf16.msra.mxu0 0
  %2595 = vmatprep.subr.bf16.mxu0 0
  %2596 = vmatpush2.bf16.msra.mxu0 0
  %2597 = vmatprep.subr.bf16.mxu0 0
  %2598 = vmatpush2.bf16.msra.mxu0 0
  %2599 = vmatprep.subr.bf16.mxu0 0
  %2600 = vmatpush2.bf16.msra.mxu0 0
  %2601 = vmatprep.subr.bf16.mxu0 0
  %2602 = vmatpush2.bf16.msra.mxu0 0
  %2603 = vmatprep.subr.bf16.mxu0 0
  %2604 = vmatpush2.bf16.msra.mxu0 0
  %2605 = vmatprep.mubr.bf16.mxu0 0
  %2606 = vmatmul.mubr.bf16.gmra.mxu0 %v2412
  %v2607 = vpop.f32.mrf.mxu0
  %v2608 = vadd.f32 0.0, %v2607
  %v2609 = vpop.f32.mrf.mxu0
  %v2610 = vadd.f32 0.0, %v2609
  %v2611 = vpop.f32.mrf.mxu0
  %v2612 = vadd.f32 0.0, %v2611
  %v2613 = vpop.f32.mrf.mxu0
  %v2614 = vadd.f32 0.0, %v2613
  %2615 = vdwg.mxu0
  %2616 = vmatprep.subr.bf16.mxu0 %v2540
  %2617 = vmatpush1.bf16.msra.mxu0 %v2539
  %2618 = vmatprep.subr.bf16.mxu0 %v2536
  %2619 = vmatpush1.bf16.msra.mxu0 %v2535
  %2620 = vmatprep.subr.bf16.mxu0 %v2532
  %2621 = vmatpush1.bf16.msra.mxu0 %v2531
  %2622 = vmatprep.subr.bf16.mxu0 %v2528
  %2623 = vmatpush1.bf16.msra.mxu0 %v2527
  %2624 = vmatprep.subr.bf16.mxu0 %v2524
  %2625 = vmatpush1.bf16.msra.mxu0 %v2523
  %2626 = vmatprep.subr.bf16.mxu0 %v2520
  %2627 = vmatpush1.bf16.msra.mxu0 %v2519
  %2628 = vmatprep.subr.bf16.mxu0 %v2516
  %2629 = vmatpush1.bf16.msra.mxu0 %v2515
  %2630 = vmatprep.subr.bf16.mxu0 %v2512
  %2631 = vmatpush1.bf16.msra.mxu0 %v2511
  %2632 = vmatprep.subr.bf16.mxu0 0
  %2633 = vmatpush2.bf16.msra.mxu0 0
  %2634 = vmatprep.subr.bf16.mxu0 0
  %2635 = vmatpush2.bf16.msra.mxu0 0
  %2636 = vmatprep.subr.bf16.mxu0 0
  %2637 = vmatpush2.bf16.msra.mxu0 0
  %2638 = vmatprep.subr.bf16.mxu0 0
  %2639 = vmatpush2.bf16.msra.mxu0 0
  %2640 = vmatprep.subr.bf16.mxu0 0
  %2641 = vmatpush2.bf16.msra.mxu0 0
  %2642 = vmatprep.subr.bf16.mxu0 0
  %2643 = vmatpush2.bf16.msra.mxu0 0
  %2644 = vmatprep.subr.bf16.mxu0 0
  %2645 = vmatpush2.bf16.msra.mxu0 0
  %2646 = vmatprep.subr.bf16.mxu0 0
  %2647 = vmatpush2.bf16.msra.mxu0 0
  %2648 = vmatprep.mubr.bf16.mxu0 0
  %2649 = vmatmul.mubr.bf16.gmra.mxu0 %v2412
  %v2650 = vpop.f32.mrf.mxu0
  %v2651 = vadd.f32 0.0, %v2650
  %v2652 = vpop.f32.mrf.mxu0
  %v2653 = vadd.f32 0.0, %v2652
  %v2654 = vpop.f32.mrf.mxu0
  %v2655 = vadd.f32 0.0, %v2654
  %v2656 = vpop.f32.mrf.mxu0
  %v2657 = vadd.f32 0.0, %v2656
  %2658 = vdwg.mxu0
  %v2659 = vadd.f32 %v2365, %v2608
  %v2660 = vadd.f32 %v2366, %v2610
  %v2661 = vadd.f32 %v2367, %v2651
  %v2662 = vadd.f32 %v2368, %v2653
  %v2663 = vadd.f32 %v2369, %v2612
  %v2664 = vadd.f32 %v2370, %v2614
  %v2665 = vadd.f32 %v2371, %v2655
  %v2666 = vadd.f32 %v2372, %v2657
  %v2667 = vld [vmem:[%s4] sm:$0x1]
  %v2668 = vmax.f32 %v2659, %v2660
  %v2669 = vmax.f32 %v2663, %v2664
  %v2670 = vmax.f32 %v2661, %v2662
  %v2671 = vmax.f32 %v2665, %v2666
  %v2672 = vmax.f32 %v2668, %v2670
  %v2673 = vmax.f32 %v2669, %v2671
  %v2675 = vlaneseq
  %v2676 = vshrl.u32 %v2675, 7
  %v2677 = vsub.s32 0, %v2676
  %v2678 = vrot.slane %v2667, %v2677
  %v2680 = vadd.f32 %v2672, %v2678
  %v2681 = vadd.f32 %v2673, %v2678
  %v2682 = vmax.f32 %v2680, 0.0
  %v2683 = vmax.f32 %v2681, 0.0
  %v2684 = vld [vmem:[%s5] sm:$0xf]
  %v2685 = vld [vmem:[%s5 + $0x4] sm:$0xf]
  %v2686 = vld [vmem:[%s5 + $0x8] sm:$0xf]
  %v2687 = vld [vmem:[%s5 + $0xc] sm:$0xf]
  %v2688 = vld [vmem:[%s5 + $0x10] sm:$0xf]
  %v2689 = vld [vmem:[%s5 + $0x14] sm:$0xf]
  %v2690 = vld [vmem:[%s5 + $0x18] sm:$0xf]
  %v2691 = vld [vmem:[%s5 + $0x1c] sm:$0xf]
  %v2692 = vld [vmem:[%s5 + $0x20] sm:$0xf]
  %v2693 = vld [vmem:[%s5 + $0x24] sm:$0xf]
  %v2694 = vld [vmem:[%s5 + $0x28] sm:$0xf]
  %v2695 = vld [vmem:[%s5 + $0x2c] sm:$0xf]
  %v2696 = vld [vmem:[%s5 + $0x30] sm:$0xf]
  %v2697 = vld [vmem:[%s5 + $0x34] sm:$0xf]
  %v2698 = vld [vmem:[%s5 + $0x38] sm:$0xf]
  %v2699 = vld [vmem:[%s5 + $0x3c] sm:$0xf]
  %v2700 = vpack.c.bf16 %v2683, %v2682
  %v2703 = vrot.slane %v2682, 1
  %v2704 = vrot.slane %v2683, 1
  %v2705 = vsel %vm46, %v2703, %v2704
  %v2708 = vsel %vm46, %v2704, 0.0
  %s2709 = scalar_lea.vmem %s5, 64
  %v2710 = vld [vmem:[%s2709] sm:$0xf]
  %v2711 = vld [vmem:[%s2709 + $0x4] sm:$0xf]
  %v2712 = vld [vmem:[%s2709 + $0x8] sm:$0xf]
  %v2713 = vld [vmem:[%s2709 + $0xc] sm:$0xf]
  %v2714 = vld [vmem:[%s2709 + $0x10] sm:$0xf]
  %v2715 = vld [vmem:[%s2709 + $0x14] sm:$0xf]
  %v2716 = vld [vmem:[%s2709 + $0x18] sm:$0xf]
  %v2717 = vld [vmem:[%s2709 + $0x1c] sm:$0xf]
  %v2718 = vld [vmem:[%s2709 + $0x20] sm:$0xf]
  %v2719 = vld [vmem:[%s2709 + $0x24] sm:$0xf]
  %v2720 = vld [vmem:[%s2709 + $0x28] sm:$0xf]
  %v2721 = vld [vmem:[%s2709 + $0x2c] sm:$0xf]
  %v2722 = vld [vmem:[%s2709 + $0x30] sm:$0xf]
  %v2723 = vld [vmem:[%s2709 + $0x34] sm:$0xf]
  %v2724 = vld [vmem:[%s2709 + $0x38] sm:$0xf]
  %v2725 = vld [vmem:[%s2709 + $0x3c] sm:$0xf]
  %v2726 = vpack.c.bf16 %v2708, %v2705
  %v2743 = vunpack.c.l.b16 %v2710
  %v2744 = vunpack.c.l.b16 %v2711
  %v2745 = vunpack.c.l.b16 %v2712
  %v2746 = vunpack.c.l.b16 %v2713
  %v2747 = vunpack.c.l.b16 %v2714
  %v2748 = vunpack.c.l.b16 %v2715
  %v2749 = vunpack.c.l.b16 %v2716
  %v2750 = vunpack.c.l.b16 %v2717
  %v2751 = vunpack.c.l.b16 %v2718
  %v2752 = vunpack.c.l.b16 %v2719
  %v2753 = vunpack.c.l.b16 %v2720
  %v2754 = vunpack.c.l.b16 %v2721
  %v2755 = vunpack.c.l.b16 %v2722
  %v2756 = vunpack.c.l.b16 %v2723
  %v2757 = vunpack.c.l.b16 %v2724
  %v2758 = vunpack.c.l.b16 %v2725
  %v2759 = vpack.c.b16 %v2744, %v2743
  %v2760 = vpack.c.b16 %v2746, %v2745
  %v2761 = vpack.c.b16 %v2748, %v2747
  %v2762 = vpack.c.b16 %v2750, %v2749
  %v2763 = vpack.c.b16 %v2752, %v2751
  %v2764 = vpack.c.b16 %v2754, %v2753
  %v2765 = vpack.c.b16 %v2756, %v2755
  %v2766 = vpack.c.b16 %v2758, %v2757
  %2775 = vmatprep.subr.bf16.mxu0 0
  %2776 = vmatpush1.bf16.msra.mxu0 %v2766
  %2777 = vmatprep.subr.bf16.mxu0 0
  %2778 = vmatpush1.bf16.msra.mxu0 %v2765
  %2779 = vmatprep.subr.bf16.mxu0 0
  %2780 = vmatpush1.bf16.msra.mxu0 %v2764
  %2781 = vmatprep.subr.bf16.mxu0 0
  %2782 = vmatpush1.bf16.msra.mxu0 %v2763
  %2783 = vmatprep.subr.bf16.mxu0 0
  %2784 = vmatpush1.bf16.msra.mxu0 %v2762
  %2785 = vmatprep.subr.bf16.mxu0 0
  %2786 = vmatpush1.bf16.msra.mxu0 %v2761
  %2787 = vmatprep.subr.bf16.mxu0 0
  %2788 = vmatpush1.bf16.msra.mxu0 %v2760
  %2789 = vmatprep.subr.bf16.mxu0 0
  %2790 = vmatpush1.bf16.msra.mxu0 %v2759
  %2791 = vmatprep.subr.bf16.mxu0 0
  %2792 = vmatpush2.bf16.msra.mxu0 0
  %2793 = vmatprep.subr.bf16.mxu0 0
  %2794 = vmatpush2.bf16.msra.mxu0 0
  %2795 = vmatprep.subr.bf16.mxu0 0
  %2796 = vmatpush2.bf16.msra.mxu0 0
  %2797 = vmatprep.subr.bf16.mxu0 0
  %2798 = vmatpush2.bf16.msra.mxu0 0
  %2799 = vmatprep.subr.bf16.mxu0 0
  %2800 = vmatpush2.bf16.msra.mxu0 0
  %2801 = vmatprep.subr.bf16.mxu0 0
  %2802 = vmatpush2.bf16.msra.mxu0 0
  %2803 = vmatprep.subr.bf16.mxu0 0
  %2804 = vmatpush2.bf16.msra.mxu0 0
  %2805 = vmatprep.subr.bf16.mxu0 0
  %2806 = vmatpush2.bf16.msra.mxu0 0
  %2807 = vmatprep.mubr.bf16.mxu0 0
  %2808 = vmatmul.mubr.bf16.gmra.mxu0 %v2726
  %v2809 = vpop.f32.mrf.mxu0
  %v2810 = vadd.f32 0.0, %v2809
  %v2811 = vpop.f32.mrf.mxu0
  %v2812 = vpop.f32.mrf.mxu0
  %v2813 = vadd.f32 0.0, %v2812
  %v2814 = vpop.f32.mrf.mxu0
  %2815 = vdwg.mxu0
  %v2832 = vunpack.c.l.b16 %v2684
  %v2833 = vunpack.c.l.b16 %v2685
  %v2834 = vunpack.c.l.b16 %v2686
  %v2835 = vunpack.c.l.b16 %v2687
  %v2836 = vunpack.c.l.b16 %v2688
  %v2837 = vunpack.c.l.b16 %v2689
  %v2838 = vunpack.c.l.b16 %v2690
  %v2839 = vunpack.c.l.b16 %v2691
  %v2840 = vunpack.c.l.b16 %v2692
  %v2841 = vunpack.c.l.b16 %v2693
  %v2842 = vunpack.c.l.b16 %v2694
  %v2843 = vunpack.c.l.b16 %v2695
  %v2844 = vunpack.c.l.b16 %v2696
  %v2845 = vunpack.c.l.b16 %v2697
  %v2846 = vunpack.c.l.b16 %v2698
  %v2847 = vunpack.c.l.b16 %v2699
  %v2848 = vpack.c.b16 %v2833, %v2832
  %v2849 = vpack.c.b16 %v2835, %v2834
  %v2850 = vpack.c.b16 %v2837, %v2836
  %v2851 = vpack.c.b16 %v2839, %v2838
  %v2852 = vpack.c.b16 %v2841, %v2840
  %v2853 = vpack.c.b16 %v2843, %v2842
  %v2854 = vpack.c.b16 %v2845, %v2844
  %v2855 = vpack.c.b16 %v2847, %v2846
  %2864 = vmatprep.subr.bf16.mxu0 0
  %2865 = vmatpush1.bf16.msra.mxu0 %v2855
  %2866 = vmatprep.subr.bf16.mxu0 0
  %2867 = vmatpush1.bf16.msra.mxu0 %v2854
  %2868 = vmatprep.subr.bf16.mxu0 0
  %2869 = vmatpush1.bf16.msra.mxu0 %v2853
  %2870 = vmatprep.subr.bf16.mxu0 0
  %2871 = vmatpush1.bf16.msra.mxu0 %v2852
  %2872 = vmatprep.subr.bf16.mxu0 0
  %2873 = vmatpush1.bf16.msra.mxu0 %v2851
  %2874 = vmatprep.subr.bf16.mxu0 0
  %2875 = vmatpush1.bf16.msra.mxu0 %v2850
  %2876 = vmatprep.subr.bf16.mxu0 0
  %2877 = vmatpush1.bf16.msra.mxu0 %v2849
  %2878 = vmatprep.subr.bf16.mxu0 0
  %2879 = vmatpush1.bf16.msra.mxu0 %v2848
  %2880 = vmatprep.subr.bf16.mxu0 0
  %2881 = vmatpush2.bf16.msra.mxu0 0
  %2882 = vmatprep.subr.bf16.mxu0 0
  %2883 = vmatpush2.bf16.msra.mxu0 0
  %2884 = vmatprep.subr.bf16.mxu0 0
  %2885 = vmatpush2.bf16.msra.mxu0 0
  %2886 = vmatprep.subr.bf16.mxu0 0
  %2887 = vmatpush2.bf16.msra.mxu0 0
  %2888 = vmatprep.subr.bf16.mxu0 0
  %2889 = vmatpush2.bf16.msra.mxu0 0
  %2890 = vmatprep.subr.bf16.mxu0 0
  %2891 = vmatpush2.bf16.msra.mxu0 0
  %2892 = vmatprep.subr.bf16.mxu0 0
  %2893 = vmatpush2.bf16.msra.mxu0 0
  %2894 = vmatprep.subr.bf16.mxu0 0
  %2895 = vmatpush2.bf16.msra.mxu0 0
  %2896 = vmatprep.mubr.bf16.mxu0 0
  %2897 = vmatmul.mubr.bf16.gmra.mxu0 %v2700
  %v2898 = vpop.f32.mrf.mxu0
  %v2899 = vadd.f32 %v2810, %v2898
  %v2900 = vpop.f32.mrf.mxu0
  %v2901 = vpop.f32.mrf.mxu0
  %v2902 = vadd.f32 %v2813, %v2901
  %v2903 = vpop.f32.mrf.mxu0
  %2904 = vdwg.mxu0
  %v2905 = vrot.slane %v2682, 2
  %v2906 = vrot.slane %v2683, 2
  %v2907 = vsel %vm2078, %v2905, %v2906
  %v2910 = vsel %vm2078, %v2906, 0.0
  %s2911 = scalar_lea.vmem %s5, 128
  %v2912 = vld [vmem:[%s2911] sm:$0xf]
  %v2913 = vld [vmem:[%s2911 + $0x4] sm:$0xf]
  %v2914 = vld [vmem:[%s2911 + $0x8] sm:$0xf]
  %v2915 = vld [vmem:[%s2911 + $0xc] sm:$0xf]
  %v2916 = vld [vmem:[%s2911 + $0x10] sm:$0xf]
  %v2917 = vld [vmem:[%s2911 + $0x14] sm:$0xf]
  %v2918 = vld [vmem:[%s2911 + $0x18] sm:$0xf]
  %v2919 = vld [vmem:[%s2911 + $0x1c] sm:$0xf]
  %v2920 = vld [vmem:[%s2911 + $0x20] sm:$0xf]
  %v2921 = vld [vmem:[%s2911 + $0x24] sm:$0xf]
  %v2922 = vld [vmem:[%s2911 + $0x28] sm:$0xf]
  %v2923 = vld [vmem:[%s2911 + $0x2c] sm:$0xf]
  %v2924 = vld [vmem:[%s2911 + $0x30] sm:$0xf]
  %v2925 = vld [vmem:[%s2911 + $0x34] sm:$0xf]
  %v2926 = vld [vmem:[%s2911 + $0x38] sm:$0xf]
  %v2927 = vld [vmem:[%s2911 + $0x3c] sm:$0xf]
  %v2928 = vpack.c.bf16 %v2910, %v2907
  %v2945 = vunpack.c.l.b16 %v2912
  %v2946 = vunpack.c.l.b16 %v2913
  %v2947 = vunpack.c.l.b16 %v2914
  %v2948 = vunpack.c.l.b16 %v2915
  %v2949 = vunpack.c.l.b16 %v2916
  %v2950 = vunpack.c.l.b16 %v2917
  %v2951 = vunpack.c.l.b16 %v2918
  %v2952 = vunpack.c.l.b16 %v2919
  %v2953 = vunpack.c.l.b16 %v2920
  %v2954 = vunpack.c.l.b16 %v2921
  %v2955 = vunpack.c.l.b16 %v2922
  %v2956 = vunpack.c.l.b16 %v2923
  %v2957 = vunpack.c.l.b16 %v2924
  %v2958 = vunpack.c.l.b16 %v2925
  %v2959 = vunpack.c.l.b16 %v2926
  %v2960 = vunpack.c.l.b16 %v2927
  %v2961 = vpack.c.b16 %v2946, %v2945
  %v2962 = vpack.c.b16 %v2948, %v2947
  %v2963 = vpack.c.b16 %v2950, %v2949
  %v2964 = vpack.c.b16 %v2952, %v2951
  %v2965 = vpack.c.b16 %v2954, %v2953
  %v2966 = vpack.c.b16 %v2956, %v2955
  %v2967 = vpack.c.b16 %v2958, %v2957
  %v2968 = vpack.c.b16 %v2960, %v2959
  %2977 = vmatprep.subr.bf16.mxu0 0
  %2978 = vmatpush1.bf16.msra.mxu0 %v2968
  %2979 = vmatprep.subr.bf16.mxu0 0
  %2980 = vmatpush1.bf16.msra.mxu0 %v2967
  %2981 = vmatprep.subr.bf16.mxu0 0
  %2982 = vmatpush1.bf16.msra.mxu0 %v2966
  %2983 = vmatprep.subr.bf16.mxu0 0
  %2984 = vmatpush1.bf16.msra.mxu0 %v2965
  %2985 = vmatprep.subr.bf16.mxu0 0
  %2986 = vmatpush1.bf16.msra.mxu0 %v2964
  %2987 = vmatprep.subr.bf16.mxu0 0
  %2988 = vmatpush1.bf16.msra.mxu0 %v2963
  %2989 = vmatprep.subr.bf16.mxu0 0
  %2990 = vmatpush1.bf16.msra.mxu0 %v2962
  %2991 = vmatprep.subr.bf16.mxu0 0
  %2992 = vmatpush1.bf16.msra.mxu0 %v2961
  %2993 = vmatprep.subr.bf16.mxu0 0
  %2994 = vmatpush2.bf16.msra.mxu0 0
  %2995 = vmatprep.subr.bf16.mxu0 0
  %2996 = vmatpush2.bf16.msra.mxu0 0
  %2997 = vmatprep.subr.bf16.mxu0 0
  %2998 = vmatpush2.bf16.msra.mxu0 0
  %2999 = vmatprep.subr.bf16.mxu0 0
  %3000 = vmatpush2.bf16.msra.mxu0 0
  %3001 = vmatprep.subr.bf16.mxu0 0
  %3002 = vmatpush2.bf16.msra.mxu0 0
  %3003 = vmatprep.subr.bf16.mxu0 0
  %3004 = vmatpush2.bf16.msra.mxu0 0
  %3005 = vmatprep.subr.bf16.mxu0 0
  %3006 = vmatpush2.bf16.msra.mxu0 0
  %3007 = vmatprep.subr.bf16.mxu0 0
  %3008 = vmatpush2.bf16.msra.mxu0 0
  %3009 = vmatprep.mubr.bf16.mxu0 0
  %3010 = vmatmul.mubr.bf16.gmra.mxu0 %v2928
  %v3011 = vpop.f32.mrf.mxu0
  %v3012 = vadd.f32 0.0, %v3011
  %v3013 = vpop.f32.mrf.mxu0
  %v3014 = vpop.f32.mrf.mxu0
  %v3015 = vadd.f32 0.0, %v3014
  %v3016 = vpop.f32.mrf.mxu0
  %3017 = vdwg.mxu0
  %v3018 = vadd.f32 %v2899, %v3012
  %v3019 = vadd.f32 %v2902, %v3015
  %vm3020 = vcmask 1044480
  %v3021 = vrot.slane %v2682, 3
  %v3022 = vrot.slane %v2683, 3
  %v3023 = vsel %vm3020, %v3021, %v3022
  %v3026 = vsel %vm3020, %v3022, 0.0
  %s3027 = scalar_lea.vmem %s5, 192
  %v3028 = vld [vmem:[%s3027] sm:$0xf]
  %v3029 = vld [vmem:[%s3027 + $0x4] sm:$0xf]
  %v3030 = vld [vmem:[%s3027 + $0x8] sm:$0xf]
  %v3031 = vld [vmem:[%s3027 + $0xc] sm:$0xf]
  %v3032 = vld [vmem:[%s3027 + $0x10] sm:$0xf]
  %v3033 = vld [vmem:[%s3027 + $0x14] sm:$0xf]
  %v3034 = vld [vmem:[%s3027 + $0x18] sm:$0xf]
  %v3035 = vld [vmem:[%s3027 + $0x1c] sm:$0xf]
  %v3036 = vld [vmem:[%s3027 + $0x20] sm:$0xf]
  %v3037 = vld [vmem:[%s3027 + $0x24] sm:$0xf]
  %v3038 = vld [vmem:[%s3027 + $0x28] sm:$0xf]
  %v3039 = vld [vmem:[%s3027 + $0x2c] sm:$0xf]
  %v3040 = vld [vmem:[%s3027 + $0x30] sm:$0xf]
  %v3041 = vld [vmem:[%s3027 + $0x34] sm:$0xf]
  %v3042 = vld [vmem:[%s3027 + $0x38] sm:$0xf]
  %v3043 = vld [vmem:[%s3027 + $0x3c] sm:$0xf]
  %v3044 = vpack.c.bf16 %v3026, %v3023
  %v3061 = vunpack.c.l.b16 %v3028
  %v3062 = vunpack.c.l.b16 %v3029
  %v3063 = vunpack.c.l.b16 %v3030
  %v3064 = vunpack.c.l.b16 %v3031
  %v3065 = vunpack.c.l.b16 %v3032
  %v3066 = vunpack.c.l.b16 %v3033
  %v3067 = vunpack.c.l.b16 %v3034
  %v3068 = vunpack.c.l.b16 %v3035
  %v3069 = vunpack.c.l.b16 %v3036
  %v3070 = vunpack.c.l.b16 %v3037
  %v3071 = vunpack.c.l.b16 %v3038
  %v3072 = vunpack.c.l.b16 %v3039
  %v3073 = vunpack.c.l.b16 %v3040
  %v3074 = vunpack.c.l.b16 %v3041
  %v3075 = vunpack.c.l.b16 %v3042
  %v3076 = vunpack.c.l.b16 %v3043
  %v3077 = vpack.c.b16 %v3062, %v3061
  %v3078 = vpack.c.b16 %v3064, %v3063
  %v3079 = vpack.c.b16 %v3066, %v3065
  %v3080 = vpack.c.b16 %v3068, %v3067
  %v3081 = vpack.c.b16 %v3070, %v3069
  %v3082 = vpack.c.b16 %v3072, %v3071
  %v3083 = vpack.c.b16 %v3074, %v3073
  %v3084 = vpack.c.b16 %v3076, %v3075
  %3093 = vmatprep.subr.bf16.mxu0 0
  %3094 = vmatpush1.bf16.msra.mxu0 %v3084
  %3095 = vmatprep.subr.bf16.mxu0 0
  %3096 = vmatpush1.bf16.msra.mxu0 %v3083
  %3097 = vmatprep.subr.bf16.mxu0 0
  %3098 = vmatpush1.bf16.msra.mxu0 %v3082
  %3099 = vmatprep.subr.bf16.mxu0 0
  %3100 = vmatpush1.bf16.msra.mxu0 %v3081
  %3101 = vmatprep.subr.bf16.mxu0 0
  %3102 = vmatpush1.bf16.msra.mxu0 %v3080
  %3103 = vmatprep.subr.bf16.mxu0 0
  %3104 = vmatpush1.bf16.msra.mxu0 %v3079
  %3105 = vmatprep.subr.bf16.mxu0 0
  %3106 = vmatpush1.bf16.msra.mxu0 %v3078
  %3107 = vmatprep.subr.bf16.mxu0 0
  %3108 = vmatpush1.bf16.msra.mxu0 %v3077
  %3109 = vmatprep.subr.bf16.mxu0 0
  %3110 = vmatpush2.bf16.msra.mxu0 0
  %3111 = vmatprep.subr.bf16.mxu0 0
  %3112 = vmatpush2.bf16.msra.mxu0 0
  %3113 = vmatprep.subr.bf16.mxu0 0
  %3114 = vmatpush2.bf16.msra.mxu0 0
  %3115 = vmatprep.subr.bf16.mxu0 0
  %3116 = vmatpush2.bf16.msra.mxu0 0
  %3117 = vmatprep.subr.bf16.mxu0 0
  %3118 = vmatpush2.bf16.msra.mxu0 0
  %3119 = vmatprep.subr.bf16.mxu0 0
  %3120 = vmatpush2.bf16.msra.mxu0 0
  %3121 = vmatprep.subr.bf16.mxu0 0
  %3122 = vmatpush2.bf16.msra.mxu0 0
  %3123 = vmatprep.subr.bf16.mxu0 0
  %3124 = vmatpush2.bf16.msra.mxu0 0
  %3125 = vmatprep.mubr.bf16.mxu0 0
  %3126 = vmatmul.mubr.bf16.gmra.mxu0 %v3044
  %v3127 = vpop.f32.mrf.mxu0
  %v3128 = vadd.f32 0.0, %v3127
  %v3129 = vpop.f32.mrf.mxu0
  %v3130 = vpop.f32.mrf.mxu0
  %v3131 = vadd.f32 0.0, %v3130
  %v3132 = vpop.f32.mrf.mxu0
  %3133 = vdwg.mxu0
  %v3134 = vadd.f32 %v3018, %v3128
  %v3135 = vadd.f32 %v3019, %v3131
  %vm3136 = vcmask 1043456
  %v3137 = vrot.slane %v2682, 4
  %v3138 = vrot.slane %v2683, 4
  %v3139 = vsel %vm3136, %v3137, %v3138
  %v3142 = vsel %vm3136, %v3138, 0.0
  %s3143 = scalar_lea.vmem %s5, 256
  %v3144 = vld [vmem:[%s3143] sm:$0xf]
  %v3145 = vld [vmem:[%s3143 + $0x4] sm:$0xf]
  %v3146 = vld [vmem:[%s3143 + $0x8] sm:$0xf]
  %v3147 = vld [vmem:[%s3143 + $0xc] sm:$0xf]
  %v3148 = vld [vmem:[%s3143 + $0x10] sm:$0xf]
  %v3149 = vld [vmem:[%s3143 + $0x14] sm:$0xf]
  %v3150 = vld [vmem:[%s3143 + $0x18] sm:$0xf]
  %v3151 = vld [vmem:[%s3143 + $0x1c] sm:$0xf]
  %v3152 = vld [vmem:[%s3143 + $0x20] sm:$0xf]
  %v3153 = vld [vmem:[%s3143 + $0x24] sm:$0xf]
  %v3154 = vld [vmem:[%s3143 + $0x28] sm:$0xf]
  %v3155 = vld [vmem:[%s3143 + $0x2c] sm:$0xf]
  %v3156 = vld [vmem:[%s3143 + $0x30] sm:$0xf]
  %v3157 = vld [vmem:[%s3143 + $0x34] sm:$0xf]
  %v3158 = vld [vmem:[%s3143 + $0x38] sm:$0xf]
  %v3159 = vld [vmem:[%s3143 + $0x3c] sm:$0xf]
  %v3160 = vpack.c.bf16 %v3142, %v3139
  %v3177 = vunpack.c.l.b16 %v3144
  %v3178 = vunpack.c.l.b16 %v3145
  %v3179 = vunpack.c.l.b16 %v3146
  %v3180 = vunpack.c.l.b16 %v3147
  %v3181 = vunpack.c.l.b16 %v3148
  %v3182 = vunpack.c.l.b16 %v3149
  %v3183 = vunpack.c.l.b16 %v3150
  %v3184 = vunpack.c.l.b16 %v3151
  %v3185 = vunpack.c.l.b16 %v3152
  %v3186 = vunpack.c.l.b16 %v3153
  %v3187 = vunpack.c.l.b16 %v3154
  %v3188 = vunpack.c.l.b16 %v3155
  %v3189 = vunpack.c.l.b16 %v3156
  %v3190 = vunpack.c.l.b16 %v3157
  %v3191 = vunpack.c.l.b16 %v3158
  %v3192 = vunpack.c.l.b16 %v3159
  %v3193 = vpack.c.b16 %v3178, %v3177
  %v3194 = vpack.c.b16 %v3180, %v3179
  %v3195 = vpack.c.b16 %v3182, %v3181
  %v3196 = vpack.c.b16 %v3184, %v3183
  %v3197 = vpack.c.b16 %v3186, %v3185
  %v3198 = vpack.c.b16 %v3188, %v3187
  %v3199 = vpack.c.b16 %v3190, %v3189
  %v3200 = vpack.c.b16 %v3192, %v3191
  %3209 = vmatprep.subr.bf16.mxu0 0
  %3210 = vmatpush1.bf16.msra.mxu0 %v3200
  %3211 = vmatprep.subr.bf16.mxu0 0
  %3212 = vmatpush1.bf16.msra.mxu0 %v3199
  %3213 = vmatprep.subr.bf16.mxu0 0
  %3214 = vmatpush1.bf16.msra.mxu0 %v3198
  %3215 = vmatprep.subr.bf16.mxu0 0
  %3216 = vmatpush1.bf16.msra.mxu0 %v3197
  %3217 = vmatprep.subr.bf16.mxu0 0
  %3218 = vmatpush1.bf16.msra.mxu0 %v3196
  %3219 = vmatprep.subr.bf16.mxu0 0
  %3220 = vmatpush1.bf16.msra.mxu0 %v3195
  %3221 = vmatprep.subr.bf16.mxu0 0
  %3222 = vmatpush1.bf16.msra.mxu0 %v3194
  %3223 = vmatprep.subr.bf16.mxu0 0
  %3224 = vmatpush1.bf16.msra.mxu0 %v3193
  %3225 = vmatprep.subr.bf16.mxu0 0
  %3226 = vmatpush2.bf16.msra.mxu0 0
  %3227 = vmatprep.subr.bf16.mxu0 0
  %3228 = vmatpush2.bf16.msra.mxu0 0
  %3229 = vmatprep.subr.bf16.mxu0 0
  %3230 = vmatpush2.bf16.msra.mxu0 0
  %3231 = vmatprep.subr.bf16.mxu0 0
  %3232 = vmatpush2.bf16.msra.mxu0 0
  %3233 = vmatprep.subr.bf16.mxu0 0
  %3234 = vmatpush2.bf16.msra.mxu0 0
  %3235 = vmatprep.subr.bf16.mxu0 0
  %3236 = vmatpush2.bf16.msra.mxu0 0
  %3237 = vmatprep.subr.bf16.mxu0 0
  %3238 = vmatpush2.bf16.msra.mxu0 0
  %3239 = vmatprep.subr.bf16.mxu0 0
  %3240 = vmatpush2.bf16.msra.mxu0 0
  %3241 = vmatprep.mubr.bf16.mxu0 0
  %3242 = vmatmul.mubr.bf16.gmra.mxu0 %v3160
  %v3243 = vpop.f32.mrf.mxu0
  %v3244 = vadd.f32 0.0, %v3243
  %v3245 = vpop.f32.mrf.mxu0
  %v3246 = vpop.f32.mrf.mxu0
  %v3247 = vadd.f32 0.0, %v3246
  %v3248 = vpop.f32.mrf.mxu0
  %3249 = vdwg.mxu0
  %v3250 = vadd.f32 %v3134, %v3244
  %v3251 = vadd.f32 %v3135, %v3247
  %v3252 = vld [vmem:[%s6] sm:$0x1]
  %v3254 = vlaneseq
  %v3255 = vshrl.u32 %v3254, 7
  %v3256 = vsub.s32 0, %v3255
  %v3257 = vrot.slane %v3252, %v3256
  %v3259 = vadd.f32 %v3250, %v3257
  %v3260 = vadd.f32 %v3251, %v3257
  %v3261 = vmax.f32 %v3259, 0.0
  %v3262 = vmax.f32 %v3260, 0.0
  %v3263 = vld [vmem:[%s7] sm:$0xf]
  %v3264 = vld [vmem:[%s7 + $0x4] sm:$0xf]
  %v3265 = vld [vmem:[%s7 + $0x8] sm:$0xf]
  %v3266 = vld [vmem:[%s7 + $0xc] sm:$0xf]
  %v3267 = vld [vmem:[%s7 + $0x10] sm:$0xf]
  %v3268 = vld [vmem:[%s7 + $0x14] sm:$0xf]
  %v3269 = vld [vmem:[%s7 + $0x18] sm:$0xf]
  %v3270 = vld [vmem:[%s7 + $0x1c] sm:$0xf]
  %v3271 = vld [vmem:[%s7 + $0x20] sm:$0xf]
  %v3272 = vld [vmem:[%s7 + $0x24] sm:$0xf]
  %v3273 = vld [vmem:[%s7 + $0x28] sm:$0xf]
  %v3274 = vld [vmem:[%s7 + $0x2c] sm:$0xf]
  %v3275 = vld [vmem:[%s7 + $0x30] sm:$0xf]
  %v3276 = vld [vmem:[%s7 + $0x34] sm:$0xf]
  %v3277 = vld [vmem:[%s7 + $0x38] sm:$0xf]
  %v3278 = vld [vmem:[%s7 + $0x3c] sm:$0xf]
  %v3279 = vpack.c.bf16 %v3262, %v3261
  %v3280 = vld [vmem:[%s8] sm:$0x1]
  %v3282 = vlaneseq
  %v3283 = vshrl.u32 %v3282, 7
  %v3284 = vsub.s32 0, %v3283
  %v3285 = vrot.slane %v3280, %v3284
  %v3303 = vunpack.c.l.b16 %v3263
  %v3304 = vunpack.c.l.b16 %v3264
  %v3305 = vunpack.c.l.b16 %v3265
  %v3306 = vunpack.c.l.b16 %v3266
  %v3307 = vunpack.c.l.b16 %v3267
  %v3308 = vunpack.c.l.b16 %v3268
  %v3309 = vunpack.c.l.b16 %v3269
  %v3310 = vunpack.c.l.b16 %v3270
  %v3311 = vunpack.c.l.b16 %v3271
  %v3312 = vunpack.c.l.b16 %v3272
  %v3313 = vunpack.c.l.b16 %v3273
  %v3314 = vunpack.c.l.b16 %v3274
  %v3315 = vunpack.c.l.b16 %v3275
  %v3316 = vunpack.c.l.b16 %v3276
  %v3317 = vunpack.c.l.b16 %v3277
  %v3318 = vunpack.c.l.b16 %v3278
  %v3319 = vpack.c.b16 %v3304, %v3303
  %v3320 = vpack.c.b16 %v3306, %v3305
  %v3321 = vpack.c.b16 %v3308, %v3307
  %v3322 = vpack.c.b16 %v3310, %v3309
  %v3323 = vpack.c.b16 %v3312, %v3311
  %v3324 = vpack.c.b16 %v3314, %v3313
  %v3325 = vpack.c.b16 %v3316, %v3315
  %v3326 = vpack.c.b16 %v3318, %v3317
  %3335 = vmatprep.subr.bf16.mxu0 0
  %3336 = vmatpush1.bf16.msra.mxu0 %v3326
  %3337 = vmatprep.subr.bf16.mxu0 0
  %3338 = vmatpush1.bf16.msra.mxu0 %v3325
  %3339 = vmatprep.subr.bf16.mxu0 0
  %3340 = vmatpush1.bf16.msra.mxu0 %v3324
  %3341 = vmatprep.subr.bf16.mxu0 0
  %3342 = vmatpush1.bf16.msra.mxu0 %v3323
  %3343 = vmatprep.subr.bf16.mxu0 0
  %3344 = vmatpush1.bf16.msra.mxu0 %v3322
  %3345 = vmatprep.subr.bf16.mxu0 0
  %3346 = vmatpush1.bf16.msra.mxu0 %v3321
  %3347 = vmatprep.subr.bf16.mxu0 0
  %3348 = vmatpush1.bf16.msra.mxu0 %v3320
  %3349 = vmatprep.subr.bf16.mxu0 0
  %3350 = vmatpush1.bf16.msra.mxu0 %v3319
  %3351 = vmatprep.subr.bf16.mxu0 0
  %3352 = vmatpush2.bf16.msra.mxu0 0
  %3353 = vmatprep.subr.bf16.mxu0 0
  %3354 = vmatpush2.bf16.msra.mxu0 0
  %3355 = vmatprep.subr.bf16.mxu0 0
  %3356 = vmatpush2.bf16.msra.mxu0 0
  %3357 = vmatprep.subr.bf16.mxu0 0
  %3358 = vmatpush2.bf16.msra.mxu0 0
  %3359 = vmatprep.subr.bf16.mxu0 0
  %3360 = vmatpush2.bf16.msra.mxu0 0
  %3361 = vmatprep.subr.bf16.mxu0 0
  %3362 = vmatpush2.bf16.msra.mxu0 0
  %3363 = vmatprep.subr.bf16.mxu0 0
  %3364 = vmatpush2.bf16.msra.mxu0 0
  %3365 = vmatprep.subr.bf16.mxu0 0
  %3366 = vmatpush2.bf16.msra.mxu0 0
  %3367 = vmatprep.mubr.bf16.mxu0 0
  %3368 = vmatmul.mubr.bf16.gmra.mxu0 %v3279
  %v3369 = vpop.f32.mrf.mxu0
  %v3370 = vadd.f32 %v3285, %v3369
  %v3371 = vpop.f32.mrf.mxu0
  %v3372 = vpop.f32.mrf.mxu0
  %v3373 = vadd.f32 %v3285, %v3372
  %v3374 = vpop.f32.mrf.mxu0
  %3375 = vdwg.mxu0
  %v3376 = vmax.f32 %v3370, 0.0
  %v3377 = vmax.f32 %v3373, 0.0
  %v3378 = vld [vmem:[%s9] sm:$0xf]
  %v3379 = vld [vmem:[%s9 + $0x4] sm:$0xf]
  %v3380 = vld [vmem:[%s9 + $0x8] sm:$0xf]
  %v3381 = vld [vmem:[%s9 + $0xc] sm:$0xf]
  %v3382 = vld [vmem:[%s9 + $0x10] sm:$0xf]
  %v3383 = vld [vmem:[%s9 + $0x14] sm:$0xf]
  %v3384 = vld [vmem:[%s9 + $0x18] sm:$0xf]
  %v3385 = vld [vmem:[%s9 + $0x1c] sm:$0xf]
  %v3386 = vld [vmem:[%s9 + $0x20] sm:$0xf]
  %v3387 = vld [vmem:[%s9 + $0x24] sm:$0xf]
  %v3388 = vld [vmem:[%s9 + $0x28] sm:$0xf]
  %v3389 = vld [vmem:[%s9 + $0x2c] sm:$0xf]
  %v3390 = vld [vmem:[%s9 + $0x30] sm:$0xf]
  %v3391 = vld [vmem:[%s9 + $0x34] sm:$0xf]
  %v3392 = vld [vmem:[%s9 + $0x38] sm:$0xf]
  %v3393 = vld [vmem:[%s9 + $0x3c] sm:$0xf]
  %v3394 = vpack.c.bf16 %v3377, %v3376
  %v3395 = vld [vmem:[%s10] sm:$0x1]
  %v3397 = vlaneseq
  %v3398 = vshrl.u32 %v3397, 7
  %v3399 = vsub.s32 0, %v3398
  %v3400 = vrot.slane %v3395, %v3399
  %v3418 = vunpack.c.l.b16 %v3378
  %v3419 = vunpack.c.l.b16 %v3379
  %v3420 = vunpack.c.l.b16 %v3380
  %v3421 = vunpack.c.l.b16 %v3381
  %v3422 = vunpack.c.l.b16 %v3382
  %v3423 = vunpack.c.l.b16 %v3383
  %v3424 = vunpack.c.l.b16 %v3384
  %v3425 = vunpack.c.l.b16 %v3385
  %v3426 = vunpack.c.l.b16 %v3386
  %v3427 = vunpack.c.l.b16 %v3387
  %v3428 = vunpack.c.l.b16 %v3388
  %v3429 = vunpack.c.l.b16 %v3389
  %v3430 = vunpack.c.l.b16 %v3390
  %v3431 = vunpack.c.l.b16 %v3391
  %v3432 = vunpack.c.l.b16 %v3392
  %v3433 = vunpack.c.l.b16 %v3393
  %v3434 = vpack.c.b16 %v3419, %v3418
  %v3435 = vpack.c.b16 %v3421, %v3420
  %v3436 = vpack.c.b16 %v3423, %v3422
  %v3437 = vpack.c.b16 %v3425, %v3424
  %v3438 = vpack.c.b16 %v3427, %v3426
  %v3439 = vpack.c.b16 %v3429, %v3428
  %v3440 = vpack.c.b16 %v3431, %v3430
  %v3441 = vpack.c.b16 %v3433, %v3432
  %3450 = vmatprep.subr.bf16.mxu0 0
  %3451 = vmatpush1.bf16.msra.mxu0 %v3441
  %3452 = vmatprep.subr.bf16.mxu0 0
  %3453 = vmatpush1.bf16.msra.mxu0 %v3440
  %3454 = vmatprep.subr.bf16.mxu0 0
  %3455 = vmatpush1.bf16.msra.mxu0 %v3439
  %3456 = vmatprep.subr.bf16.mxu0 0
  %3457 = vmatpush1.bf16.msra.mxu0 %v3438
  %3458 = vmatprep.subr.bf16.mxu0 0
  %3459 = vmatpush1.bf16.msra.mxu0 %v3437
  %3460 = vmatprep.subr.bf16.mxu0 0
  %3461 = vmatpush1.bf16.msra.mxu0 %v3436
  %3462 = vmatprep.subr.bf16.mxu0 0
  %3463 = vmatpush1.bf16.msra.mxu0 %v3435
  %3464 = vmatprep.subr.bf16.mxu0 0
  %3465 = vmatpush1.bf16.msra.mxu0 %v3434
  %3466 = vmatprep.subr.bf16.mxu0 0
  %3467 = vmatpush2.bf16.msra.mxu0 0
  %3468 = vmatprep.subr.bf16.mxu0 0
  %3469 = vmatpush2.bf16.msra.mxu0 0
  %3470 = vmatprep.subr.bf16.mxu0 0
  %3471 = vmatpush2.bf16.msra.mxu0 0
  %3472 = vmatprep.subr.bf16.mxu0 0
  %3473 = vmatpush2.bf16.msra.mxu0 0
  %3474 = vmatprep.subr.bf16.mxu0 0
  %3475 = vmatpush2.bf16.msra.mxu0 0
  %3476 = vmatprep.subr.bf16.mxu0 0
  %3477 = vmatpush2.bf16.msra.mxu0 0
  %3478 = vmatprep.subr.bf16.mxu0 0
  %3479 = vmatpush2.bf16.msra.mxu0 0
  %3480 = vmatprep.subr.bf16.mxu0 0
  %3481 = vmatpush2.bf16.msra.mxu0 0
  %3482 = vmatprep.mubr.bf16.mxu0 0
  %3483 = vmatmul.mubr.bf16.gmra.mxu0 %v3394
  %v3484 = vpop.f32.mrf.mxu0
  %v3485 = vadd.f32 %v3400, %v3484
  %v3486 = vpop.f32.mrf.mxu0
  %v3487 = vpop.f32.mrf.mxu0
  %v3488 = vadd.f32 %v3400, %v3487
  %v3489 = vpop.f32.mrf.mxu0
  %3490 = vdwg.mxu0
  %3491 = vst [vmem:[%s11] sm:$0xff] %v3485
  %3492 = vst [vmem:[%s11 + $0x8] sm:$0xff] %v3488
  // Predicated region
  $region46: #{lenet5_forward.1} parent=0 // pred_check
    _
  $region47: #{lenet5_forward.1} parent=0 // pred_check_branch
    %3494 = sbr.rel (0) target = $region49
  $region48: #{lenet5_forward.1} parent=0 // pred_region
    _
  $region49: #{lenet5_forward.1} parent=0 // pred_fallthru
    _
  // Predicated region
  $region50: #{lenet5_forward.1} parent=0 // pred_check
    _
  $region51: #{lenet5_forward.1} parent=0 // pred_check_branch
    %3496 = sbr.rel (0) target = $region53
  $region52: #{lenet5_forward.1} parent=0 // pred_region
    _
  $region53: #{lenet5_forward.1} parent=0 // pred_fallthru
    _

</llo_original>
